<compile_context>
chip_gen: v6e
topology: v6e:2x2x1
jax: 0.10.0
libtpu: 0.0.40
codegen_flags: <defaults>
</compile_context>

<pallas_src>
import functools
import math

import jax
import jax.numpy as jnp
import numpy as np
from jax import lax
from jax.experimental import pallas as pl
from jax.experimental.pallas import tpu as pltpu

EXPANSION = 4
BN_EPS = 1e-5

# Target rows per 3x3-conv grid step: keeps the (rows, Cout) f32 accumulator well
# inside the 256 KiB vreg file.
CONV_ROW_TILE_TARGET = 256


def _round_up(x, m):
    return (x + m - 1) // m * m


@functools.lru_cache(maxsize=None)
def _vmem_limit_bytes():
    # Per-generation VMEM budget: ~75% of per-core capacity (leaves headroom for
    # Mosaic internal scratch), capped at 100 MiB, floored at 32 MiB.
    try:
        cap = int(pltpu.get_tpu_info().vmem_capacity_bytes)
    except Exception:  # pragma: no cover - conservative fallback
        cap = 128 * 1024 * 1024
    return max(32 * 1024 * 1024, min(cap * 3 // 4, 100 * 1024 * 1024))


def _default_tm():
    # 128-MiB parts (v5e/v6e) amortize grid overhead better with bigger M tiles;
    # 64-MiB v7x stays at 512.
    return 1024 if _vmem_limit_bytes() >= 80 * 1024 * 1024 else 512


def _compiler_params(grid_rank):
    return pltpu.CompilerParams(
        dimension_semantics=("parallel",) * grid_rank,
        vmem_limit_bytes=_vmem_limit_bytes(),
    )


# ----------------------------------------------------------------------------
# Pallas kernels
# ----------------------------------------------------------------------------
def _fused_matmul_kernel(*refs, n_mm, has_res, relu):
    """o = maybe_relu(sum_i x_i @ w_i + bias [+ residual]), f32 accumulation.

    refs = [x_0, w_0, (x_1, w_1, ...), bias, (residual), out]
    """
    o_ref = refs[-1]
    idx = 0
    acc = None
    for _ in range(n_mm):
        x_ref, w_ref = refs[idx], refs[idx + 1]
        idx += 2
        d = jnp.dot(x_ref[...], w_ref[...], preferred_element_type=jnp.float32)
        acc = d if acc is None else acc + d
    acc = acc + refs[idx][...]                      # (1, TN) f32 folded-BN bias
    idx += 1
    if has_res:
        acc = acc + refs[idx][...].astype(jnp.float32)
        idx += 1
    if relu:
        acc = jnp.maximum(acc, 0.0)
    o_ref[...] = acc.astype(o_ref.dtype)


def _conv3x3_kernel(x_ref, w_ref, b_ref, o_ref, *, s, th, wo):
    """3x3 / pad=1 / stride=s conv + folded BN + ReLU for one output-row tile.

    x_ref: (1, s*s, Hps, Wps, C)  phase-split, zero-padded image (bf16), resident
                                  across the row-tile grid axis.
    w_ref: (9, C, Cout)           per-tap BN-folded weights (bf16).
    b_ref: (1, Cout)              f32 bias.
    o_ref: (1, th*wo, Cout)       flat lane-dense output block for this row tile.

    Tap (kh, kw) reads phase (kh % s, kw % s) at row offset (h0 + kh // s) and
    column offset (kw // s); the f32 accumulator is only (th*wo, Cout), small
    enough to stay register-resident.
    """
    h0 = pl.program_id(1) * th                      # output-row offset in this image
    C = x_ref.shape[-1]
    acc = None
    for kh in range(3):
        for kw in range(3):
            p = (kh % s) * s + (kw % s)
            xt = x_ref[0, p, pl.ds(h0 + kh // s, th), pl.ds(kw // s, wo), :]
            d = jnp.dot(xt.reshape(th * wo, C), w_ref[kh * 3 + kw],
                        preferred_element_type=jnp.float32)
            acc = d if acc is None else acc + d
    y = jnp.maximum(acc + b_ref[...], 0.0)
    o_ref[0] = y.astype(o_ref.dtype)


# ----------------------------------------------------------------------------
# pallas_call wrappers
# ----------------------------------------------------------------------------
def fused_matmul(row_inputs, weights, bias, *, residual=None, relu=True,
                 out_dtype=jnp.bfloat16, tm=None):
    """maybe_relu(sum_i row_inputs[i] @ weights[i] + bias [+ residual]).

    Grid over (row tiles, output-channel tiles).  Activation blocks are constant
    in the channel axis (resident across the inner sweep); weight/bias blocks are
    constant in the row axis, so they are not re-fetched while M tiles stream.
    """
    M = row_inputs[0].shape[0]
    Cout = weights[0].shape[1]
    tm = tm if tm is not None else _default_tm()
    tm = min(tm, _round_up(M, 8))
    m_pad = _round_up(M, tm)
    # Output-channel tiling for very wide layers (e.g. stage-4 exp_c=2048): bounds
    # resident weight/out tiles so TM headroom survives v7x's 64 MiB VMEM.
    tn = 512 if (Cout >= 1024 and Cout % 512 == 0) else Cout

    def pad_rows(a):
        return a if m_pad == M else jnp.pad(a, ((0, m_pad - M), (0, 0)))

    operands, in_specs = [], []
    for x, w in zip(row_inputs, weights):
        K = x.shape[1]
        operands += [pad_rows(x), w]
        in_specs += [pl.BlockSpec((tm, K), lambda i, j: (i, 0)),
                     pl.BlockSpec((K, tn), lambda i, j: (0, j))]
    operands.append(bias)
    in_specs.append(pl.BlockSpec((1, tn), lambda i, j: (0, j)))
    if residual is not None:
        operands.append(pad_rows(residual))
        in_specs.append(pl.BlockSpec((tm, tn), lambda i, j: (i, j)))

    out = pl.pallas_call(
        functools.partial(_fused_matmul_kernel, n_mm=len(weights),
                          has_res=residual is not None, relu=relu),
        out_shape=jax.ShapeDtypeStruct((m_pad, Cout), out_dtype),
        grid=(m_pad // tm, Cout // tn),
        in_specs=in_specs,
        out_specs=pl.BlockSpec((tm, tn), lambda i, j: (i, j)),
        compiler_params=_compiler_params(2),
    )(*operands)
    return out if m_pad == M else out[:M]


def conv3x3_bn_relu(x_nhwc, w_taps, bias, stride, *, out_dtype=jnp.bfloat16):
    """3x3 conv (pad=1, stride) + folded BN + ReLU; returns ((N*Ho*Wo, Cout), Ho, Wo)."""
    N, H, W, C = x_nhwc.shape
    Cout = w_taps.shape[-1]
    s = stride
    Ho = (H - 1) // s + 1
    Wo = (W - 1) // s + 1

    # Row tile over the output: accumulator per grid step is (th*Wo, Cout) f32.
    th = max(1, min(Ho, max(1, CONV_ROW_TILE_TARGET // Wo)))
    if th < Ho:
        # Multiple row tiles -> keep the (th*Wo, Cout) block sublane-aligned.
        f = 8 // math.gcd(Wo, 8)
        th = min(Ho, max(f, (th // f) * f))
    n_row = pl.cdiv(Ho, th)
    ho_pad = n_row * th

    halo = 2 // s                       # extra rows/cols a 3x3 tap reaches per phase
    hps = ho_pad + halo
    wps = Wo + halo
    hp, wp = hps * s, wps * s
    xp = jnp.pad(x_nhwc, ((0, 0), (1, hp - H - 1), (1, wp - W - 1), (0, 0)))

    if s == 1:
        phases = xp[:, None]                                        # (N,1,Hps,Wps,C)
    else:
        # One-pass relayout so every conv tap is a contiguous static-phase slice
        # inside the kernel (no HBM im2col, no strided in-kernel loads).
        phases = xp.reshape(N, hps, s, wps, s, C)
        phases = jnp.transpose(phases, (0, 2, 4, 1, 3, 5)).reshape(N, s * s, hps, wps, C)

    out = pl.pallas_call(
        functools.partial(_conv3x3_kernel, s=s, th=th, wo=Wo),
        out_shape=jax.ShapeDtypeStruct((N, ho_pad * Wo, Cout), out_dtype),
        grid=(N, n_row),
        in_specs=[
            # Image plane resident across the row-tile axis (index_map constant in r).
            pl.BlockSpec((1, s * s, hps, wps, C), lambda n, r: (n, 0, 0, 0, 0)),
            pl.BlockSpec((9, C, Cout), lambda n, r: (0, 0, 0)),
            pl.BlockSpec((1, Cout), lambda n, r: (0, 0)),
        ],
        out_specs=pl.BlockSpec((1, th * Wo, Cout), lambda n, r: (n, r, 0)),
        compiler_params=_compiler_params(2),
    )(phases, w_taps, bias)

    if ho_pad != Ho:
        out = out[:, :Ho * Wo, :]
    return out.reshape(N * Ho * Wo, Cout), Ho, Wo


# ----------------------------------------------------------------------------
# Glue (plain JAX): BN folding, parameter construction
# ----------------------------------------------------------------------------
def _fold_bn(gamma, beta, mean, var):
    scale = gamma / jnp.sqrt(var + BN_EPS)
    bias = beta - mean * scale
    return (scale.reshape(1, -1).astype(jnp.float32),
            bias.reshape(1, -1).astype(jnp.float32))


def make_bottleneck_params(key, in_channels, out_channels, stride):
    """Deterministic synthetic parameters matching the nn.Module shapes (eval BN)."""
    exp_c = out_channels * EXPANSION
    ks = jax.random.split(key, 16)

    def conv_w(k, cout, cin, kh, kw):
        fan_in = cin * kh * kw
        return (jax.random.normal(k, (cout, cin, kh, kw), jnp.float32)
                * (1.0 / np.sqrt(fan_in)))

    def bn(k, c):
        k1, k2, k3, k4 = jax.random.split(k, 4)
        gamma = 1.0 + 0.1 * jax.random.normal(k1, (c,), jnp.float32)
        beta = 0.1 * jax.random.normal(k2, (c,), jnp.float32)
        mean = 0.1 * jax.random.normal(k3, (c,), jnp.float32)
        var = jnp.abs(jax.random.normal(k4, (c,), jnp.float32)) + 0.5
        return gamma, beta, mean, var

    p = {
        "w1": conv_w(ks[0], out_channels, in_channels, 1, 1),
        "bn1": bn(ks[1], out_channels),
        "w2": conv_w(ks[2], out_channels, out_channels, 3, 3),
        "bn2": bn(ks[3], out_channels),
        "w3": conv_w(ks[4], exp_c, out_channels, 1, 1),
        "bn3": bn(ks[5], exp_c),
    }
    if stride != 1 or in_channels != exp_c:
        p["ws"] = conv_w(ks[6], exp_c, in_channels, 1, 1)
        p["bns"] = bn(ks[7], exp_c)
    return p


# ----------------------------------------------------------------------------
# BottleNeck forward (Pallas hot path)
# ----------------------------------------------------------------------------
def bottleneck_forward(x_nchw, params, stride, *, tm=None):
    N, Cin, H, W = x_nchw.shape
    # TODO(synk): keep a full ResNet in NHWC/bf16 end-to-end so this boundary
    # relayout happens once per network instead of once per block.
    x = jnp.transpose(x_nchw, (0, 2, 3, 1)).astype(jnp.bfloat16)       # NHWC, bf16

    # ---- conv1: 1x1 + BN + ReLU -------------------------------------------
    s1, b1 = _fold_bn(*params["bn1"])
    w1 = (params["w1"][:, :, 0, 0].T * s1).astype(jnp.bfloat16)        # (Cin, C1)
    C1 = w1.shape[1]
    y1 = fused_matmul([x.reshape(N * H * W, Cin)], [w1], b1,
                      relu=True, out_dtype=jnp.bfloat16, tm=tm)
    y1 = y1.reshape(N, H, W, C1)

    # ---- conv2: 3x3, stride, pad=1 + BN + ReLU (row-tiled, no HBM im2col) ---
    s2, b2 = _fold_bn(*params["bn2"])
    w2 = (jnp.transpose(params["w2"], (2, 3, 1, 0)).reshape(9, C1, C1)
          * s2).astype(jnp.bfloat16)                                    # (9, C1, C1)
    y2, Ho, Wo = conv3x3_bn_relu(y1, w2, b2, stride)                    # (N*Ho*Wo, C1)

    # ---- conv3: 1x1 + BN, shortcut fused in-kernel, ReLU, bf16 output -------
    exp_c = params["w3"].shape[0]
    s3, b3 = _fold_bn(*params["bn3"])
    w3 = (params["w3"][:, :, 0, 0].T * s3).astype(jnp.bfloat16)         # (C1, exp_c)

    if "ws" in params:
        # Projection shortcut: second matmul into the same accumulator.  The
        # subsample is fused into the boundary transpose (reads only the strided
        # elements), not a separate gather pass over x.
        ss, bs = _fold_bn(*params["bns"])
        ws = (params["ws"][:, :, 0, 0].T * ss).astype(jnp.bfloat16)     # (Cin, exp_c)
        x_s = jnp.transpose(x_nchw[:, :, ::stride, ::stride], (0, 2, 3, 1))
        x_s = x_s.astype(jnp.bfloat16).reshape(N * Ho * Wo, Cin)
        out = fused_matmul([y2, x_s], [w3, ws], b3 + bs,
                           relu=True, out_dtype=jnp.bfloat16, tm=tm)
    else:
        # Identity shortcut: fused residual add.
        res = x.reshape(N * Ho * Wo, exp_c)
        out = fused_matmul([y2], [w3], b3, residual=res,
                           relu=True, out_dtype=jnp.bfloat16, tm=tm)

    out = out.reshape(N, Ho, Wo, exp_c)
    return jnp.transpose(out, (0, 3, 1, 2))                             # back to NCHW


# ----------------------------------------------------------------------------
# Pure-JAX reference (eval-mode BN, f32), for correctness check
# ----------------------------------------------------------------------------
def _ref_forward(x, params, stride):
    def conv(x, w, s):
        return lax.conv_general_dilated(
            x, w, window_strides=(s, s),
            padding=[(0, 0), (0, 0)] if w.shape[-1] == 1 else [(1, 1), (1, 1)],
            dimension_numbers=("NCHW", "OIHW", "NCHW"))

    def bn(x, p):
        g, b, m, v = p
        return (x - m[None, :, None, None]) / jnp.sqrt(v[None, :, None, None] + BN_EPS) \
            * g[None, :, None, None] + b[None, :, None, None]

    y = jax.nn.relu(bn(conv(x, params["w1"], 1), params["bn1"]))
    y = jax.nn.relu(bn(conv(y, params["w2"], stride), params["bn2"]))
    y = bn(conv(y, params["w3"], 1), params["bn3"])
    if "ws" in params:
        sc = bn(conv(x, params["ws"], stride), params["bns"])
    else:
        sc = x
    return jax.nn.relu(y + sc)


# ----------------------------------------------------------------------------
if __name__ == "__main__":
    key = jax.random.PRNGKey(0)

    # (N, Cin, H, W, out_channels, stride):
    #   config 0 exercises the projection shortcut (stride 2), config 1 the
    #   identity shortcut.  out_channels*4 = 128 keeps the final matmul lane-dense.
    configs = [
        (2, 64, 16, 16, 32, 2),
        (2, 128, 16, 16, 32, 1),
    ]

    for i, (N, Cin, H, W, oc, stride) in enumerate(configs):
        k_x, k_p = jax.random.split(jax.random.fold_in(key, i))
        x = jax.random.normal(k_x, (N, Cin, H, W), jnp.float32)
        params = make_bottleneck_params(k_p, Cin, oc, stride)

        fwd = jax.jit(functools.partial(bottleneck_forward, stride=stride))
        out = jax.block_until_ready(fwd(x, params))
        ref = jax.block_until_ready(_ref_forward(x, params, stride))

        out_np = np.asarray(out).astype(np.float32)
        ref_np = np.asarray(ref)
        # bf16 matmuls / bf16 output vs f32 reference -> loose pointwise tolerance
        # plus a tight global relative-error check (a structural bug would be O(1)).
        rel_fro = np.linalg.norm(out_np - ref_np) / (np.linalg.norm(ref_np) + 1e-6)
        assert rel_fro < 3e-2, f"relative error too large: {rel_fro}"
        np.testing.assert_allclose(out_np, ref_np, rtol=5e-2, atol=2e-1)

        Ho = (H - 1) // stride + 1
        Wo = (W - 1) // stride + 1
        assert out.shape == (N, oc * EXPANSION, Ho, Wo)

    print("KERNEL_OK")
</pallas_src>

<mosaic_0001>
module attributes {stable_mosaic.version = 11 : i64} {
  func.func @_fused_matmul_kernel(%arg0: i32, %arg1: i32, %arg2: memref<512x64xbf16, #tpu.memory_space<vmem>>, %arg3: memref<64x32xbf16, #tpu.memory_space<vmem>>, %arg4: memref<1x32xf32, #tpu.memory_space<vmem>>, %arg5: memref<512x32xbf16, #tpu.memory_space<vmem>>) attributes {dimension_semantics = [#tpu.dimension_semantics<parallel>, #tpu.dimension_semantics<parallel>], iteration_bounds = array<i64: 1, 1>, scalar_prefetch = 0 : i64, scratch_operands = 0 : i64, tpu.core_type = #tpu.core_type<tc>, window_params = [{transform_indices = @transform_0, window_bounds = array<i64: 512, 64>}, {transform_indices = @transform_1, window_bounds = array<i64: 64, 32>}, {transform_indices = @transform_2, window_bounds = array<i64: 1, 32>}, {transform_indices = @transform_3, window_bounds = array<i64: 512, 32>}]} {
    %c0 = arith.constant 0 : index
    %c0_0 = arith.constant 0 : index
    %0 = vector.load %arg2[%c0, %c0_0] : memref<512x64xbf16, #tpu.memory_space<vmem>>, vector<512x64xbf16>
    %c0_1 = arith.constant 0 : index
    %c0_2 = arith.constant 0 : index
    %1 = vector.load %arg3[%c0_1, %c0_2] : memref<64x32xbf16, #tpu.memory_space<vmem>>, vector<64x32xbf16>
    %cst = arith.constant dense<0.000000e+00> : vector<512x32xf32>
    %2 = tpu.matmul %0, %1, %cst {dimension_numbers = #tpu.dot_dimension_numbers<[1], [0], [0], [1], [0, 0, 1, 1], [], []>} : vector<512x64xbf16>, vector<64x32xbf16>, vector<512x32xf32> -> vector<512x32xf32>
    %c0_3 = arith.constant 0 : index
    %c0_4 = arith.constant 0 : index
    %3 = vector.load %arg4[%c0_3, %c0_4] : memref<1x32xf32, #tpu.memory_space<vmem>>, vector<1x32xf32>
    %4 = vector.broadcast %3 : vector<1x32xf32> to vector<512x32xf32>
    %5 = arith.addf %2, %4 : vector<512x32xf32>
    %cst_5 = arith.constant 0.000000e+00 : f32
    %6 = vector.broadcast %cst_5 : f32 to vector<512x32xf32>
    %7 = arith.maximumf %5, %6 : vector<512x32xf32>
    %8 = arith.truncf %7 : vector<512x32xf32> to vector<512x32xbf16>
    %c0_6 = arith.constant 0 : index
    %c0_7 = arith.constant 0 : index
    %9 = vector.load %arg5[%c0_6, %c0_7] : memref<512x32xbf16, #tpu.memory_space<vmem>>, vector<512x32xbf16>
    tpu.vector_store %arg5[%c0_6, %c0_7], %8 {strides = array<i32>} : memref<512x32xbf16, #tpu.memory_space<vmem>>, vector<512x32xbf16>,
    return
  }
  func.func @transform_0(%arg0: i32, %arg1: i32) -> (i32, i32) {
    %c0_i32 = arith.constant 0 : i32
    %c0_i32_0 = arith.constant 0 : i32
    return %arg0, %c0_i32 : i32, i32
  }
  func.func @transform_1(%arg0: i32, %arg1: i32) -> (i32, i32) {
    %c0_i32 = arith.constant 0 : i32
    %c0_i32_0 = arith.constant 0 : i32
    return %c0_i32, %arg1 : i32, i32
  }
  func.func @transform_2(%arg0: i32, %arg1: i32) -> (i32, i32) {
    %c0_i32 = arith.constant 0 : i32
    %c0_i32_0 = arith.constant 0 : i32
    return %c0_i32, %arg1 : i32, i32
  }
  func.func @transform_3(%arg0: i32, %arg1: i32) -> (i32, i32) {
    %c0_i32 = arith.constant 0 : i32
    return %arg0, %arg1 : i32, i32
  }
}

module attributes {stable_mosaic.version = 11 : i64} {
  func.func @_conv3x3_kernel(%arg0: i32, %arg1: i32, %arg2: memref<1x4x9x9x32xbf16, #tpu.memory_space<vmem>>, %arg3: memref<9x32x32xbf16, #tpu.memory_space<vmem>>, %arg4: memref<1x32xf32, #tpu.memory_space<vmem>>, %arg5: memref<1x64x32xbf16, #tpu.memory_space<vmem>>) attributes {dimension_semantics = [#tpu.dimension_semantics<parallel>, #tpu.dimension_semantics<parallel>], iteration_bounds = array<i64: 2, 1>, scalar_prefetch = 0 : i64, scratch_operands = 0 : i64, tpu.core_type = #tpu.core_type<tc>, window_params = [{transform_indices = @transform_0, window_bounds = array<i64: 1, 4, 9, 9, 32>}, {pipeline_mode = #tpu.pipeline_mode<synchronous>, transform_indices = @transform_1, window_bounds = array<i64: 9, 32, 32>}, {pipeline_mode = #tpu.pipeline_mode<synchronous>, transform_indices = @transform_2, window_bounds = array<i64: 1, 32>}, {transform_indices = @transform_3, window_bounds = array<i64: 1, 64, 32>}]} {
    %c8_i32 = arith.constant 8 : i32
    %0 = arith.muli %arg1, %c8_i32 : i32
    %c0_i32 = arith.constant 0 : i32
    %1 = arith.addi %0, %c0_i32 : i32
    %c0 = arith.constant 0 : index
    %c0_0 = arith.constant 0 : index
    %2 = arith.index_cast %1 : i32 to index
    %c0_1 = arith.constant 0 : index
    %c0_2 = arith.constant 0 : index
    %3 = vector.load %arg2[%c0, %c0_0, %2, %c0_1, %c0_2] : memref<1x4x9x9x32xbf16, #tpu.memory_space<vmem>>, vector<1x1x8x8x32xbf16>
    %4 = vector.shape_cast %3 : vector<1x1x8x8x32xbf16> to vector<8x8x32xbf16>
    %5 = vector.shape_cast %4 : vector<8x8x32xbf16> to vector<64x32xbf16>
    %c0_3 = arith.constant 0 : index
    %c0_4 = arith.constant 0 : index
    %c0_5 = arith.constant 0 : index
    %6 = vector.load %arg3[%c0_3, %c0_4, %c0_5] : memref<9x32x32xbf16, #tpu.memory_space<vmem>>, vector<1x32x32xbf16>
    %7 = vector.shape_cast %6 : vector<1x32x32xbf16> to vector<32x32xbf16>
    %cst = arith.constant dense<0.000000e+00> : vector<64x32xf32>
    %8 = tpu.matmul %5, %7, %cst {dimension_numbers = #tpu.dot_dimension_numbers<[1], [0], [0], [1], [0, 0, 1, 1], [], []>} : vector<64x32xbf16>, vector<32x32xbf16>, vector<64x32xf32> -> vector<64x32xf32>
    %c0_i32_6 = arith.constant 0 : i32
    %9 = arith.addi %0, %c0_i32_6 : i32
    %c0_7 = arith.constant 0 : index
    %c1 = arith.constant 1 : index
    %10 = arith.index_cast %9 : i32 to index
    %c0_8 = arith.constant 0 : index
    %c0_9 = arith.constant 0 : index
    %11 = vector.load %arg2[%c0_7, %c1, %10, %c0_8, %c0_9] : memref<1x4x9x9x32xbf16, #tpu.memory_space<vmem>>, vector<1x1x8x8x32xbf16>
    %12 = vector.shape_cast %11 : vector<1x1x8x8x32xbf16> to vector<8x8x32xbf16>
    %13 = vector.shape_cast %12 : vector<8x8x32xbf16> to vector<64x32xbf16>
    %c1_10 = arith.constant 1 : index
    %c0_11 = arith.constant 0 : index
    %c0_12 = arith.constant 0 : index
    %14 = vector.load %arg3[%c1_10, %c0_11, %c0_12] : memref<9x32x32xbf16, #tpu.memory_space<vmem>>, vector<1x32x32xbf16>
    %15 = vector.shape_cast %14 : vector<1x32x32xbf16> to vector<32x32xbf16>
    %cst_13 = arith.constant dense<0.000000e+00> : vector<64x32xf32>
    %16 = tpu.matmul %13, %15, %cst_13 {dimension_numbers = #tpu.dot_dimension_numbers<[1], [0], [0], [1], [0, 0, 1, 1], [], []>} : vector<64x32xbf16>, vector<32x32xbf16>, vector<64x32xf32> -> vector<64x32xf32>
    %17 = arith.addf %8, %16 : vector<64x32xf32>
    %c0_i32_14 = arith.constant 0 : i32
    %18 = arith.addi %0, %c0_i32_14 : i32
    %c0_15 = arith.constant 0 : index
    %c0_16 = arith.constant 0 : index
    %19 = arith.index_cast %18 : i32 to index
    %c1_17 = arith.constant 1 : index
    %c0_18 = arith.constant 0 : index
    %20 = vector.load %arg2[%c0_15, %c0_16, %19, %c1_17, %c0_18] : memref<1x4x9x9x32xbf16, #tpu.memory_space<vmem>>, vector<1x1x8x8x32xbf16>
    %21 = vector.shape_cast %20 : vector<1x1x8x8x32xbf16> to vector<8x8x32xbf16>
    %22 = vector.shape_cast %21 : vector<8x8x32xbf16> to vector<64x32xbf16>
    %c2 = arith.constant 2 : index
    %c0_19 = arith.constant 0 : index
    %c0_20 = arith.constant 0 : index
    %23 = vector.load %arg3[%c2, %c0_19, %c0_20] : memref<9x32x32xbf16, #tpu.memory_space<vmem>>, vector<1x32x32xbf16>
    %24 = vector.shape_cast %23 : vector<1x32x32xbf16> to vector<32x32xbf16>
    %cst_21 = arith.constant dense<0.000000e+00> : vector<64x32xf32>
    %25 = tpu.matmul %22, %24, %cst_21 {dimension_numbers = #tpu.dot_dimension_numbers<[1], [0], [0], [1], [0, 0, 1, 1], [], []>} : vector<64x32xbf16>, vector<32x32xbf16>, vector<64x32xf32> -> vector<64x32xf32>
    %26 = arith.addf %17, %25 : vector<64x32xf32>
    %c0_i32_22 = arith.constant 0 : i32
    %27 = arith.addi %0, %c0_i32_22 : i32
    %c0_23 = arith.constant 0 : index
    %c2_24 = arith.constant 2 : index
    %28 = arith.index_cast %27 : i32 to index
    %c0_25 = arith.constant 0 : index
    %c0_26 = arith.constant 0 : index
    %29 = vector.load %arg2[%c0_23, %c2_24, %28, %c0_25, %c0_26] : memref<1x4x9x9x32xbf16, #tpu.memory_space<vmem>>, vector<1x1x8x8x32xbf16>
    %30 = vector.shape_cast %29 : vector<1x1x8x8x32xbf16> to vector<8x8x32xbf16>
    %31 = vector.shape_cast %30 : vector<8x8x32xbf16> to vector<64x32xbf16>
    %c3 = arith.constant 3 : index
    %c0_27 = arith.constant 0 : index
    %c0_28 = arith.constant 0 : index
    %32 = vector.load %arg3[%c3, %c0_27, %c0_28] : memref<9x32x32xbf16, #tpu.memory_space<vmem>>, vector<1x32x32xbf16>
    %33 = vector.shape_cast %32 : vector<1x32x32xbf16> to vector<32x32xbf16>
    %cst_29 = arith.constant dense<0.000000e+00> : vector<64x32xf32>
    %34 = tpu.matmul %31, %33, %cst_29 {dimension_numbers = #tpu.dot_dimension_numbers<[1], [0], [0], [1], [0, 0, 1, 1], [], []>} : vector<64x32xbf16>, vector<32x32xbf16>, vector<64x32xf32> -> vector<64x32xf32>
    %35 = arith.addf %26, %34 : vector<64x32xf32>
    %c0_i32_30 = arith.constant 0 : i32
    %36 = arith.addi %0, %c0_i32_30 : i32
    %c0_31 = arith.constant 0 : index
    %c3_32 = arith.constant 3 : index
    %37 = arith.index_cast %36 : i32 to index
    %c0_33 = arith.constant 0 : index
    %c0_34 = arith.constant 0 : index
    %38 = vector.load %arg2[%c0_31, %c3_32, %37, %c0_33, %c0_34] : memref<1x4x9x9x32xbf16, #tpu.memory_space<vmem>>, vector<1x1x8x8x32xbf16>
    %39 = vector.shape_cast %38 : vector<1x1x8x8x32xbf16> to vector<8x8x32xbf16>
    %40 = vector.shape_cast %39 : vector<8x8x32xbf16> to vector<64x32xbf16>
    %c4 = arith.constant 4 : index
    %c0_35 = arith.constant 0 : index
    %c0_36 = arith.constant 0 : index
    %41 = vector.load %arg3[%c4, %c0_35, %c0_36] : memref<9x32x32xbf16, #tpu.memory_space<vmem>>, vector<1x32x32xbf16>
    %42 = vector.shape_cast %41 : vector<1x32x32xbf16> to vector<32x32xbf16>
    %cst_37 = arith.constant dense<0.000000e+00> : vector<64x32xf32>
    %43 = tpu.matmul %40, %42, %cst_37 {dimension_numbers = #tpu.dot_dimension_numbers<[1], [0], [0], [1], [0, 0, 1, 1], [], []>} : vector<64x32xbf16>, vector<32x32xbf16>, vector<64x32xf32> -> vector<64x32xf32>
    %44 = arith.addf %35, %43 : vector<64x32xf32>
    %c0_i32_38 = arith.constant 0 : i32
    %45 = arith.addi %0, %c0_i32_38 : i32
    %c0_39 = arith.constant 0 : index
    %c2_40 = arith.constant 2 : index
    %46 = arith.index_cast %45 : i32 to index
    %c1_41 = arith.constant 1 : index
    %c0_42 = arith.constant 0 : index
    %47 = vector.load %arg2[%c0_39, %c2_40, %46, %c1_41, %c0_42] : memref<1x4x9x9x32xbf16, #tpu.memory_space<vmem>>, vector<1x1x8x8x32xbf16>
    %48 = vector.shape_cast %47 : vector<1x1x8x8x32xbf16> to vector<8x8x32xbf16>
    %49 = vector.shape_cast %48 : vector<8x8x32xbf16> to vector<64x32xbf16>
    %c5 = arith.constant 5 : index
    %c0_43 = arith.constant 0 : index
    %c0_44 = arith.constant 0 : index
    %50 = vector.load %arg3[%c5, %c0_43, %c0_44] : memref<9x32x32xbf16, #tpu.memory_space<vmem>>, vector<1x32x32xbf16>
    %51 = vector.shape_cast %50 : vector<1x32x32xbf16> to vector<32x32xbf16>
    %cst_45 = arith.constant dense<0.000000e+00> : vector<64x32xf32>
    %52 = tpu.matmul %49, %51, %cst_45 {dimension_numbers = #tpu.dot_dimension_numbers<[1], [0], [0], [1], [0, 0, 1, 1], [], []>} : vector<64x32xbf16>, vector<32x32xbf16>, vector<64x32xf32> -> vector<64x32xf32>
    %53 = arith.addf %44, %52 : vector<64x32xf32>
    %c1_i32 = arith.constant 1 : i32
    %54 = arith.addi %0, %c1_i32 : i32
    %c0_46 = arith.constant 0 : index
    %c0_47 = arith.constant 0 : index
    %55 = arith.index_cast %54 : i32 to index
    %c0_48 = arith.constant 0 : index
    %c0_49 = arith.constant 0 : index
    %56 = vector.load %arg2[%c0_46, %c0_47, %55, %c0_48, %c0_49] : memref<1x4x9x9x32xbf16, #tpu.memory_space<vmem>>, vector<1x1x8x8x32xbf16>
    %57 = vector.shape_cast %56 : vector<1x1x8x8x32xbf16> to vector<8x8x32xbf16>
    %58 = vector.shape_cast %57 : vector<8x8x32xbf16> to vector<64x32xbf16>
    %c6 = arith.constant 6 : index
    %c0_50 = arith.constant 0 : index
    %c0_51 = arith.constant 0 : index
    %59 = vector.load %arg3[%c6, %c0_50, %c0_51] : memref<9x32x32xbf16, #tpu.memory_space<vmem>>, vector<1x32x32xbf16>
    %60 = vector.shape_cast %59 : vector<1x32x32xbf16> to vector<32x32xbf16>
    %cst_52 = arith.constant dense<0.000000e+00> : vector<64x32xf32>
    %61 = tpu.matmul %58, %60, %cst_52 {dimension_numbers = #tpu.dot_dimension_numbers<[1], [0], [0], [1], [0, 0, 1, 1], [], []>} : vector<64x32xbf16>, vector<32x32xbf16>, vector<64x32xf32> -> vector<64x32xf32>
    %62 = arith.addf %53, %61 : vector<64x32xf32>
    %c1_i32_53 = arith.constant 1 : i32
    %63 = arith.addi %0, %c1_i32_53 : i32
    %c0_54 = arith.constant 0 : index
    %c1_55 = arith.constant 1 : index
    %64 = arith.index_cast %63 : i32 to index
    %c0_56 = arith.constant 0 : index
    %c0_57 = arith.constant 0 : index
    %65 = vector.load %arg2[%c0_54, %c1_55, %64, %c0_56, %c0_57] : memref<1x4x9x9x32xbf16, #tpu.memory_space<vmem>>, vector<1x1x8x8x32xbf16>
    %66 = vector.shape_cast %65 : vector<1x1x8x8x32xbf16> to vector<8x8x32xbf16>
    %67 = vector.shape_cast %66 : vector<8x8x32xbf16> to vector<64x32xbf16>
    %c7 = arith.constant 7 : index
    %c0_58 = arith.constant 0 : index
    %c0_59 = arith.constant 0 : index
    %68 = vector.load %arg3[%c7, %c0_58, %c0_59] : memref<9x32x32xbf16, #tpu.memory_space<vmem>>, vector<1x32x32xbf16>
    %69 = vector.shape_cast %68 : vector<1x32x32xbf16> to vector<32x32xbf16>
    %cst_60 = arith.constant dense<0.000000e+00> : vector<64x32xf32>
    %70 = tpu.matmul %67, %69, %cst_60 {dimension_numbers = #tpu.dot_dimension_numbers<[1], [0], [0], [1], [0, 0, 1, 1], [], []>} : vector<64x32xbf16>, vector<32x32xbf16>, vector<64x32xf32> -> vector<64x32xf32>
    %71 = arith.addf %62, %70 : vector<64x32xf32>
    %c1_i32_61 = arith.constant 1 : i32
    %72 = arith.addi %0, %c1_i32_61 : i32
    %c0_62 = arith.constant 0 : index
    %c0_63 = arith.constant 0 : index
    %73 = arith.index_cast %72 : i32 to index
    %c1_64 = arith.constant 1 : index
    %c0_65 = arith.constant 0 : index
    %74 = vector.load %arg2[%c0_62, %c0_63, %73, %c1_64, %c0_65] : memref<1x4x9x9x32xbf16, #tpu.memory_space<vmem>>, vector<1x1x8x8x32xbf16>
    %75 = vector.shape_cast %74 : vector<1x1x8x8x32xbf16> to vector<8x8x32xbf16>
    %76 = vector.shape_cast %75 : vector<8x8x32xbf16> to vector<64x32xbf16>
    %c8 = arith.constant 8 : index
    %c0_66 = arith.constant 0 : index
    %c0_67 = arith.constant 0 : index
    %77 = vector.load %arg3[%c8, %c0_66, %c0_67] : memref<9x32x32xbf16, #tpu.memory_space<vmem>>, vector<1x32x32xbf16>
    %78 = vector.shape_cast %77 : vector<1x32x32xbf16> to vector<32x32xbf16>
    %cst_68 = arith.constant dense<0.000000e+00> : vector<64x32xf32>
    %79 = tpu.matmul %76, %78, %cst_68 {dimension_numbers = #tpu.dot_dimension_numbers<[1], [0], [0], [1], [0, 0, 1, 1], [], []>} : vector<64x32xbf16>, vector<32x32xbf16>, vector<64x32xf32> -> vector<64x32xf32>
    %80 = arith.addf %71, %79 : vector<64x32xf32>
    %c0_69 = arith.constant 0 : index
    %c0_70 = arith.constant 0 : index
    %81 = vector.load %arg4[%c0_69, %c0_70] : memref<1x32xf32, #tpu.memory_space<vmem>>, vector<1x32xf32>
    %82 = vector.broadcast %81 : vector<1x32xf32> to vector<64x32xf32>
    %83 = arith.addf %80, %82 : vector<64x32xf32>
    %cst_71 = arith.constant 0.000000e+00 : f32
    %84 = vector.broadcast %cst_71 : f32 to vector<64x32xf32>
    %85 = arith.maximumf %83, %84 : vector<64x32xf32>
    %86 = arith.truncf %85 : vector<64x32xf32> to vector<64x32xbf16>
    %c0_72 = arith.constant 0 : index
    %c0_73 = arith.constant 0 : index
    %c0_74 = arith.constant 0 : index
    %87 = vector.load %arg5[%c0_72, %c0_73, %c0_74] : memref<1x64x32xbf16, #tpu.memory_space<vmem>>, vector<1x64x32xbf16>
    %88 = vector.shape_cast %87 : vector<1x64x32xbf16> to vector<64x32xbf16>
    %89 = vector.shape_cast %86 : vector<64x32xbf16> to vector<1x64x32xbf16>
    tpu.vector_store %arg5[%c0_72, %c0_73, %c0_74], %89 {strides = array<i32>} : memref<1x64x32xbf16, #tpu.memory_space<vmem>>, vector<1x64x32xbf16>,
    return
  }
  func.func @transform_0(%arg0: i32, %arg1: i32) -> (i32, i32, i32, i32, i32) {
    %c0_i32 = arith.constant 0 : i32
    %c0_i32_0 = arith.constant 0 : i32
    %c0_i32_1 = arith.constant 0 : i32
    %c0_i32_2 = arith.constant 0 : i32
    %c0_i32_3 = arith.constant 0 : i32
    return %arg0, %c0_i32, %c0_i32_0, %c0_i32_1, %c0_i32_2 : i32, i32, i32, i32, i32
  }
  func.func @transform_1(%arg0: i32, %arg1: i32) -> (i32, i32, i32) {
    %c0_i32 = arith.constant 0 : i32
    %c0_i32_0 = arith.constant 0 : i32
    %c0_i32_1 = arith.constant 0 : i32
    %c0_i32_2 = arith.constant 0 : i32
    return %c0_i32, %c0_i32_0, %c0_i32_1 : i32, i32, i32
  }
  func.func @transform_2(%arg0: i32, %arg1: i32) -> (i32, i32) {
    %c0_i32 = arith.constant 0 : i32
    %c0_i32_0 = arith.constant 0 : i32
    %c0_i32_1 = arith.constant 0 : i32
    return %c0_i32, %c0_i32_0 : i32, i32
  }
  func.func @transform_3(%arg0: i32, %arg1: i32) -> (i32, i32, i32) {
    %c0_i32 = arith.constant 0 : i32
    %c0_i32_0 = arith.constant 0 : i32
    return %arg0, %arg1, %c0_i32 : i32, i32, i32
  }
}

module attributes {stable_mosaic.version = 11 : i64} {
  func.func @_fused_matmul_kernel(%arg0: i32, %arg1: i32, %arg2: memref<128x32xbf16, #tpu.memory_space<vmem>>, %arg3: memref<32x128xbf16, #tpu.memory_space<vmem>>, %arg4: memref<128x64xbf16, #tpu.memory_space<vmem>>, %arg5: memref<64x128xbf16, #tpu.memory_space<vmem>>, %arg6: memref<1x128xf32, #tpu.memory_space<vmem>>, %arg7: memref<128x128xbf16, #tpu.memory_space<vmem>>) attributes {dimension_semantics = [#tpu.dimension_semantics<parallel>, #tpu.dimension_semantics<parallel>], iteration_bounds = array<i64: 1, 1>, scalar_prefetch = 0 : i64, scratch_operands = 0 : i64, tpu.core_type = #tpu.core_type<tc>, window_params = [{transform_indices = @transform_0, window_bounds = array<i64: 128, 32>}, {transform_indices = @transform_1, window_bounds = array<i64: 32, 128>}, {transform_indices = @transform_2, window_bounds = array<i64: 128, 64>}, {transform_indices = @transform_3, window_bounds = array<i64: 64, 128>}, {transform_indices = @transform_4, window_bounds = array<i64: 1, 128>}, {transform_indices = @transform_5, window_bounds = array<i64: 128, 128>}]} {
    %c0 = arith.constant 0 : index
    %c0_0 = arith.constant 0 : index
    %0 = vector.load %arg2[%c0, %c0_0] : memref<128x32xbf16, #tpu.memory_space<vmem>>, vector<128x32xbf16>
    %c0_1 = arith.constant 0 : index
    %c0_2 = arith.constant 0 : index
    %1 = vector.load %arg3[%c0_1, %c0_2] : memref<32x128xbf16, #tpu.memory_space<vmem>>, vector<32x128xbf16>
    %cst = arith.constant dense<0.000000e+00> : vector<128x128xf32>
    %2 = tpu.matmul %0, %1, %cst {dimension_numbers = #tpu.dot_dimension_numbers<[1], [0], [0], [1], [0, 0, 1, 1], [], []>} : vector<128x32xbf16>, vector<32x128xbf16>, vector<128x128xf32> -> vector<128x128xf32>
    %c0_3 = arith.constant 0 : index
    %c0_4 = arith.constant 0 : index
    %3 = vector.load %arg4[%c0_3, %c0_4] : memref<128x64xbf16, #tpu.memory_space<vmem>>, vector<128x64xbf16>
    %c0_5 = arith.constant 0 : index
    %c0_6 = arith.constant 0 : index
    %4 = vector.load %arg5[%c0_5, %c0_6] : memref<64x128xbf16, #tpu.memory_space<vmem>>, vector<64x128xbf16>
    %cst_7 = arith.constant dense<0.000000e+00> : vector<128x128xf32>
    %5 = tpu.matmul %3, %4, %cst_7 {dimension_numbers = #tpu.dot_dimension_numbers<[1], [0], [0], [1], [0, 0, 1, 1], [], []>} : vector<128x64xbf16>, vector<64x128xbf16>, vector<128x128xf32> -> vector<128x128xf32>
    %6 = arith.addf %2, %5 : vector<128x128xf32>
    %c0_8 = arith.constant 0 : index
    %c0_9 = arith.constant 0 : index
    %7 = vector.load %arg6[%c0_8, %c0_9] : memref<1x128xf32, #tpu.memory_space<vmem>>, vector<1x128xf32>
    %8 = vector.broadcast %7 : vector<1x128xf32> to vector<128x128xf32>
    %9 = arith.addf %6, %8 : vector<128x128xf32>
    %cst_10 = arith.constant 0.000000e+00 : f32
    %10 = vector.broadcast %cst_10 : f32 to vector<128x128xf32>
    %11 = arith.maximumf %9, %10 : vector<128x128xf32>
    %12 = arith.truncf %11 : vector<128x128xf32> to vector<128x128xbf16>
    %c0_11 = arith.constant 0 : index
    %c0_12 = arith.constant 0 : index
    %13 = vector.load %arg7[%c0_11, %c0_12] : memref<128x128xbf16, #tpu.memory_space<vmem>>, vector<128x128xbf16>
    tpu.vector_store %arg7[%c0_11, %c0_12], %12 {strides = array<i32>} : memref<128x128xbf16, #tpu.memory_space<vmem>>, vector<128x128xbf16>,
    return
  }
  func.func @transform_0(%arg0: i32, %arg1: i32) -> (i32, i32) {
    %c0_i32 = arith.constant 0 : i32
    %c0_i32_0 = arith.constant 0 : i32
    return %arg0, %c0_i32 : i32, i32
  }
  func.func @transform_1(%arg0: i32, %arg1: i32) -> (i32, i32) {
    %c0_i32 = arith.constant 0 : i32
    %c0_i32_0 = arith.constant 0 : i32
    return %c0_i32, %arg1 : i32, i32
  }
  func.func @transform_2(%arg0: i32, %arg1: i32) -> (i32, i32) {
    %c0_i32 = arith.constant 0 : i32
    %c0_i32_0 = arith.constant 0 : i32
    return %arg0, %c0_i32 : i32, i32
  }
  func.func @transform_3(%arg0: i32, %arg1: i32) -> (i32, i32) {
    %c0_i32 = arith.constant 0 : i32
    %c0_i32_0 = arith.constant 0 : i32
    return %c0_i32, %arg1 : i32, i32
  }
  func.func @transform_4(%arg0: i32, %arg1: i32) -> (i32, i32) {
    %c0_i32 = arith.constant 0 : i32
    %c0_i32_0 = arith.constant 0 : i32
    return %c0_i32, %arg1 : i32, i32
  }
  func.func @transform_5(%arg0: i32, %arg1: i32) -> (i32, i32) {
    %c0_i32 = arith.constant 0 : i32
    return %arg0, %arg1 : i32, i32
  }
}

</mosaic_0001>

<llo_original>
// kernel: bottleneck_forward.3
$region0: #{bottleneck_forward.3}
  #allocation0 [shape = 'u32[]', space=smem, size = 0x4, offset = 0x4, fixed_abs, tag = 'smem constant byte address 0x4 - core index']
  #allocation1 [shape = 'u32[144,128]{1,0:T(1,128)}', space=vmem, size = 0x12000, scoped, tag = 'internal scratch']
  %s0 = inlined_call_operand.vmem [shape: bf16[512,64], index: 0, kind: input, shape index: {}]
  %s1 = inlined_call_operand.vmem [shape: bf16[64,32], index: 1, kind: input, shape index: {}]
  %s2 = inlined_call_operand.vmem [shape: f32[1,32], index: 2, kind: input, shape index: {}]
  %s3 = inlined_call_operand.vmem [shape: bf16[512,32], index: 3, kind: output, shape index: {}]
  %s4 = sld [smem:[#allocation0]]
  $region22: #{bottleneck_forward.3} parent=0
    _
  %s6 = ssub.s32 1, %s4
  %s7 = scalar_select 0, %s6, %s4
  // Predicated region
  $region2: #{bottleneck_forward.3} parent=0 // pred_check
    _
  $region3: #{bottleneck_forward.3} parent=0 // pred_check_branch
    %9 = sbr.rel (0) target = $region5
  $region4: #{bottleneck_forward.3} parent=0 // pred_region
    _
  $region5: #{bottleneck_forward.3} parent=0 // pred_fallthru
    _
  // Predicated region
  $region6: #{bottleneck_forward.3} parent=0 // pred_check
    _
  $region7: #{bottleneck_forward.3} parent=0 // pred_check_branch
    %11 = sbr.rel (0) target = $region9
  $region8: #{bottleneck_forward.3} parent=0 // pred_region
    _
  $region9: #{bottleneck_forward.3} parent=0 // pred_fallthru
    _
  // Predicated region
  $region10: #{bottleneck_forward.3} parent=0 // pred_check
    _
  $region11: #{bottleneck_forward.3} parent=0 // pred_check_branch
    %13 = sbr.rel (0) target = $region13
  $region12: #{bottleneck_forward.3} parent=0 // pred_region
    _
  $region13: #{bottleneck_forward.3} parent=0 // pred_fallthru
    _
  %v15 = vld [vmem:[%s0] sm:$0xf]
  %v16 = vld [vmem:[%s0 + $0x4] sm:$0xf]
  %v17 = vld [vmem:[%s0 + $0x8] sm:$0xf]
  %v18 = vld [vmem:[%s0 + $0xc] sm:$0xf]
  %v19 = vld [vmem:[%s0 + $0x10] sm:$0xf]
  %v20 = vld [vmem:[%s0 + $0x14] sm:$0xf]
  %v21 = vld [vmem:[%s0 + $0x18] sm:$0xf]
  %v22 = vld [vmem:[%s0 + $0x1c] sm:$0xf]
  %v23 = vld [vmem:[%s0 + $0x20] sm:$0xf]
  %v24 = vld [vmem:[%s0 + $0x24] sm:$0xf]
  %v25 = vld [vmem:[%s0 + $0x28] sm:$0xf]
  %v26 = vld [vmem:[%s0 + $0x2c] sm:$0xf]
  %v27 = vld [vmem:[%s0 + $0x30] sm:$0xf]
  %v28 = vld [vmem:[%s0 + $0x34] sm:$0xf]
  %v29 = vld [vmem:[%s0 + $0x38] sm:$0xf]
  %v30 = vld [vmem:[%s0 + $0x3c] sm:$0xf]
  %v31 = vld [vmem:[%s0 + $0x40] sm:$0xf]
  %v32 = vld [vmem:[%s0 + $0x44] sm:$0xf]
  %v33 = vld [vmem:[%s0 + $0x48] sm:$0xf]
  %v34 = vld [vmem:[%s0 + $0x4c] sm:$0xf]
  %v35 = vld [vmem:[%s0 + $0x50] sm:$0xf]
  %v36 = vld [vmem:[%s0 + $0x54] sm:$0xf]
  %v37 = vld [vmem:[%s0 + $0x58] sm:$0xf]
  %v38 = vld [vmem:[%s0 + $0x5c] sm:$0xf]
  %v39 = vld [vmem:[%s0 + $0x60] sm:$0xf]
  %v40 = vld [vmem:[%s0 + $0x64] sm:$0xf]
  %v41 = vld [vmem:[%s0 + $0x68] sm:$0xf]
  %v42 = vld [vmem:[%s0 + $0x6c] sm:$0xf]
  %v43 = vld [vmem:[%s0 + $0x70] sm:$0xf]
  %v44 = vld [vmem:[%s0 + $0x74] sm:$0xf]
  %v45 = vld [vmem:[%s0 + $0x78] sm:$0xf]
  %v46 = vld [vmem:[%s0 + $0x7c] sm:$0xf]
  %v47 = vld [vmem:[%s0 + $0x80] sm:$0xf]
  %v48 = vld [vmem:[%s0 + $0x84] sm:$0xf]
  %v49 = vld [vmem:[%s0 + $0x88] sm:$0xf]
  %v50 = vld [vmem:[%s0 + $0x8c] sm:$0xf]
  %v51 = vld [vmem:[%s0 + $0x90] sm:$0xf]
  %v52 = vld [vmem:[%s0 + $0x94] sm:$0xf]
  %v53 = vld [vmem:[%s0 + $0x98] sm:$0xf]
  %v54 = vld [vmem:[%s0 + $0x9c] sm:$0xf]
  %v55 = vld [vmem:[%s0 + $0xa0] sm:$0xf]
  %v56 = vld [vmem:[%s0 + $0xa4] sm:$0xf]
  %v57 = vld [vmem:[%s0 + $0xa8] sm:$0xf]
  %v58 = vld [vmem:[%s0 + $0xac] sm:$0xf]
  %v59 = vld [vmem:[%s0 + $0xb0] sm:$0xf]
  %v60 = vld [vmem:[%s0 + $0xb4] sm:$0xf]
  %v61 = vld [vmem:[%s0 + $0xb8] sm:$0xf]
  %v62 = vld [vmem:[%s0 + $0xbc] sm:$0xf]
  %v63 = vld [vmem:[%s0 + $0xc0] sm:$0xf]
  %v64 = vld [vmem:[%s0 + $0xc4] sm:$0xf]
  %v65 = vld [vmem:[%s0 + $0xc8] sm:$0xf]
  %v66 = vld [vmem:[%s0 + $0xcc] sm:$0xf]
  %v67 = vld [vmem:[%s0 + $0xd0] sm:$0xf]
  %v68 = vld [vmem:[%s0 + $0xd4] sm:$0xf]
  %v69 = vld [vmem:[%s0 + $0xd8] sm:$0xf]
  %v70 = vld [vmem:[%s0 + $0xdc] sm:$0xf]
  %v71 = vld [vmem:[%s0 + $0xe0] sm:$0xf]
  %v72 = vld [vmem:[%s0 + $0xe4] sm:$0xf]
  %v73 = vld [vmem:[%s0 + $0xe8] sm:$0xf]
  %v74 = vld [vmem:[%s0 + $0xec] sm:$0xf]
  %v75 = vld [vmem:[%s0 + $0xf0] sm:$0xf]
  %v76 = vld [vmem:[%s0 + $0xf4] sm:$0xf]
  %v77 = vld [vmem:[%s0 + $0xf8] sm:$0xf]
  %v78 = vld [vmem:[%s0 + $0xfc] sm:$0xf]
  %v79 = vld [vmem:[%s1] sm:$0xf]
  %v80 = vld [vmem:[%s1 + $0x4] sm:$0xf]
  %v81 = vld [vmem:[%s1 + $0x8] sm:$0xf]
  %v82 = vld [vmem:[%s1 + $0xc] sm:$0xf]
  %v83 = vld [vmem:[%s1 + $0x10] sm:$0xf]
  %v84 = vld [vmem:[%s1 + $0x14] sm:$0xf]
  %v85 = vld [vmem:[%s1 + $0x18] sm:$0xf]
  %v86 = vld [vmem:[%s1 + $0x1c] sm:$0xf]
  %v87 = vld [vmem:[%s2] sm:$0x1]
  %v89 = vlaneseq
  %v90 = vshrl.u32 %v89, 7
  %v91 = vsub.s32 0, %v90
  %v92 = vrot.slane %v87, %v91
  %v158 = vunpack.c.l.b16 %v15
  %v159 = vunpack.c.l.b16 %v16
  %v160 = vunpack.c.l.b16 %v17
  %v161 = vunpack.c.l.b16 %v18
  %v162 = vunpack.c.l.b16 %v19
  %v163 = vunpack.c.l.b16 %v20
  %v164 = vunpack.c.l.b16 %v21
  %v165 = vunpack.c.l.b16 %v22
  %v166 = vunpack.c.l.b16 %v23
  %v167 = vunpack.c.l.b16 %v24
  %v168 = vunpack.c.l.b16 %v25
  %v169 = vunpack.c.l.b16 %v26
  %v170 = vunpack.c.l.b16 %v27
  %v171 = vunpack.c.l.b16 %v28
  %v172 = vunpack.c.l.b16 %v29
  %v173 = vunpack.c.l.b16 %v30
  %v174 = vunpack.c.l.b16 %v31
  %v175 = vunpack.c.l.b16 %v32
  %v176 = vunpack.c.l.b16 %v33
  %v177 = vunpack.c.l.b16 %v34
  %v178 = vunpack.c.l.b16 %v35
  %v179 = vunpack.c.l.b16 %v36
  %v180 = vunpack.c.l.b16 %v37
  %v181 = vunpack.c.l.b16 %v38
  %v182 = vunpack.c.l.b16 %v39
  %v183 = vunpack.c.l.b16 %v40
  %v184 = vunpack.c.l.b16 %v41
  %v185 = vunpack.c.l.b16 %v42
  %v186 = vunpack.c.l.b16 %v43
  %v187 = vunpack.c.l.b16 %v44
  %v188 = vunpack.c.l.b16 %v45
  %v189 = vunpack.c.l.b16 %v46
  %v190 = vunpack.c.l.b16 %v47
  %v191 = vunpack.c.l.b16 %v48
  %v192 = vunpack.c.l.b16 %v49
  %v193 = vunpack.c.l.b16 %v50
  %v194 = vunpack.c.l.b16 %v51
  %v195 = vunpack.c.l.b16 %v52
  %v196 = vunpack.c.l.b16 %v53
  %v197 = vunpack.c.l.b16 %v54
  %v198 = vunpack.c.l.b16 %v55
  %v199 = vunpack.c.l.b16 %v56
  %v200 = vunpack.c.l.b16 %v57
  %v201 = vunpack.c.l.b16 %v58
  %v202 = vunpack.c.l.b16 %v59
  %v203 = vunpack.c.l.b16 %v60
  %v204 = vunpack.c.l.b16 %v61
  %v205 = vunpack.c.l.b16 %v62
  %v206 = vunpack.c.l.b16 %v63
  %v207 = vunpack.c.l.b16 %v64
  %v208 = vunpack.c.l.b16 %v65
  %v209 = vunpack.c.l.b16 %v66
  %v210 = vunpack.c.l.b16 %v67
  %v211 = vunpack.c.l.b16 %v68
  %v212 = vunpack.c.l.b16 %v69
  %v213 = vunpack.c.l.b16 %v70
  %v214 = vunpack.c.l.b16 %v71
  %v215 = vunpack.c.l.b16 %v72
  %v216 = vunpack.c.l.b16 %v73
  %v217 = vunpack.c.l.b16 %v74
  %v218 = vunpack.c.l.b16 %v75
  %v219 = vunpack.c.l.b16 %v76
  %v220 = vunpack.c.l.b16 %v77
  %v221 = vunpack.c.l.b16 %v78
  %v222 = vpack.c.b16 %v159, %v158
  %v223 = vpack.c.b16 %v161, %v160
  %v224 = vpack.c.b16 %v163, %v162
  %v225 = vpack.c.b16 %v165, %v164
  %v226 = vpack.c.b16 %v167, %v166
  %v227 = vpack.c.b16 %v169, %v168
  %v228 = vpack.c.b16 %v171, %v170
  %v229 = vpack.c.b16 %v173, %v172
  %v230 = vpack.c.b16 %v175, %v174
  %v231 = vpack.c.b16 %v177, %v176
  %v232 = vpack.c.b16 %v179, %v178
  %v233 = vpack.c.b16 %v181, %v180
  %v234 = vpack.c.b16 %v183, %v182
  %v235 = vpack.c.b16 %v185, %v184
  %v236 = vpack.c.b16 %v187, %v186
  %v237 = vpack.c.b16 %v189, %v188
  %v238 = vpack.c.b16 %v191, %v190
  %v239 = vpack.c.b16 %v193, %v192
  %v240 = vpack.c.b16 %v195, %v194
  %v241 = vpack.c.b16 %v197, %v196
  %v242 = vpack.c.b16 %v199, %v198
  %v243 = vpack.c.b16 %v201, %v200
  %v244 = vpack.c.b16 %v203, %v202
  %v245 = vpack.c.b16 %v205, %v204
  %v246 = vpack.c.b16 %v207, %v206
  %v247 = vpack.c.b16 %v209, %v208
  %v248 = vpack.c.b16 %v211, %v210
  %v249 = vpack.c.b16 %v213, %v212
  %v250 = vpack.c.b16 %v215, %v214
  %v251 = vpack.c.b16 %v217, %v216
  %v252 = vpack.c.b16 %v219, %v218
  %v253 = vpack.c.b16 %v221, %v220
  %v262 = vunpack.c.l.b16 %v79
  %v263 = vunpack.c.l.b16 %v80
  %v264 = vunpack.c.l.b16 %v81
  %v265 = vunpack.c.l.b16 %v82
  %v266 = vunpack.c.l.b16 %v83
  %v267 = vunpack.c.l.b16 %v84
  %v268 = vunpack.c.l.b16 %v85
  %v269 = vunpack.c.l.b16 %v86
  %v270 = vpack.c.b16 %v263, %v262
  %v271 = vpack.c.b16 %v265, %v264
  %v272 = vpack.c.b16 %v267, %v266
  %v273 = vpack.c.b16 %v269, %v268
  %vm278 = vcmask 523264
  %v280 = vsel %vm278, %v222, 0
  %v283 = vsel %vm278, %v223, 0
  %v286 = vsel %vm278, %v224, 0
  %v289 = vsel %vm278, %v225, 0
  %v292 = vsel %vm278, %v226, 0
  %v295 = vsel %vm278, %v227, 0
  %v298 = vsel %vm278, %v228, 0
  %v301 = vsel %vm278, %v229, 0
  %v304 = vsel %vm278, %v230, 0
  %v307 = vsel %vm278, %v231, 0
  %v310 = vsel %vm278, %v232, 0
  %v313 = vsel %vm278, %v233, 0
  %v316 = vsel %vm278, %v234, 0
  %v319 = vsel %vm278, %v235, 0
  %v322 = vsel %vm278, %v236, 0
  %v325 = vsel %vm278, %v237, 0
  %v328 = vsel %vm278, %v238, 0
  %v331 = vsel %vm278, %v239, 0
  %v334 = vsel %vm278, %v240, 0
  %v337 = vsel %vm278, %v241, 0
  %v340 = vsel %vm278, %v242, 0
  %v343 = vsel %vm278, %v243, 0
  %v346 = vsel %vm278, %v244, 0
  %v349 = vsel %vm278, %v245, 0
  %v352 = vsel %vm278, %v246, 0
  %v355 = vsel %vm278, %v247, 0
  %v358 = vsel %vm278, %v248, 0
  %v361 = vsel %vm278, %v249, 0
  %v364 = vsel %vm278, %v250, 0
  %v367 = vsel %vm278, %v251, 0
  %v370 = vsel %vm278, %v252, 0
  %v373 = vsel %vm278, %v253, 0
  %375 = vmatprep.subr.bf16.mxu0 0
  %376 = vmatpush1.bf16.msra.mxu0 0
  %377 = vmatprep.subr.bf16.mxu0 0
  %378 = vmatpush1.bf16.msra.mxu0 0
  %379 = vmatprep.subr.bf16.mxu0 0
  %380 = vmatpush1.bf16.msra.mxu0 0
  %381 = vmatprep.subr.bf16.mxu0 0
  %382 = vmatpush1.bf16.msra.mxu0 0
  %383 = vmatprep.subr.bf16.mxu0 0
  %384 = vmatpush1.bf16.msra.mxu0 %v273
  %385 = vmatprep.subr.bf16.mxu0 0
  %386 = vmatpush1.bf16.msra.mxu0 %v272
  %387 = vmatprep.subr.bf16.mxu0 0
  %388 = vmatpush1.bf16.msra.mxu0 %v271
  %389 = vmatprep.subr.bf16.mxu0 0
  %390 = vmatpush1.bf16.msra.mxu0 %v270
  %391 = vmatprep.subr.bf16.mxu0 0
  %392 = vmatpush2.bf16.msra.mxu0 0
  %393 = vmatprep.subr.bf16.mxu0 0
  %394 = vmatpush2.bf16.msra.mxu0 0
  %395 = vmatprep.subr.bf16.mxu0 0
  %396 = vmatpush2.bf16.msra.mxu0 0
  %397 = vmatprep.subr.bf16.mxu0 0
  %398 = vmatpush2.bf16.msra.mxu0 0
  %399 = vmatprep.subr.bf16.mxu0 0
  %400 = vmatpush2.bf16.msra.mxu0 0
  %401 = vmatprep.subr.bf16.mxu0 0
  %402 = vmatpush2.bf16.msra.mxu0 0
  %403 = vmatprep.subr.bf16.mxu0 0
  %404 = vmatpush2.bf16.msra.mxu0 0
  %405 = vmatprep.subr.bf16.mxu0 0
  %406 = vmatpush2.bf16.msra.mxu0 0
  %407 = vmatprep.mubr.bf16.mxu0 0
  %408 = vmatmul.mubr.bf16.gmra.mxu0 %v280
  %v409 = vpop.f32.mrf.mxu0
  %v410 = vadd.f32 %v92, %v409
  %v411 = vpop.f32.mrf.mxu0
  %v412 = vpop.f32.mrf.mxu0
  %v413 = vadd.f32 %v92, %v412
  %v414 = vpop.f32.mrf.mxu0
  %415 = vmatprep.mubr.bf16.mxu0 0
  %416 = vmatmul.mubr.bf16.gmra.mxu0 %v283
  %v417 = vpop.f32.mrf.mxu0
  %v418 = vadd.f32 %v92, %v417
  %v419 = vpop.f32.mrf.mxu0
  %v420 = vpop.f32.mrf.mxu0
  %v421 = vadd.f32 %v92, %v420
  %v422 = vpop.f32.mrf.mxu0
  %423 = vmatprep.mubr.bf16.mxu0 0
  %424 = vmatmul.mubr.bf16.gmra.mxu0 %v286
  %v425 = vpop.f32.mrf.mxu0
  %v426 = vadd.f32 %v92, %v425
  %v427 = vpop.f32.mrf.mxu0
  %v428 = vpop.f32.mrf.mxu0
  %v429 = vadd.f32 %v92, %v428
  %v430 = vpop.f32.mrf.mxu0
  %431 = vmatprep.mubr.bf16.mxu0 0
  %432 = vmatmul.mubr.bf16.gmra.mxu0 %v289
  %v433 = vpop.f32.mrf.mxu0
  %v434 = vadd.f32 %v92, %v433
  %v435 = vpop.f32.mrf.mxu0
  %v436 = vpop.f32.mrf.mxu0
  %v437 = vadd.f32 %v92, %v436
  %v438 = vpop.f32.mrf.mxu0
  %439 = vmatprep.mubr.bf16.mxu0 0
  %440 = vmatmul.mubr.bf16.gmra.mxu0 %v292
  %v441 = vpop.f32.mrf.mxu0
  %v442 = vadd.f32 %v92, %v441
  %v443 = vpop.f32.mrf.mxu0
  %v444 = vpop.f32.mrf.mxu0
  %v445 = vadd.f32 %v92, %v444
  %v446 = vpop.f32.mrf.mxu0
  %447 = vmatprep.mubr.bf16.mxu0 0
  %448 = vmatmul.mubr.bf16.gmra.mxu0 %v295
  %v449 = vpop.f32.mrf.mxu0
  %v450 = vadd.f32 %v92, %v449
  %v451 = vpop.f32.mrf.mxu0
  %v452 = vpop.f32.mrf.mxu0
  %v453 = vadd.f32 %v92, %v452
  %v454 = vpop.f32.mrf.mxu0
  %455 = vmatprep.mubr.bf16.mxu0 0
  %456 = vmatmul.mubr.bf16.gmra.mxu0 %v298
  %v457 = vpop.f32.mrf.mxu0
  %v458 = vadd.f32 %v92, %v457
  %v459 = vpop.f32.mrf.mxu0
  %v460 = vpop.f32.mrf.mxu0
  %v461 = vadd.f32 %v92, %v460
  %v462 = vpop.f32.mrf.mxu0
  %463 = vmatprep.mubr.bf16.mxu0 0
  %464 = vmatmul.mubr.bf16.gmra.mxu0 %v301
  %v465 = vpop.f32.mrf.mxu0
  %v466 = vadd.f32 %v92, %v465
  %v467 = vpop.f32.mrf.mxu0
  %v468 = vpop.f32.mrf.mxu0
  %v469 = vadd.f32 %v92, %v468
  %v470 = vpop.f32.mrf.mxu0
  %471 = vmatprep.mubr.bf16.mxu0 0
  %472 = vmatmul.mubr.bf16.gmra.mxu0 %v304
  %v473 = vpop.f32.mrf.mxu0
  %v474 = vadd.f32 %v92, %v473
  %v475 = vpop.f32.mrf.mxu0
  %v476 = vpop.f32.mrf.mxu0
  %v477 = vadd.f32 %v92, %v476
  %v478 = vpop.f32.mrf.mxu0
  %479 = vmatprep.mubr.bf16.mxu0 0
  %480 = vmatmul.mubr.bf16.gmra.mxu0 %v307
  %v481 = vpop.f32.mrf.mxu0
  %v482 = vadd.f32 %v92, %v481
  %v483 = vpop.f32.mrf.mxu0
  %v484 = vpop.f32.mrf.mxu0
  %v485 = vadd.f32 %v92, %v484
  %v486 = vpop.f32.mrf.mxu0
  %487 = vmatprep.mubr.bf16.mxu0 0
  %488 = vmatmul.mubr.bf16.gmra.mxu0 %v310
  %v489 = vpop.f32.mrf.mxu0
  %v490 = vadd.f32 %v92, %v489
  %v491 = vpop.f32.mrf.mxu0
  %v492 = vpop.f32.mrf.mxu0
  %v493 = vadd.f32 %v92, %v492
  %v494 = vpop.f32.mrf.mxu0
  %495 = vmatprep.mubr.bf16.mxu0 0
  %496 = vmatmul.mubr.bf16.gmra.mxu0 %v313
  %v497 = vpop.f32.mrf.mxu0
  %v498 = vadd.f32 %v92, %v497
  %v499 = vpop.f32.mrf.mxu0
  %v500 = vpop.f32.mrf.mxu0
  %v501 = vadd.f32 %v92, %v500
  %v502 = vpop.f32.mrf.mxu0
  %503 = vmatprep.mubr.bf16.mxu0 0
  %504 = vmatmul.mubr.bf16.gmra.mxu0 %v316
  %v505 = vpop.f32.mrf.mxu0
  %v506 = vadd.f32 %v92, %v505
  %v507 = vpop.f32.mrf.mxu0
  %v508 = vpop.f32.mrf.mxu0
  %v509 = vadd.f32 %v92, %v508
  %v510 = vpop.f32.mrf.mxu0
  %511 = vmatprep.mubr.bf16.mxu0 0
  %512 = vmatmul.mubr.bf16.gmra.mxu0 %v319
  %v513 = vpop.f32.mrf.mxu0
  %v514 = vadd.f32 %v92, %v513
  %v515 = vpop.f32.mrf.mxu0
  %v516 = vpop.f32.mrf.mxu0
  %v517 = vadd.f32 %v92, %v516
  %v518 = vpop.f32.mrf.mxu0
  %519 = vmatprep.mubr.bf16.mxu0 0
  %520 = vmatmul.mubr.bf16.gmra.mxu0 %v322
  %v521 = vpop.f32.mrf.mxu0
  %v522 = vadd.f32 %v92, %v521
  %v523 = vpop.f32.mrf.mxu0
  %v524 = vpop.f32.mrf.mxu0
  %v525 = vadd.f32 %v92, %v524
  %v526 = vpop.f32.mrf.mxu0
  %527 = vmatprep.mubr.bf16.mxu0 0
  %528 = vmatmul.mubr.bf16.gmra.mxu0 %v325
  %v529 = vpop.f32.mrf.mxu0
  %v530 = vadd.f32 %v92, %v529
  %v531 = vpop.f32.mrf.mxu0
  %v532 = vpop.f32.mrf.mxu0
  %v533 = vadd.f32 %v92, %v532
  %v534 = vpop.f32.mrf.mxu0
  %535 = vmatprep.mubr.bf16.mxu0 0
  %536 = vmatmul.mubr.bf16.gmra.mxu0 %v328
  %v537 = vpop.f32.mrf.mxu0
  %v538 = vadd.f32 %v92, %v537
  %v539 = vpop.f32.mrf.mxu0
  %v540 = vpop.f32.mrf.mxu0
  %v541 = vadd.f32 %v92, %v540
  %v542 = vpop.f32.mrf.mxu0
  %543 = vmatprep.mubr.bf16.mxu0 0
  %544 = vmatmul.mubr.bf16.gmra.mxu0 %v331
  %v545 = vpop.f32.mrf.mxu0
  %v546 = vadd.f32 %v92, %v545
  %v547 = vpop.f32.mrf.mxu0
  %v548 = vpop.f32.mrf.mxu0
  %v549 = vadd.f32 %v92, %v548
  %v550 = vpop.f32.mrf.mxu0
  %551 = vmatprep.mubr.bf16.mxu0 0
  %552 = vmatmul.mubr.bf16.gmra.mxu0 %v334
  %v553 = vpop.f32.mrf.mxu0
  %v554 = vadd.f32 %v92, %v553
  %v555 = vpop.f32.mrf.mxu0
  %v556 = vpop.f32.mrf.mxu0
  %v557 = vadd.f32 %v92, %v556
  %v558 = vpop.f32.mrf.mxu0
  %559 = vmatprep.mubr.bf16.mxu0 0
  %560 = vmatmul.mubr.bf16.gmra.mxu0 %v337
  %v561 = vpop.f32.mrf.mxu0
  %v562 = vadd.f32 %v92, %v561
  %v563 = vpop.f32.mrf.mxu0
  %v564 = vpop.f32.mrf.mxu0
  %v565 = vadd.f32 %v92, %v564
  %v566 = vpop.f32.mrf.mxu0
  %567 = vmatprep.mubr.bf16.mxu0 0
  %568 = vmatmul.mubr.bf16.gmra.mxu0 %v340
  %v569 = vpop.f32.mrf.mxu0
  %v570 = vadd.f32 %v92, %v569
  %v571 = vpop.f32.mrf.mxu0
  %v572 = vpop.f32.mrf.mxu0
  %v573 = vadd.f32 %v92, %v572
  %v574 = vpop.f32.mrf.mxu0
  %575 = vmatprep.mubr.bf16.mxu0 0
  %576 = vmatmul.mubr.bf16.gmra.mxu0 %v343
  %v577 = vpop.f32.mrf.mxu0
  %v578 = vadd.f32 %v92, %v577
  %v579 = vpop.f32.mrf.mxu0
  %v580 = vpop.f32.mrf.mxu0
  %v581 = vadd.f32 %v92, %v580
  %v582 = vpop.f32.mrf.mxu0
  %583 = vmatprep.mubr.bf16.mxu0 0
  %584 = vmatmul.mubr.bf16.gmra.mxu0 %v346
  %v585 = vpop.f32.mrf.mxu0
  %v586 = vadd.f32 %v92, %v585
  %v587 = vpop.f32.mrf.mxu0
  %v588 = vpop.f32.mrf.mxu0
  %v589 = vadd.f32 %v92, %v588
  %v590 = vpop.f32.mrf.mxu0
  %591 = vmatprep.mubr.bf16.mxu0 0
  %592 = vmatmul.mubr.bf16.gmra.mxu0 %v349
  %v593 = vpop.f32.mrf.mxu0
  %v594 = vadd.f32 %v92, %v593
  %v595 = vpop.f32.mrf.mxu0
  %v596 = vpop.f32.mrf.mxu0
  %v597 = vadd.f32 %v92, %v596
  %v598 = vpop.f32.mrf.mxu0
  %599 = vmatprep.mubr.bf16.mxu0 0
  %600 = vmatmul.mubr.bf16.gmra.mxu0 %v352
  %v601 = vpop.f32.mrf.mxu0
  %v602 = vadd.f32 %v92, %v601
  %v603 = vpop.f32.mrf.mxu0
  %v604 = vpop.f32.mrf.mxu0
  %v605 = vadd.f32 %v92, %v604
  %v606 = vpop.f32.mrf.mxu0
  %607 = vmatprep.mubr.bf16.mxu0 0
  %608 = vmatmul.mubr.bf16.gmra.mxu0 %v355
  %v609 = vpop.f32.mrf.mxu0
  %v610 = vadd.f32 %v92, %v609
  %v611 = vpop.f32.mrf.mxu0
  %v612 = vpop.f32.mrf.mxu0
  %v613 = vadd.f32 %v92, %v612
  %v614 = vpop.f32.mrf.mxu0
  %615 = vmatprep.mubr.bf16.mxu0 0
  %616 = vmatmul.mubr.bf16.gmra.mxu0 %v358
  %v617 = vpop.f32.mrf.mxu0
  %v618 = vadd.f32 %v92, %v617
  %v619 = vpop.f32.mrf.mxu0
  %v620 = vpop.f32.mrf.mxu0
  %v621 = vadd.f32 %v92, %v620
  %v622 = vpop.f32.mrf.mxu0
  %623 = vmatprep.mubr.bf16.mxu0 0
  %624 = vmatmul.mubr.bf16.gmra.mxu0 %v361
  %v625 = vpop.f32.mrf.mxu0
  %v626 = vadd.f32 %v92, %v625
  %v627 = vpop.f32.mrf.mxu0
  %v628 = vpop.f32.mrf.mxu0
  %v629 = vadd.f32 %v92, %v628
  %v630 = vpop.f32.mrf.mxu0
  %631 = vmatprep.mubr.bf16.mxu0 0
  %632 = vmatmul.mubr.bf16.gmra.mxu0 %v364
  %v633 = vpop.f32.mrf.mxu0
  %v634 = vadd.f32 %v92, %v633
  %v635 = vpop.f32.mrf.mxu0
  %v636 = vpop.f32.mrf.mxu0
  %v637 = vadd.f32 %v92, %v636
  %v638 = vpop.f32.mrf.mxu0
  %639 = vmatprep.mubr.bf16.mxu0 0
  %640 = vmatmul.mubr.bf16.gmra.mxu0 %v367
  %v641 = vpop.f32.mrf.mxu0
  %v642 = vadd.f32 %v92, %v641
  %v643 = vpop.f32.mrf.mxu0
  %v644 = vpop.f32.mrf.mxu0
  %v645 = vadd.f32 %v92, %v644
  %v646 = vpop.f32.mrf.mxu0
  %647 = vmatprep.mubr.bf16.mxu0 0
  %648 = vmatmul.mubr.bf16.gmra.mxu0 %v370
  %v649 = vpop.f32.mrf.mxu0
  %v650 = vadd.f32 %v92, %v649
  %v651 = vpop.f32.mrf.mxu0
  %v652 = vpop.f32.mrf.mxu0
  %v653 = vadd.f32 %v92, %v652
  %v654 = vpop.f32.mrf.mxu0
  %655 = vmatprep.mubr.bf16.mxu0 0
  %656 = vmatmul.mubr.bf16.gmra.mxu0 %v373
  %v657 = vpop.f32.mrf.mxu0
  %v658 = vadd.f32 %v92, %v657
  %v659 = vpop.f32.mrf.mxu0
  %v660 = vpop.f32.mrf.mxu0
  %v661 = vadd.f32 %v92, %v660
  %v662 = vpop.f32.mrf.mxu0
  %663 = vdwg.mxu0
  %v664 = vmax.f32 %v410, 0.0
  %v665 = vmax.f32 %v413, 0.0
  %v666 = vmax.f32 %v418, 0.0
  %v667 = vmax.f32 %v421, 0.0
  %v668 = vmax.f32 %v426, 0.0
  %v669 = vmax.f32 %v429, 0.0
  %v670 = vmax.f32 %v434, 0.0
  %v671 = vmax.f32 %v437, 0.0
  %v672 = vmax.f32 %v442, 0.0
  %v673 = vmax.f32 %v445, 0.0
  %v674 = vmax.f32 %v450, 0.0
  %v675 = vmax.f32 %v453, 0.0
  %v676 = vmax.f32 %v458, 0.0
  %v677 = vmax.f32 %v461, 0.0
  %v678 = vmax.f32 %v466, 0.0
  %v679 = vmax.f32 %v469, 0.0
  %v680 = vmax.f32 %v474, 0.0
  %v681 = vmax.f32 %v477, 0.0
  %v682 = vmax.f32 %v482, 0.0
  %v683 = vmax.f32 %v485, 0.0
  %v684 = vmax.f32 %v490, 0.0
  %v685 = vmax.f32 %v493, 0.0
  %v686 = vmax.f32 %v498, 0.0
  %v687 = vmax.f32 %v501, 0.0
  %v688 = vmax.f32 %v506, 0.0
  %v689 = vmax.f32 %v509, 0.0
  %v690 = vmax.f32 %v514, 0.0
  %v691 = vmax.f32 %v517, 0.0
  %v692 = vmax.f32 %v522, 0.0
  %v693 = vmax.f32 %v525, 0.0
  %v694 = vmax.f32 %v530, 0.0
  %v695 = vmax.f32 %v533, 0.0
  %v696 = vmax.f32 %v538, 0.0
  %v697 = vmax.f32 %v541, 0.0
  %v698 = vmax.f32 %v546, 0.0
  %v699 = vmax.f32 %v549, 0.0
  %v700 = vmax.f32 %v554, 0.0
  %v701 = vmax.f32 %v557, 0.0
  %v702 = vmax.f32 %v562, 0.0
  %v703 = vmax.f32 %v565, 0.0
  %v704 = vmax.f32 %v570, 0.0
  %v705 = vmax.f32 %v573, 0.0
  %v706 = vmax.f32 %v578, 0.0
  %v707 = vmax.f32 %v581, 0.0
  %v708 = vmax.f32 %v586, 0.0
  %v709 = vmax.f32 %v589, 0.0
  %v710 = vmax.f32 %v594, 0.0
  %v711 = vmax.f32 %v597, 0.0
  %v712 = vmax.f32 %v602, 0.0
  %v713 = vmax.f32 %v605, 0.0
  %v714 = vmax.f32 %v610, 0.0
  %v715 = vmax.f32 %v613, 0.0
  %v716 = vmax.f32 %v618, 0.0
  %v717 = vmax.f32 %v621, 0.0
  %v718 = vmax.f32 %v626, 0.0
  %v719 = vmax.f32 %v629, 0.0
  %v720 = vmax.f32 %v634, 0.0
  %v721 = vmax.f32 %v637, 0.0
  %v722 = vmax.f32 %v642, 0.0
  %v723 = vmax.f32 %v645, 0.0
  %v724 = vmax.f32 %v650, 0.0
  %v725 = vmax.f32 %v653, 0.0
  %v726 = vmax.f32 %v658, 0.0
  %v727 = vmax.f32 %v661, 0.0
  %v728 = vpack.c.bf16 %v665, %v664
  %v729 = vpack.c.bf16 %v667, %v666
  %v730 = vpack.c.bf16 %v669, %v668
  %v731 = vpack.c.bf16 %v671, %v670
  %v732 = vpack.c.bf16 %v673, %v672
  %v733 = vpack.c.bf16 %v675, %v674
  %v734 = vpack.c.bf16 %v677, %v676
  %v735 = vpack.c.bf16 %v679, %v678
  %v736 = vpack.c.bf16 %v681, %v680
  %v737 = vpack.c.bf16 %v683, %v682
  %v738 = vpack.c.bf16 %v685, %v684
  %v739 = vpack.c.bf16 %v687, %v686
  %v740 = vpack.c.bf16 %v689, %v688
  %v741 = vpack.c.bf16 %v691, %v690
  %v742 = vpack.c.bf16 %v693, %v692
  %v743 = vpack.c.bf16 %v695, %v694
  %v744 = vpack.c.bf16 %v697, %v696
  %v745 = vpack.c.bf16 %v699, %v698
  %v746 = vpack.c.bf16 %v701, %v700
  %v747 = vpack.c.bf16 %v703, %v702
  %v748 = vpack.c.bf16 %v705, %v704
  %v749 = vpack.c.bf16 %v707, %v706
  %v750 = vpack.c.bf16 %v709, %v708
  %v751 = vpack.c.bf16 %v711, %v710
  %v752 = vpack.c.bf16 %v713, %v712
  %v753 = vpack.c.bf16 %v715, %v714
  %v754 = vpack.c.bf16 %v717, %v716
  %v755 = vpack.c.bf16 %v719, %v718
  %v756 = vpack.c.bf16 %v721, %v720
  %v757 = vpack.c.bf16 %v723, %v722
  %v758 = vpack.c.bf16 %v725, %v724
  %v759 = vpack.c.bf16 %v727, %v726
  %v792 = vunpack.c.l.b16 %v728
  %v793 = vunpack.c.h.b16 %v728
  %v794 = vunpack.c.l.b16 %v729
  %v795 = vunpack.c.h.b16 %v729
  %v796 = vunpack.c.l.b16 %v730
  %v797 = vunpack.c.h.b16 %v730
  %v798 = vunpack.c.l.b16 %v731
  %v799 = vunpack.c.h.b16 %v731
  %v800 = vunpack.c.l.b16 %v732
  %v801 = vunpack.c.h.b16 %v732
  %v802 = vunpack.c.l.b16 %v733
  %v803 = vunpack.c.h.b16 %v733
  %v804 = vunpack.c.l.b16 %v734
  %v805 = vunpack.c.h.b16 %v734
  %v806 = vunpack.c.l.b16 %v735
  %v807 = vunpack.c.h.b16 %v735
  %v808 = vunpack.c.l.b16 %v736
  %v809 = vunpack.c.h.b16 %v736
  %v810 = vunpack.c.l.b16 %v737
  %v811 = vunpack.c.h.b16 %v737
  %v812 = vunpack.c.l.b16 %v738
  %v813 = vunpack.c.h.b16 %v738
  %v814 = vunpack.c.l.b16 %v739
  %v815 = vunpack.c.h.b16 %v739
  %v816 = vunpack.c.l.b16 %v740
  %v817 = vunpack.c.h.b16 %v740
  %v818 = vunpack.c.l.b16 %v741
  %v819 = vunpack.c.h.b16 %v741
  %v820 = vunpack.c.l.b16 %v742
  %v821 = vunpack.c.h.b16 %v742
  %v822 = vunpack.c.l.b16 %v743
  %v823 = vunpack.c.h.b16 %v743
  %v824 = vunpack.c.l.b16 %v744
  %v825 = vunpack.c.h.b16 %v744
  %v826 = vunpack.c.l.b16 %v745
  %v827 = vunpack.c.h.b16 %v745
  %v828 = vunpack.c.l.b16 %v746
  %v829 = vunpack.c.h.b16 %v746
  %v830 = vunpack.c.l.b16 %v747
  %v831 = vunpack.c.h.b16 %v747
  %v832 = vunpack.c.l.b16 %v748
  %v833 = vunpack.c.h.b16 %v748
  %v834 = vunpack.c.l.b16 %v749
  %v835 = vunpack.c.h.b16 %v749
  %v836 = vunpack.c.l.b16 %v750
  %v837 = vunpack.c.h.b16 %v750
  %v838 = vunpack.c.l.b16 %v751
  %v839 = vunpack.c.h.b16 %v751
  %v840 = vunpack.c.l.b16 %v752
  %v841 = vunpack.c.h.b16 %v752
  %v842 = vunpack.c.l.b16 %v753
  %v843 = vunpack.c.h.b16 %v753
  %v844 = vunpack.c.l.b16 %v754
  %v845 = vunpack.c.h.b16 %v754
  %v846 = vunpack.c.l.b16 %v755
  %v847 = vunpack.c.h.b16 %v755
  %v848 = vunpack.c.l.b16 %v756
  %v849 = vunpack.c.h.b16 %v756
  %v850 = vunpack.c.l.b16 %v757
  %v851 = vunpack.c.h.b16 %v757
  %v852 = vunpack.c.l.b16 %v758
  %v853 = vunpack.c.h.b16 %v758
  %v854 = vunpack.c.l.b16 %v759
  %v855 = vunpack.c.h.b16 %v759
  %v856 = vpack.c.b16 %v792, %v792
  %v857 = vpack.c.b16 %v793, %v793
  %v858 = vpack.c.b16 %v794, %v794
  %v859 = vpack.c.b16 %v795, %v795
  %v860 = vpack.c.b16 %v796, %v796
  %v861 = vpack.c.b16 %v797, %v797
  %v862 = vpack.c.b16 %v798, %v798
  %v863 = vpack.c.b16 %v799, %v799
  %v864 = vpack.c.b16 %v800, %v800
  %v865 = vpack.c.b16 %v801, %v801
  %v866 = vpack.c.b16 %v802, %v802
  %v867 = vpack.c.b16 %v803, %v803
  %v868 = vpack.c.b16 %v804, %v804
  %v869 = vpack.c.b16 %v805, %v805
  %v870 = vpack.c.b16 %v806, %v806
  %v871 = vpack.c.b16 %v807, %v807
  %v872 = vpack.c.b16 %v808, %v808
  %v873 = vpack.c.b16 %v809, %v809
  %v874 = vpack.c.b16 %v810, %v810
  %v875 = vpack.c.b16 %v811, %v811
  %v876 = vpack.c.b16 %v812, %v812
  %v877 = vpack.c.b16 %v813, %v813
  %v878 = vpack.c.b16 %v814, %v814
  %v879 = vpack.c.b16 %v815, %v815
  %v880 = vpack.c.b16 %v816, %v816
  %v881 = vpack.c.b16 %v817, %v817
  %v882 = vpack.c.b16 %v818, %v818
  %v883 = vpack.c.b16 %v819, %v819
  %v884 = vpack.c.b16 %v820, %v820
  %v885 = vpack.c.b16 %v821, %v821
  %v886 = vpack.c.b16 %v822, %v822
  %v887 = vpack.c.b16 %v823, %v823
  %v888 = vpack.c.b16 %v824, %v824
  %v889 = vpack.c.b16 %v825, %v825
  %v890 = vpack.c.b16 %v826, %v826
  %v891 = vpack.c.b16 %v827, %v827
  %v892 = vpack.c.b16 %v828, %v828
  %v893 = vpack.c.b16 %v829, %v829
  %v894 = vpack.c.b16 %v830, %v830
  %v895 = vpack.c.b16 %v831, %v831
  %v896 = vpack.c.b16 %v832, %v832
  %v897 = vpack.c.b16 %v833, %v833
  %v898 = vpack.c.b16 %v834, %v834
  %v899 = vpack.c.b16 %v835, %v835
  %v900 = vpack.c.b16 %v836, %v836
  %v901 = vpack.c.b16 %v837, %v837
  %v902 = vpack.c.b16 %v838, %v838
  %v903 = vpack.c.b16 %v839, %v839
  %v904 = vpack.c.b16 %v840, %v840
  %v905 = vpack.c.b16 %v841, %v841
  %v906 = vpack.c.b16 %v842, %v842
  %v907 = vpack.c.b16 %v843, %v843
  %v908 = vpack.c.b16 %v844, %v844
  %v909 = vpack.c.b16 %v845, %v845
  %v910 = vpack.c.b16 %v846, %v846
  %v911 = vpack.c.b16 %v847, %v847
  %v912 = vpack.c.b16 %v848, %v848
  %v913 = vpack.c.b16 %v849, %v849
  %v914 = vpack.c.b16 %v850, %v850
  %v915 = vpack.c.b16 %v851, %v851
  %v916 = vpack.c.b16 %v852, %v852
  %v917 = vpack.c.b16 %v853, %v853
  %v918 = vpack.c.b16 %v854, %v854
  %v919 = vpack.c.b16 %v855, %v855
  %vm984 = vcmask 257024
  %985 = vst.msk [vmem:[%s3] sm:$0xf] %vm984, %v856
  %986 = vst.msk [vmem:[%s3 + $0x4] sm:$0xf] %vm984, %v857
  %987 = vst.msk [vmem:[%s3 + $0x8] sm:$0xf] %vm984, %v858
  %988 = vst.msk [vmem:[%s3 + $0xc] sm:$0xf] %vm984, %v859
  %989 = vst.msk [vmem:[%s3 + $0x10] sm:$0xf] %vm984, %v860
  %990 = vst.msk [vmem:[%s3 + $0x14] sm:$0xf] %vm984, %v861
  %991 = vst.msk [vmem:[%s3 + $0x18] sm:$0xf] %vm984, %v862
  %992 = vst.msk [vmem:[%s3 + $0x1c] sm:$0xf] %vm984, %v863
  %993 = vst.msk [vmem:[%s3 + $0x20] sm:$0xf] %vm984, %v864
  %994 = vst.msk [vmem:[%s3 + $0x24] sm:$0xf] %vm984, %v865
  %995 = vst.msk [vmem:[%s3 + $0x28] sm:$0xf] %vm984, %v866
  %996 = vst.msk [vmem:[%s3 + $0x2c] sm:$0xf] %vm984, %v867
  %997 = vst.msk [vmem:[%s3 + $0x30] sm:$0xf] %vm984, %v868
  %998 = vst.msk [vmem:[%s3 + $0x34] sm:$0xf] %vm984, %v869
  %999 = vst.msk [vmem:[%s3 + $0x38] sm:$0xf] %vm984, %v870
  %1000 = vst.msk [vmem:[%s3 + $0x3c] sm:$0xf] %vm984, %v871
  %1001 = vst.msk [vmem:[%s3 + $0x40] sm:$0xf] %vm984, %v872
  %1002 = vst.msk [vmem:[%s3 + $0x44] sm:$0xf] %vm984, %v873
  %1003 = vst.msk [vmem:[%s3 + $0x48] sm:$0xf] %vm984, %v874
  %1004 = vst.msk [vmem:[%s3 + $0x4c] sm:$0xf] %vm984, %v875
  %1005 = vst.msk [vmem:[%s3 + $0x50] sm:$0xf] %vm984, %v876
  %1006 = vst.msk [vmem:[%s3 + $0x54] sm:$0xf] %vm984, %v877
  %1007 = vst.msk [vmem:[%s3 + $0x58] sm:$0xf] %vm984, %v878
  %1008 = vst.msk [vmem:[%s3 + $0x5c] sm:$0xf] %vm984, %v879
  %1009 = vst.msk [vmem:[%s3 + $0x60] sm:$0xf] %vm984, %v880
  %1010 = vst.msk [vmem:[%s3 + $0x64] sm:$0xf] %vm984, %v881
  %1011 = vst.msk [vmem:[%s3 + $0x68] sm:$0xf] %vm984, %v882
  %1012 = vst.msk [vmem:[%s3 + $0x6c] sm:$0xf] %vm984, %v883
  %1013 = vst.msk [vmem:[%s3 + $0x70] sm:$0xf] %vm984, %v884
  %1014 = vst.msk [vmem:[%s3 + $0x74] sm:$0xf] %vm984, %v885
  %1015 = vst.msk [vmem:[%s3 + $0x78] sm:$0xf] %vm984, %v886
  %1016 = vst.msk [vmem:[%s3 + $0x7c] sm:$0xf] %vm984, %v887
  %1017 = vst.msk [vmem:[%s3 + $0x80] sm:$0xf] %vm984, %v888
  %1018 = vst.msk [vmem:[%s3 + $0x84] sm:$0xf] %vm984, %v889
  %1019 = vst.msk [vmem:[%s3 + $0x88] sm:$0xf] %vm984, %v890
  %1020 = vst.msk [vmem:[%s3 + $0x8c] sm:$0xf] %vm984, %v891
  %1021 = vst.msk [vmem:[%s3 + $0x90] sm:$0xf] %vm984, %v892
  %1022 = vst.msk [vmem:[%s3 + $0x94] sm:$0xf] %vm984, %v893
  %1023 = vst.msk [vmem:[%s3 + $0x98] sm:$0xf] %vm984, %v894
  %1024 = vst.msk [vmem:[%s3 + $0x9c] sm:$0xf] %vm984, %v895
  %1025 = vst.msk [vmem:[%s3 + $0xa0] sm:$0xf] %vm984, %v896
  %1026 = vst.msk [vmem:[%s3 + $0xa4] sm:$0xf] %vm984, %v897
  %1027 = vst.msk [vmem:[%s3 + $0xa8] sm:$0xf] %vm984, %v898
  %1028 = vst.msk [vmem:[%s3 + $0xac] sm:$0xf] %vm984, %v899
  %1029 = vst.msk [vmem:[%s3 + $0xb0] sm:$0xf] %vm984, %v900
  %1030 = vst.msk [vmem:[%s3 + $0xb4] sm:$0xf] %vm984, %v901
  %1031 = vst.msk [vmem:[%s3 + $0xb8] sm:$0xf] %vm984, %v902
  %1032 = vst.msk [vmem:[%s3 + $0xbc] sm:$0xf] %vm984, %v903
  %1033 = vst.msk [vmem:[%s3 + $0xc0] sm:$0xf] %vm984, %v904
  %1034 = vst.msk [vmem:[%s3 + $0xc4] sm:$0xf] %vm984, %v905
  %1035 = vst.msk [vmem:[%s3 + $0xc8] sm:$0xf] %vm984, %v906
  %1036 = vst.msk [vmem:[%s3 + $0xcc] sm:$0xf] %vm984, %v907
  %1037 = vst.msk [vmem:[%s3 + $0xd0] sm:$0xf] %vm984, %v908
  %1038 = vst.msk [vmem:[%s3 + $0xd4] sm:$0xf] %vm984, %v909
  %1039 = vst.msk [vmem:[%s3 + $0xd8] sm:$0xf] %vm984, %v910
  %1040 = vst.msk [vmem:[%s3 + $0xdc] sm:$0xf] %vm984, %v911
  %1041 = vst.msk [vmem:[%s3 + $0xe0] sm:$0xf] %vm984, %v912
  %1042 = vst.msk [vmem:[%s3 + $0xe4] sm:$0xf] %vm984, %v913
  %1043 = vst.msk [vmem:[%s3 + $0xe8] sm:$0xf] %vm984, %v914
  %1044 = vst.msk [vmem:[%s3 + $0xec] sm:$0xf] %vm984, %v915
  %1045 = vst.msk [vmem:[%s3 + $0xf0] sm:$0xf] %vm984, %v916
  %1046 = vst.msk [vmem:[%s3 + $0xf4] sm:$0xf] %vm984, %v917
  %1047 = vst.msk [vmem:[%s3 + $0xf8] sm:$0xf] %vm984, %v918
  %1048 = vst.msk [vmem:[%s3 + $0xfc] sm:$0xf] %vm984, %v919
  // Predicated region
  $region14: #{bottleneck_forward.3} parent=0 // pred_check
    _
  $region15: #{bottleneck_forward.3} parent=0 // pred_check_branch
    %1050 = sbr.rel (0) target = $region17
  $region16: #{bottleneck_forward.3} parent=0 // pred_region
    _
  $region17: #{bottleneck_forward.3} parent=0 // pred_fallthru
    _
  // Predicated region
  $region18: #{bottleneck_forward.3} parent=0 // pred_check
    _
  $region19: #{bottleneck_forward.3} parent=0 // pred_check_branch
    %1052 = sbr.rel (0) target = $region21
  $region20: #{bottleneck_forward.3} parent=0 // pred_region
    _
  $region21: #{bottleneck_forward.3} parent=0 // pred_fallthru
    _

// kernel: bottleneck_forward.5
$region0: #{bottleneck_forward.5}
  #allocation0 [shape = 'u32[]', space=smem, size = 0x4, offset = 0x4, fixed_abs, tag = 'smem constant byte address 0x4 - core index']
  #allocation1 [shape = 'u32[144,128]{1,0:T(1,128)}', space=vmem, size = 0x12000, scoped, tag = 'internal scratch']
  %s0 = inlined_call_operand.vmem [shape: bf16[128,32], index: 0, kind: input, shape index: {}]
  %s1 = inlined_call_operand.vmem [shape: bf16[32,128], index: 1, kind: input, shape index: {}]
  %s2 = inlined_call_operand.vmem [shape: bf16[128,64], index: 2, kind: input, shape index: {}]
  %s3 = inlined_call_operand.vmem [shape: bf16[64,128], index: 3, kind: input, shape index: {}]
  %s4 = inlined_call_operand.vmem [shape: f32[1,128], index: 4, kind: input, shape index: {}]
  %s5 = inlined_call_operand.hbm [shape: bf16[128,128], index: 5, kind: output, shape index: {}]
  %s6 = sld [smem:[#allocation0]]
  $region30: #{bottleneck_forward.5} parent=0
    _
  %s8 = ssub.s32 1, %s6
  %s9 = scalar_select 0, %s8, %s6
  $region1: #{bottleneck_forward.5} parent=0
    #allocation2 [shape = 'u8[32768]{0}', space=vmem, size = 0x8000, scoped, tag = 'output window, operand 0, single buffered']
    #allocation3 [shape = 's32[1]{0}', space=sflag, size = 0x4, scoped, tag = 'scoped memory for bottleneck_forward.5']
    %10 = vsyncpa [#allocation3], 0
    // Predicated region
    $region2: #{bottleneck_forward.5} parent=1 // pred_check
      _
    $region3: #{bottleneck_forward.5} parent=1 // pred_check_branch
      %12 = sbr.rel (0) target = $region5
    $region4: #{bottleneck_forward.5} parent=1 // pred_region
      _
    $region5: #{bottleneck_forward.5} parent=1 // pred_fallthru
      _
    // Predicated region
    $region6: #{bottleneck_forward.5} parent=1 // pred_check
      _
    $region7: #{bottleneck_forward.5} parent=1 // pred_check_branch
      %14 = sbr.rel (0) target = $region9
    $region8: #{bottleneck_forward.5} parent=1 // pred_region
      _
    $region9: #{bottleneck_forward.5} parent=1 // pred_fallthru
      _
    // Predicated region
    $region10: #{bottleneck_forward.5} parent=1 // pred_check
      _
    $region11: #{bottleneck_forward.5} parent=1 // pred_check_branch
      %16 = sbr.rel (0) target = $region13
    $region12: #{bottleneck_forward.5} parent=1 // pred_region
      _
    $region13: #{bottleneck_forward.5} parent=1 // pred_fallthru
      _
    // Predicated region
    $region14: #{bottleneck_forward.5} parent=1 // pred_check
      _
    $region15: #{bottleneck_forward.5} parent=1 // pred_check_branch
      %18 = sbr.rel (0) target = $region17
    $region16: #{bottleneck_forward.5} parent=1 // pred_region
      _
    $region17: #{bottleneck_forward.5} parent=1 // pred_fallthru
      _
    // Predicated region
    $region18: #{bottleneck_forward.5} parent=1 // pred_check
      _
    $region19: #{bottleneck_forward.5} parent=1 // pred_check_branch
      %20 = sbr.rel (0) target = $region21
    $region20: #{bottleneck_forward.5} parent=1 // pred_region
      _
    $region21: #{bottleneck_forward.5} parent=1 // pred_fallthru
      _
    %v22 = vld [vmem:[%s0] sm:$0xf]
    %v23 = vld [vmem:[%s0 + $0x4] sm:$0xf]
    %v24 = vld [vmem:[%s0 + $0x8] sm:$0xf]
    %v25 = vld [vmem:[%s0 + $0xc] sm:$0xf]
    %v26 = vld [vmem:[%s0 + $0x10] sm:$0xf]
    %v27 = vld [vmem:[%s0 + $0x14] sm:$0xf]
    %v28 = vld [vmem:[%s0 + $0x18] sm:$0xf]
    %v29 = vld [vmem:[%s0 + $0x1c] sm:$0xf]
    %v30 = vld [vmem:[%s0 + $0x20] sm:$0xf]
    %v31 = vld [vmem:[%s0 + $0x24] sm:$0xf]
    %v32 = vld [vmem:[%s0 + $0x28] sm:$0xf]
    %v33 = vld [vmem:[%s0 + $0x2c] sm:$0xf]
    %v34 = vld [vmem:[%s0 + $0x30] sm:$0xf]
    %v35 = vld [vmem:[%s0 + $0x34] sm:$0xf]
    %v36 = vld [vmem:[%s0 + $0x38] sm:$0xf]
    %v37 = vld [vmem:[%s0 + $0x3c] sm:$0xf]
    %v38 = vld [vmem:[%s1] sm:$0xf]
    %v39 = vld [vmem:[%s1 + $0x4] sm:$0xf]
    %v40 = vld [vmem:[%s1 + $0x8] sm:$0xf]
    %v41 = vld [vmem:[%s1 + $0xc] sm:$0xf]
    %v42 = vld [vmem:[%s2] sm:$0xf]
    %v43 = vld [vmem:[%s2 + $0x4] sm:$0xf]
    %v44 = vld [vmem:[%s2 + $0x8] sm:$0xf]
    %v45 = vld [vmem:[%s2 + $0xc] sm:$0xf]
    %v46 = vld [vmem:[%s2 + $0x10] sm:$0xf]
    %v47 = vld [vmem:[%s2 + $0x14] sm:$0xf]
    %v48 = vld [vmem:[%s2 + $0x18] sm:$0xf]
    %v49 = vld [vmem:[%s2 + $0x1c] sm:$0xf]
    %v50 = vld [vmem:[%s2 + $0x20] sm:$0xf]
    %v51 = vld [vmem:[%s2 + $0x24] sm:$0xf]
    %v52 = vld [vmem:[%s2 + $0x28] sm:$0xf]
    %v53 = vld [vmem:[%s2 + $0x2c] sm:$0xf]
    %v54 = vld [vmem:[%s2 + $0x30] sm:$0xf]
    %v55 = vld [vmem:[%s2 + $0x34] sm:$0xf]
    %v56 = vld [vmem:[%s2 + $0x38] sm:$0xf]
    %v57 = vld [vmem:[%s2 + $0x3c] sm:$0xf]
    %v58 = vld [vmem:[%s3] sm:$0xf]
    %v59 = vld [vmem:[%s3 + $0x4] sm:$0xf]
    %v60 = vld [vmem:[%s3 + $0x8] sm:$0xf]
    %v61 = vld [vmem:[%s3 + $0xc] sm:$0xf]
    %v62 = vld [vmem:[%s3 + $0x10] sm:$0xf]
    %v63 = vld [vmem:[%s3 + $0x14] sm:$0xf]
    %v64 = vld [vmem:[%s3 + $0x18] sm:$0xf]
    %v65 = vld [vmem:[%s3 + $0x1c] sm:$0xf]
    %v82 = vunpack.c.l.b16 %v42
    %v83 = vunpack.c.l.b16 %v43
    %v84 = vunpack.c.l.b16 %v44
    %v85 = vunpack.c.l.b16 %v45
    %v86 = vunpack.c.l.b16 %v46
    %v87 = vunpack.c.l.b16 %v47
    %v88 = vunpack.c.l.b16 %v48
    %v89 = vunpack.c.l.b16 %v49
    %v90 = vunpack.c.l.b16 %v50
    %v91 = vunpack.c.l.b16 %v51
    %v92 = vunpack.c.l.b16 %v52
    %v93 = vunpack.c.l.b16 %v53
    %v94 = vunpack.c.l.b16 %v54
    %v95 = vunpack.c.l.b16 %v55
    %v96 = vunpack.c.l.b16 %v56
    %v97 = vunpack.c.l.b16 %v57
    %v98 = vpack.c.b16 %v83, %v82
    %v99 = vpack.c.b16 %v85, %v84
    %v100 = vpack.c.b16 %v87, %v86
    %v101 = vpack.c.b16 %v89, %v88
    %v102 = vpack.c.b16 %v91, %v90
    %v103 = vpack.c.b16 %v93, %v92
    %v104 = vpack.c.b16 %v95, %v94
    %v105 = vpack.c.b16 %v97, %v96
    %v114 = vunpack.c.l.b16 %v58
    %v115 = vunpack.c.l.b16 %v59
    %v116 = vunpack.c.l.b16 %v60
    %v117 = vunpack.c.l.b16 %v61
    %v118 = vunpack.c.l.b16 %v62
    %v119 = vunpack.c.l.b16 %v63
    %v120 = vunpack.c.l.b16 %v64
    %v121 = vunpack.c.l.b16 %v65
    %v122 = vpack.c.b16 %v115, %v114
    %v123 = vpack.c.b16 %v117, %v116
    %v124 = vpack.c.b16 %v119, %v118
    %v125 = vpack.c.b16 %v121, %v120
    %vm130 = vcmask 523264
    %v132 = vsel %vm130, %v98, 0
    %v135 = vsel %vm130, %v99, 0
    %v138 = vsel %vm130, %v100, 0
    %v141 = vsel %vm130, %v101, 0
    %v144 = vsel %vm130, %v102, 0
    %v147 = vsel %vm130, %v103, 0
    %v150 = vsel %vm130, %v104, 0
    %v153 = vsel %vm130, %v105, 0
    %155 = vmatprep.subr.bf16.mxu0 0
    %156 = vmatpush1.bf16.msra.mxu0 0
    %157 = vmatprep.subr.bf16.mxu0 0
    %158 = vmatpush1.bf16.msra.mxu0 0
    %159 = vmatprep.subr.bf16.mxu0 0
    %160 = vmatpush1.bf16.msra.mxu0 0
    %161 = vmatprep.subr.bf16.mxu0 0
    %162 = vmatpush1.bf16.msra.mxu0 0
    %163 = vmatprep.subr.bf16.mxu0 0
    %164 = vmatpush1.bf16.msra.mxu0 %v125
    %165 = vmatprep.subr.bf16.mxu0 0
    %166 = vmatpush1.bf16.msra.mxu0 %v124
    %167 = vmatprep.subr.bf16.mxu0 0
    %168 = vmatpush1.bf16.msra.mxu0 %v123
    %169 = vmatprep.subr.bf16.mxu0 0
    %170 = vmatpush1.bf16.msra.mxu0 %v122
    %171 = vmatprep.subr.bf16.mxu0 0
    %172 = vmatpush2.bf16.msra.mxu0 0
    %173 = vmatprep.subr.bf16.mxu0 0
    %174 = vmatpush2.bf16.msra.mxu0 0
    %175 = vmatprep.subr.bf16.mxu0 0
    %176 = vmatpush2.bf16.msra.mxu0 0
    %177 = vmatprep.subr.bf16.mxu0 0
    %178 = vmatpush2.bf16.msra.mxu0 0
    %179 = vmatprep.subr.bf16.mxu0 0
    %180 = vmatpush2.bf16.msra.mxu0 0
    %181 = vmatprep.subr.bf16.mxu0 0
    %182 = vmatpush2.bf16.msra.mxu0 0
    %183 = vmatprep.subr.bf16.mxu0 0
    %184 = vmatpush2.bf16.msra.mxu0 0
    %185 = vmatprep.subr.bf16.mxu0 0
    %186 = vmatpush2.bf16.msra.mxu0 0
    %187 = vmatprep.mubr.bf16.mxu0 0
    %188 = vmatmul.mubr.bf16.gmra.mxu0 %v132
    %v189 = vpop.f32.mrf.mxu0
    %v190 = vadd.f32 0.0, %v189
    %v191 = vpop.f32.mrf.mxu0
    %v192 = vpop.f32.mrf.mxu0
    %v193 = vadd.f32 0.0, %v192
    %v194 = vpop.f32.mrf.mxu0
    %195 = vmatprep.mubr.bf16.mxu0 0
    %196 = vmatmul.mubr.bf16.gmra.mxu0 %v135
    %v197 = vpop.f32.mrf.mxu0
    %v198 = vadd.f32 0.0, %v197
    %v199 = vpop.f32.mrf.mxu0
    %v200 = vpop.f32.mrf.mxu0
    %v201 = vadd.f32 0.0, %v200
    %v202 = vpop.f32.mrf.mxu0
    %203 = vmatprep.mubr.bf16.mxu0 0
    %204 = vmatmul.mubr.bf16.gmra.mxu0 %v138
    %v205 = vpop.f32.mrf.mxu0
    %v206 = vadd.f32 0.0, %v205
    %v207 = vpop.f32.mrf.mxu0
    %v208 = vpop.f32.mrf.mxu0
    %v209 = vadd.f32 0.0, %v208
    %v210 = vpop.f32.mrf.mxu0
    %211 = vmatprep.mubr.bf16.mxu0 0
    %212 = vmatmul.mubr.bf16.gmra.mxu0 %v141
    %v213 = vpop.f32.mrf.mxu0
    %v214 = vadd.f32 0.0, %v213
    %v215 = vpop.f32.mrf.mxu0
    %v216 = vpop.f32.mrf.mxu0
    %v217 = vadd.f32 0.0, %v216
    %v218 = vpop.f32.mrf.mxu0
    %219 = vmatprep.mubr.bf16.mxu0 0
    %220 = vmatmul.mubr.bf16.gmra.mxu0 %v144
    %v221 = vpop.f32.mrf.mxu0
    %v222 = vadd.f32 0.0, %v221
    %v223 = vpop.f32.mrf.mxu0
    %v224 = vpop.f32.mrf.mxu0
    %v225 = vadd.f32 0.0, %v224
    %v226 = vpop.f32.mrf.mxu0
    %227 = vmatprep.mubr.bf16.mxu0 0
    %228 = vmatmul.mubr.bf16.gmra.mxu0 %v147
    %v229 = vpop.f32.mrf.mxu0
    %v230 = vadd.f32 0.0, %v229
    %v231 = vpop.f32.mrf.mxu0
    %v232 = vpop.f32.mrf.mxu0
    %v233 = vadd.f32 0.0, %v232
    %v234 = vpop.f32.mrf.mxu0
    %235 = vmatprep.mubr.bf16.mxu0 0
    %236 = vmatmul.mubr.bf16.gmra.mxu0 %v150
    %v237 = vpop.f32.mrf.mxu0
    %v238 = vadd.f32 0.0, %v237
    %v239 = vpop.f32.mrf.mxu0
    %v240 = vpop.f32.mrf.mxu0
    %v241 = vadd.f32 0.0, %v240
    %v242 = vpop.f32.mrf.mxu0
    %243 = vmatprep.mubr.bf16.mxu0 0
    %244 = vmatmul.mubr.bf16.gmra.mxu0 %v153
    %v245 = vpop.f32.mrf.mxu0
    %v246 = vadd.f32 0.0, %v245
    %v247 = vpop.f32.mrf.mxu0
    %v248 = vpop.f32.mrf.mxu0
    %v249 = vadd.f32 0.0, %v248
    %v250 = vpop.f32.mrf.mxu0
    %251 = vdwg.mxu0
    %v268 = vunpack.c.l.b16 %v22
    %v269 = vunpack.c.l.b16 %v23
    %v270 = vunpack.c.l.b16 %v24
    %v271 = vunpack.c.l.b16 %v25
    %v272 = vunpack.c.l.b16 %v26
    %v273 = vunpack.c.l.b16 %v27
    %v274 = vunpack.c.l.b16 %v28
    %v275 = vunpack.c.l.b16 %v29
    %v276 = vunpack.c.l.b16 %v30
    %v277 = vunpack.c.l.b16 %v31
    %v278 = vunpack.c.l.b16 %v32
    %v279 = vunpack.c.l.b16 %v33
    %v280 = vunpack.c.l.b16 %v34
    %v281 = vunpack.c.l.b16 %v35
    %v282 = vunpack.c.l.b16 %v36
    %v283 = vunpack.c.l.b16 %v37
    %v284 = vpack.c.b16 %v269, %v268
    %v285 = vpack.c.b16 %v271, %v270
    %v286 = vpack.c.b16 %v273, %v272
    %v287 = vpack.c.b16 %v275, %v274
    %v288 = vpack.c.b16 %v277, %v276
    %v289 = vpack.c.b16 %v279, %v278
    %v290 = vpack.c.b16 %v281, %v280
    %v291 = vpack.c.b16 %v283, %v282
    %v296 = vunpack.c.l.b16 %v38
    %v297 = vunpack.c.l.b16 %v39
    %v298 = vunpack.c.l.b16 %v40
    %v299 = vunpack.c.l.b16 %v41
    %v300 = vpack.c.b16 %v297, %v296
    %v301 = vpack.c.b16 %v299, %v298
    %vm304 = vcmask 261120
    %v306 = vsel %vm304, %v284, 0
    %v309 = vsel %vm304, %v285, 0
    %v312 = vsel %vm304, %v286, 0
    %v315 = vsel %vm304, %v287, 0
    %v318 = vsel %vm304, %v288, 0
    %v321 = vsel %vm304, %v289, 0
    %v324 = vsel %vm304, %v290, 0
    %v327 = vsel %vm304, %v291, 0
    %329 = vmatprep.subr.bf16.mxu0 0
    %330 = vmatpush1.bf16.msra.mxu0 0
    %331 = vmatprep.subr.bf16.mxu0 0
    %332 = vmatpush1.bf16.msra.mxu0 0
    %333 = vmatprep.subr.bf16.mxu0 0
    %334 = vmatpush1.bf16.msra.mxu0 0
    %335 = vmatprep.subr.bf16.mxu0 0
    %336 = vmatpush1.bf16.msra.mxu0 0
    %337 = vmatprep.subr.bf16.mxu0 0
    %338 = vmatpush1.bf16.msra.mxu0 0
    %339 = vmatprep.subr.bf16.mxu0 0
    %340 = vmatpush1.bf16.msra.mxu0 0
    %341 = vmatprep.subr.bf16.mxu0 0
    %342 = vmatpush1.bf16.msra.mxu0 %v301
    %343 = vmatprep.subr.bf16.mxu0 0
    %344 = vmatpush1.bf16.msra.mxu0 %v300
    %345 = vmatprep.subr.bf16.mxu0 0
    %346 = vmatpush2.bf16.msra.mxu0 0
    %347 = vmatprep.subr.bf16.mxu0 0
    %348 = vmatpush2.bf16.msra.mxu0 0
    %349 = vmatprep.subr.bf16.mxu0 0
    %350 = vmatpush2.bf16.msra.mxu0 0
    %351 = vmatprep.subr.bf16.mxu0 0
    %352 = vmatpush2.bf16.msra.mxu0 0
    %353 = vmatprep.subr.bf16.mxu0 0
    %354 = vmatpush2.bf16.msra.mxu0 0
    %355 = vmatprep.subr.bf16.mxu0 0
    %356 = vmatpush2.bf16.msra.mxu0 0
    %357 = vmatprep.subr.bf16.mxu0 0
    %358 = vmatpush2.bf16.msra.mxu0 0
    %359 = vmatprep.subr.bf16.mxu0 0
    %360 = vmatpush2.bf16.msra.mxu0 0
    %361 = vmatprep.mubr.bf16.mxu0 0
    %362 = vmatmul.mubr.bf16.gmra.mxu0 %v306
    %v363 = vpop.f32.mrf.mxu0
    %v364 = vadd.f32 %v190, %v363
    %v365 = vpop.f32.mrf.mxu0
    %v366 = vpop.f32.mrf.mxu0
    %v367 = vadd.f32 %v193, %v366
    %v368 = vpop.f32.mrf.mxu0
    %369 = vmatprep.mubr.bf16.mxu0 0
    %370 = vmatmul.mubr.bf16.gmra.mxu0 %v309
    %v371 = vpop.f32.mrf.mxu0
    %v372 = vadd.f32 %v198, %v371
    %v373 = vpop.f32.mrf.mxu0
    %v374 = vpop.f32.mrf.mxu0
    %v375 = vadd.f32 %v201, %v374
    %v376 = vpop.f32.mrf.mxu0
    %377 = vmatprep.mubr.bf16.mxu0 0
    %378 = vmatmul.mubr.bf16.gmra.mxu0 %v312
    %v379 = vpop.f32.mrf.mxu0
    %v380 = vadd.f32 %v206, %v379
    %v381 = vpop.f32.mrf.mxu0
    %v382 = vpop.f32.mrf.mxu0
    %v383 = vadd.f32 %v209, %v382
    %v384 = vpop.f32.mrf.mxu0
    %385 = vmatprep.mubr.bf16.mxu0 0
    %386 = vmatmul.mubr.bf16.gmra.mxu0 %v315
    %v387 = vpop.f32.mrf.mxu0
    %v388 = vadd.f32 %v214, %v387
    %v389 = vpop.f32.mrf.mxu0
    %v390 = vpop.f32.mrf.mxu0
    %v391 = vadd.f32 %v217, %v390
    %v392 = vpop.f32.mrf.mxu0
    %393 = vmatprep.mubr.bf16.mxu0 0
    %394 = vmatmul.mubr.bf16.gmra.mxu0 %v318
    %v395 = vpop.f32.mrf.mxu0
    %v396 = vadd.f32 %v222, %v395
    %v397 = vpop.f32.mrf.mxu0
    %v398 = vpop.f32.mrf.mxu0
    %v399 = vadd.f32 %v225, %v398
    %v400 = vpop.f32.mrf.mxu0
    %401 = vmatprep.mubr.bf16.mxu0 0
    %402 = vmatmul.mubr.bf16.gmra.mxu0 %v321
    %v403 = vpop.f32.mrf.mxu0
    %v404 = vadd.f32 %v230, %v403
    %v405 = vpop.f32.mrf.mxu0
    %v406 = vpop.f32.mrf.mxu0
    %v407 = vadd.f32 %v233, %v406
    %v408 = vpop.f32.mrf.mxu0
    %409 = vmatprep.mubr.bf16.mxu0 0
    %410 = vmatmul.mubr.bf16.gmra.mxu0 %v324
    %v411 = vpop.f32.mrf.mxu0
    %v412 = vadd.f32 %v238, %v411
    %v413 = vpop.f32.mrf.mxu0
    %v414 = vpop.f32.mrf.mxu0
    %v415 = vadd.f32 %v241, %v414
    %v416 = vpop.f32.mrf.mxu0
    %417 = vmatprep.mubr.bf16.mxu0 0
    %418 = vmatmul.mubr.bf16.gmra.mxu0 %v327
    %v419 = vpop.f32.mrf.mxu0
    %v420 = vadd.f32 %v246, %v419
    %v421 = vpop.f32.mrf.mxu0
    %v422 = vpop.f32.mrf.mxu0
    %v423 = vadd.f32 %v249, %v422
    %v424 = vpop.f32.mrf.mxu0
    %425 = vdwg.mxu0
    %v426 = vld [vmem:[%s4] sm:$0x1]
    %v428 = vlaneseq
    %v429 = vshrl.u32 %v428, 7
    %v430 = vsub.s32 0, %v429
    %v431 = vrot.slane %v426, %v430
    %v433 = vadd.f32 %v364, %v431
    %v434 = vadd.f32 %v367, %v431
    %v435 = vadd.f32 %v372, %v431
    %v436 = vadd.f32 %v375, %v431
    %v437 = vadd.f32 %v380, %v431
    %v438 = vadd.f32 %v383, %v431
    %v439 = vadd.f32 %v388, %v431
    %v440 = vadd.f32 %v391, %v431
    %v441 = vadd.f32 %v396, %v431
    %v442 = vadd.f32 %v399, %v431
    %v443 = vadd.f32 %v404, %v431
    %v444 = vadd.f32 %v407, %v431
    %v445 = vadd.f32 %v412, %v431
    %v446 = vadd.f32 %v415, %v431
    %v447 = vadd.f32 %v420, %v431
    %v448 = vadd.f32 %v423, %v431
    %v449 = vmax.f32 %v433, 0.0
    %v450 = vmax.f32 %v434, 0.0
    %v451 = vmax.f32 %v435, 0.0
    %v452 = vmax.f32 %v436, 0.0
    %v453 = vmax.f32 %v437, 0.0
    %v454 = vmax.f32 %v438, 0.0
    %v455 = vmax.f32 %v439, 0.0
    %v456 = vmax.f32 %v440, 0.0
    %v457 = vmax.f32 %v441, 0.0
    %v458 = vmax.f32 %v442, 0.0
    %v459 = vmax.f32 %v443, 0.0
    %v460 = vmax.f32 %v444, 0.0
    %v461 = vmax.f32 %v445, 0.0
    %v462 = vmax.f32 %v446, 0.0
    %v463 = vmax.f32 %v447, 0.0
    %v464 = vmax.f32 %v448, 0.0
    %v465 = vpack.c.bf16 %v450, %v449
    %v466 = vpack.c.bf16 %v452, %v451
    %v467 = vpack.c.bf16 %v454, %v453
    %v468 = vpack.c.bf16 %v456, %v455
    %v469 = vpack.c.bf16 %v458, %v457
    %v470 = vpack.c.bf16 %v460, %v459
    %v471 = vpack.c.bf16 %v462, %v461
    %v472 = vpack.c.bf16 %v464, %v463
    %v481 = vunpack.c.l.b16 %v465
    %v482 = vunpack.c.h.b16 %v465
    %v483 = vunpack.c.l.b16 %v466
    %v484 = vunpack.c.h.b16 %v466
    %v485 = vunpack.c.l.b16 %v467
    %v486 = vunpack.c.h.b16 %v467
    %v487 = vunpack.c.l.b16 %v468
    %v488 = vunpack.c.h.b16 %v468
    %v489 = vunpack.c.l.b16 %v469
    %v490 = vunpack.c.h.b16 %v469
    %v491 = vunpack.c.l.b16 %v470
    %v492 = vunpack.c.h.b16 %v470
    %v493 = vunpack.c.l.b16 %v471
    %v494 = vunpack.c.h.b16 %v471
    %v495 = vunpack.c.l.b16 %v472
    %v496 = vunpack.c.h.b16 %v472
    %v497 = vpack.c.b16 %v481, %v481
    %v498 = vpack.c.b16 %v482, %v482
    %v499 = vpack.c.b16 %v483, %v483
    %v500 = vpack.c.b16 %v484, %v484
    %v501 = vpack.c.b16 %v485, %v485
    %v502 = vpack.c.b16 %v486, %v486
    %v503 = vpack.c.b16 %v487, %v487
    %v504 = vpack.c.b16 %v488, %v488
    %v505 = vpack.c.b16 %v489, %v489
    %v506 = vpack.c.b16 %v490, %v490
    %v507 = vpack.c.b16 %v491, %v491
    %v508 = vpack.c.b16 %v492, %v492
    %v509 = vpack.c.b16 %v493, %v493
    %v510 = vpack.c.b16 %v494, %v494
    %v511 = vpack.c.b16 %v495, %v495
    %v512 = vpack.c.b16 %v496, %v496
    %529 = vst [vmem:[#allocation2] sm:$0xf] %v497
    %530 = vst [vmem:[#allocation2 + $0x4] sm:$0xf] %v498
    %531 = vst [vmem:[#allocation2 + $0x8] sm:$0xf] %v499
    %532 = vst [vmem:[#allocation2 + $0xc] sm:$0xf] %v500
    %533 = vst [vmem:[#allocation2 + $0x10] sm:$0xf] %v501
    %534 = vst [vmem:[#allocation2 + $0x14] sm:$0xf] %v502
    %535 = vst [vmem:[#allocation2 + $0x18] sm:$0xf] %v503
    %536 = vst [vmem:[#allocation2 + $0x1c] sm:$0xf] %v504
    %537 = vst [vmem:[#allocation2 + $0x20] sm:$0xf] %v505
    %538 = vst [vmem:[#allocation2 + $0x24] sm:$0xf] %v506
    %539 = vst [vmem:[#allocation2 + $0x28] sm:$0xf] %v507
    %540 = vst [vmem:[#allocation2 + $0x2c] sm:$0xf] %v508
    %541 = vst [vmem:[#allocation2 + $0x30] sm:$0xf] %v509
    %542 = vst [vmem:[#allocation2 + $0x34] sm:$0xf] %v510
    %543 = vst [vmem:[#allocation2 + $0x38] sm:$0xf] %v511
    %544 = vst [vmem:[#allocation2 + $0x3c] sm:$0xf] %v512
    // Predicated region
    $region22: #{bottleneck_forward.5} parent=1 // pred_check
      _
    $region23: #{bottleneck_forward.5} parent=1 // pred_check_branch
      %546 = sbr.rel (0) target = $region25
    $region24: #{bottleneck_forward.5} parent=1 // pred_region
      %s548 = ssub.s32 1024, 1024
      %549 = vsyncadd [#allocation3], %s548
      %s550 = sshll.u32 [#allocation2], 4
      %s551 = int_to_ptr.vmem [resolvable:$true] %s550
      %556 = dma.vmem_to_hbm [thread:$0]  %s551, 1024, %s5, [#allocation3], 64, 64, 4
    $region25: #{bottleneck_forward.5} parent=1 // pred_fallthru
      _
    // Predicated region
    $region26: #{bottleneck_forward.5} parent=1 // pred_check
      _
    $region27: #{bottleneck_forward.5} parent=1 // pred_check_branch
      %558 = sbr.rel (0) target = $region29
    $region28: #{bottleneck_forward.5} parent=1 // pred_region
      %559 = dma.done [#allocation3], 1024
    $region29: #{bottleneck_forward.5} parent=1 // pred_fallthru
      _
    %560 = vsyncpa [#allocation3], 1

// kernel: bottleneck_forward.4
$region0: #{bottleneck_forward.4}
  #allocation0 [shape = 'u32[]', space=smem, size = 0x4, offset = 0x4, fixed_abs, tag = 'smem constant byte address 0x4 - core index']
  #allocation1 [shape = 'u32[144,128]{1,0:T(1,128)}', space=vmem, size = 0x12000, scoped, tag = 'internal scratch']
  %s0 = inlined_call_operand.vmem [shape: bf16[2,4,9,9,32], index: 0, kind: input, shape index: {}]
  %s1 = inlined_call_operand.vmem [shape: bf16[9,32,32], index: 1, kind: input, shape index: {}]
  %s2 = inlined_call_operand.vmem [shape: f32[1,32], index: 2, kind: input, shape index: {}]
  %s3 = inlined_call_operand.vmem [shape: bf16[2,64,32], index: 3, kind: output, shape index: {}]
  %s4 = sld [smem:[#allocation0]]
  $region45: #{bottleneck_forward.4} parent=0
    _
  %s6 = ssub.s32 1, %s4
  %s7 = scalar_select 0, %s6, %s4
  loop: start=0, step=1, limit=4
  $region2: #{bottleneck_forward.4} parent=0 // loop_pre_header
    _
  $region3: #{bottleneck_forward.4} parent=0 // loop_header
    %s9 = sphi 0, %s13
    %p10 = scmp.ge.s32.totalorder %s9, 4
    %s16 = sphi 0, %s28
    %s17 = sphi 0, %s24
    %s18 = sphi 0, %s16
    %s19 = sphi 0, %s17
    %s20 = sphi 0, %s18
    %s21 = sphi 0, %s19
    %s31 = sphi 0, %s33
    %s34 = sphi 0, %s31
    %s35 = sphi 0, %s34
    %s51 = sphi 0, %s35
    %s55 = sphi 0, %s55
    %s57 = sphi 0, %s55
    %s58 = sphi 0, %s57
    %s72 = sphi 0, %s58
    %s76 = sphi 0, %s76
    %s78 = sphi 0, %s76
    %s79 = sphi 0, %s78
    %s93 = sphi 0, %s79
    %s101 = sphi 0, %s103
    %s104 = sphi 0, %s101
    %s105 = sphi 0, %s104
    %s121 = sphi 0, %s105
  $region4: #{bottleneck_forward.4} parent=0 // loop_header_branch
    %12 = sbr.rel (%p10) target = $region8
  $region5: #{bottleneck_forward.4} parent=0 // loop_body
    %s14 = ssub.s32 %s9, 1
    %s15 = ssub.s32 %s9, 2
    %s22 = sadd.s32 1, %s17
    %p23 = scmp.ge.s32.totalorder %s22, 1
    %s24 = scalar_select %p23, 0, %s22
    %s25 = sadd.s32 1, %s16
    %s26 = scalar_select %p23, %s25, %s16
    %p27 = scmp.ge.s32.totalorder %s26, 2
    %s28 = scalar_select %p27, 0, %s26
    %s29 = ssub.s32 %s16, %s28
    %p30 = scmp.eq.s32.totalorder %s29, 0
    %s32 = sadd.s32 %s31, 1
    %s33 = scalar_select %p30, %s31, %s32
    %p36 = pneg %p30
    %p37 = scmp.eq.s32.totalorder %s9, 1
    %p38 = por %p36, %p37
    %p39 = scmp.ne.s32.totalorder %s31, %s34
    %p40 = scmp.eq.s32.totalorder %s9, 0
    %p41 = por %p39, %p40
    %p42 = scmp.ne.s32.totalorder %s31, %s34
    %p43 = scmp.eq.s32.totalorder %s14, 1
    %p44 = por %p42, %p43
    %p45 = scmp.ne.s32.totalorder %s34, %s35
    %p46 = scmp.eq.s32.totalorder %s14, 0
    %p47 = por %p45, %p46
    %p48 = scmp.ne.s32.totalorder %s34, %s35
    %p49 = scmp.eq.s32.totalorder %s15, 1
    %p50 = por %p48, %p49
    %p52 = scmp.ne.s32.totalorder %s35, %s51
    %p53 = scmp.eq.s32.totalorder %s15, 0
    %p54 = por %p52, %p53
    %s56 = sadd.s32 %s55, 1
    %p59 = scmp.eq.s32.totalorder %s9, 1
    %p60 = scmp.ne.s32.totalorder %s55, %s57
    %p61 = scmp.eq.s32.totalorder %s9, 0
    %p62 = por %p60, %p61
    %p63 = scmp.ne.s32.totalorder %s55, %s57
    %p64 = scmp.eq.s32.totalorder %s14, 1
    %p65 = por %p63, %p64
    %p66 = scmp.ne.s32.totalorder %s57, %s58
    %p67 = scmp.eq.s32.totalorder %s14, 0
    %p68 = por %p66, %p67
    %p69 = scmp.ne.s32.totalorder %s57, %s58
    %p70 = scmp.eq.s32.totalorder %s15, 1
    %p71 = por %p69, %p70
    %p73 = scmp.ne.s32.totalorder %s58, %s72
    %p74 = scmp.eq.s32.totalorder %s15, 0
    %p75 = por %p73, %p74
    %s77 = sadd.s32 %s76, 1
    %p80 = scmp.eq.s32.totalorder %s9, 1
    %p81 = scmp.ne.s32.totalorder %s76, %s78
    %p82 = scmp.eq.s32.totalorder %s9, 0
    %p83 = por %p81, %p82
    %p84 = scmp.ne.s32.totalorder %s76, %s78
    %p85 = scmp.eq.s32.totalorder %s14, 1
    %p86 = por %p84, %p85
    %p87 = scmp.ne.s32.totalorder %s78, %s79
    %p88 = scmp.eq.s32.totalorder %s14, 0
    %p89 = por %p87, %p88
    %p90 = scmp.ne.s32.totalorder %s78, %s79
    %p91 = scmp.eq.s32.totalorder %s15, 1
    %p92 = por %p90, %p91
    %p94 = scmp.ne.s32.totalorder %s79, %s93
    %p95 = scmp.eq.s32.totalorder %s15, 0
    %p96 = por %p94, %p95
    %s97 = ssub.s32 %s16, %s28
    %s98 = ssub.s32 %s17, %s24
    %s99 = sor.u32 %s97, %s98
    %p100 = scmp.eq.s32.totalorder %s99, 0
    %s102 = sadd.s32 %s101, 1
    %s103 = scalar_select %p100, %s101, %s102
    %p106 = pneg %p100
    %p107 = scmp.eq.s32.totalorder %s9, 1
    %p108 = por %p106, %p107
    %p109 = scmp.ne.s32.totalorder %s101, %s104
    %p110 = scmp.eq.s32.totalorder %s9, 0
    %p111 = por %p109, %p110
    %p112 = scmp.ne.s32.totalorder %s101, %s104
    %p113 = scmp.eq.s32.totalorder %s14, 1
    %p114 = por %p112, %p113
    %p115 = scmp.ne.s32.totalorder %s104, %s105
    %p116 = scmp.eq.s32.totalorder %s14, 0
    %p117 = por %p115, %p116
    %p118 = scmp.ne.s32.totalorder %s104, %s105
    %p119 = scmp.eq.s32.totalorder %s15, 1
    %p120 = por %p118, %p119
    %p122 = scmp.ne.s32.totalorder %s105, %s121
    %p123 = scmp.eq.s32.totalorder %s15, 0
    %p124 = por %p122, %p123
    %p125 = scmp.le.s32.totalorder 1, %s9
    %p126 = scmp.lt.s32.totalorder %s9, 3
    %p127 = pnand %p125, %p126
    %p128 = pneg %p127
    // Predicated region
    $region9: #{bottleneck_forward.4} parent=5 // pred_check
      _
    $region10: #{bottleneck_forward.4} parent=5 // pred_check_branch
      %130 = sbr.rel (%p127) target = $region12
    $region11: #{bottleneck_forward.4} parent=5 // pred_region
      %s131 = ssub.s32 %s9, 1
      // Predicated region
      $region13: #{bottleneck_forward.4} parent=11 // pred_check
        %p132 = pneg %p68
      $region14: #{bottleneck_forward.4} parent=11 // pred_check_branch
        %134 = sbr.rel (%p132) target = $region16
      $region15: #{bottleneck_forward.4} parent=11 // pred_region
        _
      $region16: #{bottleneck_forward.4} parent=11 // pred_fallthru
        _
      // Predicated region
      $region17: #{bottleneck_forward.4} parent=11 // pred_check
        %p135 = pneg %p89
      $region18: #{bottleneck_forward.4} parent=11 // pred_check_branch
        %137 = sbr.rel (%p135) target = $region20
      $region19: #{bottleneck_forward.4} parent=11 // pred_region
        _
      $region20: #{bottleneck_forward.4} parent=11 // pred_fallthru
        _
    $region12: #{bottleneck_forward.4} parent=5 // pred_fallthru
      _
    %p138 = scmp.lt.s32.totalorder %s9, 2
    // Predicated region
    $region21: #{bottleneck_forward.4} parent=5 // pred_check
      %p139 = pneg %p138
    $region22: #{bottleneck_forward.4} parent=5 // pred_check_branch
      %141 = sbr.rel (%p139) target = $region24
    $region23: #{bottleneck_forward.4} parent=5 // pred_region
      // Predicated region
      $region25: #{bottleneck_forward.4} parent=23 // pred_check
        %p142 = pneg %p41
      $region26: #{bottleneck_forward.4} parent=23 // pred_check_branch
        %144 = sbr.rel (%p142) target = $region28
      $region27: #{bottleneck_forward.4} parent=23 // pred_region
        %p145 = scmp.lt.s32.totalorder %s16, 1
        %s146 = scalar_select %p145, %s16, 1
        %s147 = smul.addr %s146, 72
        %s148 = smul.addr %s147, 4
        %s149 = scalar_lea.vmem %s0, %s148
      $region28: #{bottleneck_forward.4} parent=23 // pred_fallthru
        _
    $region24: #{bottleneck_forward.4} parent=5 // pred_fallthru
      _
    %p150 = scmp.le.s32.totalorder 1, %s9
    %p151 = scmp.lt.s32.totalorder %s9, 3
    %p152 = pnand %p150, %p151
    %p153 = pneg %p152
    // Predicated region
    $region29: #{bottleneck_forward.4} parent=5 // pred_check
      _
    $region30: #{bottleneck_forward.4} parent=5 // pred_check_branch
      %155 = sbr.rel (%p152) target = $region32
    $region31: #{bottleneck_forward.4} parent=5 // pred_region
      %s156 = ssub.s32 %s9, 1
      %p157 = scmp.lt.s32.totalorder %s18, 1
      %s158 = scalar_select %p157, %s18, 1
      %s159 = smul.addr %s158, 72
      %s160 = smul.addr %s159, 4
      %s161 = scalar_lea.vmem %s0, %s160
      %p162 = pneg %p47
      %p163 = pneg %p44
      %p164 = pneg %p68
      %p165 = pneg %p65
      %p166 = pneg %p89
      %p167 = pneg %p86
      %p168 = pneg %p117
      %p169 = pneg %p114
      %s170 = smul.u32 8, %s19
      %p171 = scmp.lt.s32.totalorder %s18, 1
      %s172 = scalar_select %p171, %s18, 1
      %p173 = scmp.lt.s32.totalorder %s170, 7
      %s174 = scalar_select %p173, %s170, 7
      %s175 = smul.addr %s172, 8
      %s176 = sadd.s32 %s174, %s175
      %s177 = smul.addr %s176, 4
      %s178 = scalar_lea.vmem %s3, %s177
      %p179 = scmp.lt.s32.totalorder %s18, 1
      %s180 = scalar_select %p179, %s18, 1
      %s181 = smul.addr %s180, 72
      %s182 = smul.addr %s181, 4
      %s183 = scalar_lea.vmem %s0, %s182
      %s184 = smul.u32 8, %s19
      %p185 = scmp.lt.s32.totalorder %s18, 1
      %s186 = scalar_select %p185, %s18, 1
      %p187 = scmp.lt.s32.totalorder %s184, 7
      %s188 = scalar_select %p187, %s184, 7
      %s189 = smul.addr %s186, 8
      %s190 = sadd.s32 %s188, %s189
      %s191 = smul.addr %s190, 4
      %s192 = scalar_lea.vmem %s3, %s191
      %s193 = smul.u32 8, %s19
      %s195 = smul.u32 %s19, 8
      %s196 = smul.u32 %s195, 2
      %s197 = smul.addr %s196, 4
      %s198 = scalar_lea.vmem %s183, %s197
      %v199 = vld [vmem:[%s198] sm:$0xf]
      %v200 = vld [vmem:[%s198 + $0x8] sm:$0xf]
      %v201 = vld [vmem:[%s198 + $0x10] sm:$0xf]
      %v202 = vld [vmem:[%s198 + $0x18] sm:$0xf]
      %v203 = vld [vmem:[%s198 + $0x20] sm:$0xf]
      %v204 = vld [vmem:[%s198 + $0x28] sm:$0xf]
      %v205 = vld [vmem:[%s198 + $0x30] sm:$0xf]
      %v206 = vld [vmem:[%s198 + $0x38] sm:$0xf]
      %v207 = vld [vmem:[%s1] sm:$0xf]
      %v208 = vld [vmem:[%s1 + $0x4] sm:$0xf]
      %v209 = vld [vmem:[%s1 + $0x8] sm:$0xf]
      %v210 = vld [vmem:[%s1 + $0xc] sm:$0xf]
      %s211 = sadd.s32 %s196, 18
      %s212 = smul.addr %s211, 4
      %s213 = scalar_lea.vmem %s183, %s212
      %v214 = vld [vmem:[%s213] sm:$0xf]
      %v215 = vld [vmem:[%s213 + $0x8] sm:$0xf]
      %v216 = vld [vmem:[%s213 + $0x10] sm:$0xf]
      %v217 = vld [vmem:[%s213 + $0x18] sm:$0xf]
      %v218 = vld [vmem:[%s213 + $0x20] sm:$0xf]
      %v219 = vld [vmem:[%s213 + $0x28] sm:$0xf]
      %v220 = vld [vmem:[%s213 + $0x30] sm:$0xf]
      %v221 = vld [vmem:[%s213 + $0x38] sm:$0xf]
      %s222 = scalar_lea.vmem %s1, 16
      %v223 = vld [vmem:[%s222] sm:$0xf]
      %v224 = vld [vmem:[%s222 + $0x4] sm:$0xf]
      %v225 = vld [vmem:[%s222 + $0x8] sm:$0xf]
      %v226 = vld [vmem:[%s222 + $0xc] sm:$0xf]
      %v235 = vunpack.c.l.b16 %v214
      %v236 = vunpack.c.l.b16 %v215
      %v237 = vunpack.c.l.b16 %v216
      %v238 = vunpack.c.l.b16 %v217
      %v239 = vunpack.c.l.b16 %v218
      %v240 = vunpack.c.l.b16 %v219
      %v241 = vunpack.c.l.b16 %v220
      %v242 = vunpack.c.l.b16 %v221
      %v243 = vpack.c.b16 %v236, %v235
      %v244 = vpack.c.b16 %v238, %v237
      %v245 = vpack.c.b16 %v240, %v239
      %v246 = vpack.c.b16 %v242, %v241
      %v251 = vunpack.c.l.b16 %v223
      %v252 = vunpack.c.l.b16 %v224
      %v253 = vunpack.c.l.b16 %v225
      %v254 = vunpack.c.l.b16 %v226
      %v255 = vpack.c.b16 %v252, %v251
      %v256 = vpack.c.b16 %v254, %v253
      %vm259 = vcmask 261120
      %v261 = vsel %vm259, %v243, 0
      %v264 = vsel %vm259, %v244, 0
      %v267 = vsel %vm259, %v245, 0
      %v270 = vsel %vm259, %v246, 0
      %272 = vmatprep.subr.bf16.mxu0 0
      %273 = vmatpush1.bf16.msra.mxu0 0
      %274 = vmatprep.subr.bf16.mxu0 0
      %275 = vmatpush1.bf16.msra.mxu0 0
      %276 = vmatprep.subr.bf16.mxu0 0
      %277 = vmatpush1.bf16.msra.mxu0 0
      %278 = vmatprep.subr.bf16.mxu0 0
      %279 = vmatpush1.bf16.msra.mxu0 0
      %280 = vmatprep.subr.bf16.mxu0 0
      %281 = vmatpush1.bf16.msra.mxu0 0
      %282 = vmatprep.subr.bf16.mxu0 0
      %283 = vmatpush1.bf16.msra.mxu0 0
      %284 = vmatprep.subr.bf16.mxu0 0
      %285 = vmatpush1.bf16.msra.mxu0 %v256
      %286 = vmatprep.subr.bf16.mxu0 0
      %287 = vmatpush1.bf16.msra.mxu0 %v255
      %288 = vmatprep.subr.bf16.mxu0 0
      %289 = vmatpush2.bf16.msra.mxu0 0
      %290 = vmatprep.subr.bf16.mxu0 0
      %291 = vmatpush2.bf16.msra.mxu0 0
      %292 = vmatprep.subr.bf16.mxu0 0
      %293 = vmatpush2.bf16.msra.mxu0 0
      %294 = vmatprep.subr.bf16.mxu0 0
      %295 = vmatpush2.bf16.msra.mxu0 0
      %296 = vmatprep.subr.bf16.mxu0 0
      %297 = vmatpush2.bf16.msra.mxu0 0
      %298 = vmatprep.subr.bf16.mxu0 0
      %299 = vmatpush2.bf16.msra.mxu0 0
      %300 = vmatprep.subr.bf16.mxu0 0
      %301 = vmatpush2.bf16.msra.mxu0 0
      %302 = vmatprep.subr.bf16.mxu0 0
      %303 = vmatpush2.bf16.msra.mxu0 0
      %304 = vmatprep.mubr.bf16.mxu0 0
      %305 = vmatmul.mubr.bf16.gmra.mxu0 %v261
      %v306 = vpop.f32.mrf.mxu0
      %v307 = vadd.f32 0.0, %v306
      %v308 = vpop.f32.mrf.mxu0
      %v309 = vpop.f32.mrf.mxu0
      %v310 = vadd.f32 0.0, %v309
      %v311 = vpop.f32.mrf.mxu0
      %312 = vmatprep.mubr.bf16.mxu0 0
      %313 = vmatmul.mubr.bf16.gmra.mxu0 %v264
      %v314 = vpop.f32.mrf.mxu0
      %v315 = vadd.f32 0.0, %v314
      %v316 = vpop.f32.mrf.mxu0
      %v317 = vpop.f32.mrf.mxu0
      %v318 = vadd.f32 0.0, %v317
      %v319 = vpop.f32.mrf.mxu0
      %320 = vmatprep.mubr.bf16.mxu0 0
      %321 = vmatmul.mubr.bf16.gmra.mxu0 %v267
      %v322 = vpop.f32.mrf.mxu0
      %v323 = vadd.f32 0.0, %v322
      %v324 = vpop.f32.mrf.mxu0
      %v325 = vpop.f32.mrf.mxu0
      %v326 = vadd.f32 0.0, %v325
      %v327 = vpop.f32.mrf.mxu0
      %328 = vmatprep.mubr.bf16.mxu0 0
      %329 = vmatmul.mubr.bf16.gmra.mxu0 %v270
      %v330 = vpop.f32.mrf.mxu0
      %v331 = vadd.f32 0.0, %v330
      %v332 = vpop.f32.mrf.mxu0
      %v333 = vpop.f32.mrf.mxu0
      %v334 = vadd.f32 0.0, %v333
      %v335 = vpop.f32.mrf.mxu0
      %336 = vdwg.mxu0
      %v345 = vunpack.c.l.b16 %v199
      %v346 = vunpack.c.l.b16 %v200
      %v347 = vunpack.c.l.b16 %v201
      %v348 = vunpack.c.l.b16 %v202
      %v349 = vunpack.c.l.b16 %v203
      %v350 = vunpack.c.l.b16 %v204
      %v351 = vunpack.c.l.b16 %v205
      %v352 = vunpack.c.l.b16 %v206
      %v353 = vpack.c.b16 %v346, %v345
      %v354 = vpack.c.b16 %v348, %v347
      %v355 = vpack.c.b16 %v350, %v349
      %v356 = vpack.c.b16 %v352, %v351
      %v361 = vunpack.c.l.b16 %v207
      %v362 = vunpack.c.l.b16 %v208
      %v363 = vunpack.c.l.b16 %v209
      %v364 = vunpack.c.l.b16 %v210
      %v365 = vpack.c.b16 %v362, %v361
      %v366 = vpack.c.b16 %v364, %v363
      %v370 = vsel %vm259, %v353, 0
      %v373 = vsel %vm259, %v354, 0
      %v376 = vsel %vm259, %v355, 0
      %v379 = vsel %vm259, %v356, 0
      %381 = vmatprep.subr.bf16.mxu0 0
      %382 = vmatpush1.bf16.msra.mxu0 0
      %383 = vmatprep.subr.bf16.mxu0 0
      %384 = vmatpush1.bf16.msra.mxu0 0
      %385 = vmatprep.subr.bf16.mxu0 0
      %386 = vmatpush1.bf16.msra.mxu0 0
      %387 = vmatprep.subr.bf16.mxu0 0
      %388 = vmatpush1.bf16.msra.mxu0 0
      %389 = vmatprep.subr.bf16.mxu0 0
      %390 = vmatpush1.bf16.msra.mxu0 0
      %391 = vmatprep.subr.bf16.mxu0 0
      %392 = vmatpush1.bf16.msra.mxu0 0
      %393 = vmatprep.subr.bf16.mxu0 0
      %394 = vmatpush1.bf16.msra.mxu0 %v366
      %395 = vmatprep.subr.bf16.mxu0 0
      %396 = vmatpush1.bf16.msra.mxu0 %v365
      %397 = vmatprep.subr.bf16.mxu0 0
      %398 = vmatpush2.bf16.msra.mxu0 0
      %399 = vmatprep.subr.bf16.mxu0 0
      %400 = vmatpush2.bf16.msra.mxu0 0
      %401 = vmatprep.subr.bf16.mxu0 0
      %402 = vmatpush2.bf16.msra.mxu0 0
      %403 = vmatprep.subr.bf16.mxu0 0
      %404 = vmatpush2.bf16.msra.mxu0 0
      %405 = vmatprep.subr.bf16.mxu0 0
      %406 = vmatpush2.bf16.msra.mxu0 0
      %407 = vmatprep.subr.bf16.mxu0 0
      %408 = vmatpush2.bf16.msra.mxu0 0
      %409 = vmatprep.subr.bf16.mxu0 0
      %410 = vmatpush2.bf16.msra.mxu0 0
      %411 = vmatprep.subr.bf16.mxu0 0
      %412 = vmatpush2.bf16.msra.mxu0 0
      %413 = vmatprep.mubr.bf16.mxu0 0
      %414 = vmatmul.mubr.bf16.gmra.mxu0 %v370
      %v415 = vpop.f32.mrf.mxu0
      %v416 = vadd.f32 %v307, %v415
      %v417 = vpop.f32.mrf.mxu0
      %v418 = vpop.f32.mrf.mxu0
      %v419 = vadd.f32 %v310, %v418
      %v420 = vpop.f32.mrf.mxu0
      %421 = vmatprep.mubr.bf16.mxu0 0
      %422 = vmatmul.mubr.bf16.gmra.mxu0 %v373
      %v423 = vpop.f32.mrf.mxu0
      %v424 = vadd.f32 %v315, %v423
      %v425 = vpop.f32.mrf.mxu0
      %v426 = vpop.f32.mrf.mxu0
      %v427 = vadd.f32 %v318, %v426
      %v428 = vpop.f32.mrf.mxu0
      %429 = vmatprep.mubr.bf16.mxu0 0
      %430 = vmatmul.mubr.bf16.gmra.mxu0 %v376
      %v431 = vpop.f32.mrf.mxu0
      %v432 = vadd.f32 %v323, %v431
      %v433 = vpop.f32.mrf.mxu0
      %v434 = vpop.f32.mrf.mxu0
      %v435 = vadd.f32 %v326, %v434
      %v436 = vpop.f32.mrf.mxu0
      %437 = vmatprep.mubr.bf16.mxu0 0
      %438 = vmatmul.mubr.bf16.gmra.mxu0 %v379
      %v439 = vpop.f32.mrf.mxu0
      %v440 = vadd.f32 %v331, %v439
      %v441 = vpop.f32.mrf.mxu0
      %v442 = vpop.f32.mrf.mxu0
      %v443 = vadd.f32 %v334, %v442
      %v444 = vpop.f32.mrf.mxu0
      %445 = vdwg.mxu0
      %v446 = vld [vmem:[%s198] sm:$0xf]
      %v447 = vld [vmem:[%s198 + $0x4] sm:$0x1]
      %v448 = vld [vmem:[%s198 + $0x8] sm:$0xf]
      %v449 = vld [vmem:[%s198 + $0xc] sm:$0x1]
      %v450 = vld [vmem:[%s198 + $0x10] sm:$0xf]
      %v451 = vld [vmem:[%s198 + $0x14] sm:$0x1]
      %v452 = vld [vmem:[%s198 + $0x18] sm:$0xf]
      %v453 = vld [vmem:[%s198 + $0x1c] sm:$0x1]
      %v454 = vld [vmem:[%s198 + $0x20] sm:$0xf]
      %v455 = vld [vmem:[%s198 + $0x24] sm:$0x1]
      %v456 = vld [vmem:[%s198 + $0x28] sm:$0xf]
      %v457 = vld [vmem:[%s198 + $0x2c] sm:$0x1]
      %v458 = vld [vmem:[%s198 + $0x30] sm:$0xf]
      %v459 = vld [vmem:[%s198 + $0x34] sm:$0x1]
      %v460 = vld [vmem:[%s198 + $0x38] sm:$0xf]
      %v461 = vld [vmem:[%s198 + $0x3c] sm:$0x1]
      %vm462 = vsmask.f32 3328
      %vm463 = vsmask.f32 7440
      %vm464 = vmor %vm462, %vm463
      %v466 = vshrl.u32 %v446, 16
      %v468 = vrot.slane %v466, 4
      %v469 = vshll.u32 %v446, 16
      %v471 = vrot.slane %v469, 5
      %v472 = vor.u32 %v468, %v471
      %v473 = vrot.slane %v472, 4
      %v475 = vshll.u32 %v447, 16
      %v477 = vrot.slane %v475, 5
      %v478 = vsel %vm464, %v473, %v477
      %v480 = vshrl.u32 %v448, 16
      %v482 = vrot.slane %v480, 4
      %v483 = vshll.u32 %v448, 16
      %v485 = vrot.slane %v483, 5
      %v486 = vor.u32 %v482, %v485
      %v487 = vrot.slane %v486, 4
      %v489 = vshll.u32 %v449, 16
      %v491 = vrot.slane %v489, 5
      %v492 = vsel %vm464, %v487, %v491
      %v494 = vshrl.u32 %v450, 16
      %v496 = vrot.slane %v494, 4
      %v497 = vshll.u32 %v450, 16
      %v499 = vrot.slane %v497, 5
      %v500 = vor.u32 %v496, %v499
      %v501 = vrot.slane %v500, 4
      %v503 = vshll.u32 %v451, 16
      %v505 = vrot.slane %v503, 5
      %v506 = vsel %vm464, %v501, %v505
      %v508 = vshrl.u32 %v452, 16
      %v510 = vrot.slane %v508, 4
      %v511 = vshll.u32 %v452, 16
      %v513 = vrot.slane %v511, 5
      %v514 = vor.u32 %v510, %v513
      %v515 = vrot.slane %v514, 4
      %v517 = vshll.u32 %v453, 16
      %v519 = vrot.slane %v517, 5
      %v520 = vsel %vm464, %v515, %v519
      %v522 = vshrl.u32 %v454, 16
      %v524 = vrot.slane %v522, 4
      %v525 = vshll.u32 %v454, 16
      %v527 = vrot.slane %v525, 5
      %v528 = vor.u32 %v524, %v527
      %v529 = vrot.slane %v528, 4
      %v531 = vshll.u32 %v455, 16
      %v533 = vrot.slane %v531, 5
      %v534 = vsel %vm464, %v529, %v533
      %v536 = vshrl.u32 %v456, 16
      %v538 = vrot.slane %v536, 4
      %v539 = vshll.u32 %v456, 16
      %v541 = vrot.slane %v539, 5
      %v542 = vor.u32 %v538, %v541
      %v543 = vrot.slane %v542, 4
      %v545 = vshll.u32 %v457, 16
      %v547 = vrot.slane %v545, 5
      %v548 = vsel %vm464, %v543, %v547
      %v550 = vshrl.u32 %v458, 16
      %v552 = vrot.slane %v550, 4
      %v553 = vshll.u32 %v458, 16
      %v555 = vrot.slane %v553, 5
      %v556 = vor.u32 %v552, %v555
      %v557 = vrot.slane %v556, 4
      %v559 = vshll.u32 %v459, 16
      %v561 = vrot.slane %v559, 5
      %v562 = vsel %vm464, %v557, %v561
      %v564 = vshrl.u32 %v460, 16
      %v566 = vrot.slane %v564, 4
      %v567 = vshll.u32 %v460, 16
      %v569 = vrot.slane %v567, 5
      %v570 = vor.u32 %v566, %v569
      %v571 = vrot.slane %v570, 4
      %v573 = vshll.u32 %v461, 16
      %v575 = vrot.slane %v573, 5
      %v576 = vsel %vm464, %v571, %v575
      %s577 = scalar_lea.vmem %s1, 32
      %v578 = vld [vmem:[%s577] sm:$0xf]
      %v579 = vld [vmem:[%s577 + $0x4] sm:$0xf]
      %v580 = vld [vmem:[%s577 + $0x8] sm:$0xf]
      %v581 = vld [vmem:[%s577 + $0xc] sm:$0xf]
      %v582 = vunpack.c.l.b16 %v478
      %v583 = vunpack.c.l.b16 %v492
      %v584 = vunpack.c.l.b16 %v506
      %v585 = vunpack.c.l.b16 %v520
      %v586 = vunpack.c.l.b16 %v534
      %v587 = vunpack.c.l.b16 %v548
      %v588 = vunpack.c.l.b16 %v562
      %v589 = vunpack.c.l.b16 %v576
      %v590 = vpack.c.b16 %v583, %v582
      %v591 = vpack.c.b16 %v585, %v584
      %v592 = vpack.c.b16 %v587, %v586
      %v593 = vpack.c.b16 %v589, %v588
      %v598 = vunpack.c.l.b16 %v578
      %v599 = vunpack.c.l.b16 %v579
      %v600 = vunpack.c.l.b16 %v580
      %v601 = vunpack.c.l.b16 %v581
      %v602 = vpack.c.b16 %v599, %v598
      %v603 = vpack.c.b16 %v601, %v600
      %v607 = vsel %vm259, %v590, 0
      %v610 = vsel %vm259, %v591, 0
      %v613 = vsel %vm259, %v592, 0
      %v616 = vsel %vm259, %v593, 0
      %618 = vmatprep.subr.bf16.mxu0 0
      %619 = vmatpush1.bf16.msra.mxu0 0
      %620 = vmatprep.subr.bf16.mxu0 0
      %621 = vmatpush1.bf16.msra.mxu0 0
      %622 = vmatprep.subr.bf16.mxu0 0
      %623 = vmatpush1.bf16.msra.mxu0 0
      %624 = vmatprep.subr.bf16.mxu0 0
      %625 = vmatpush1.bf16.msra.mxu0 0
      %626 = vmatprep.subr.bf16.mxu0 0
      %627 = vmatpush1.bf16.msra.mxu0 0
      %628 = vmatprep.subr.bf16.mxu0 0
      %629 = vmatpush1.bf16.msra.mxu0 0
      %630 = vmatprep.subr.bf16.mxu0 0
      %631 = vmatpush1.bf16.msra.mxu0 %v603
      %632 = vmatprep.subr.bf16.mxu0 0
      %633 = vmatpush1.bf16.msra.mxu0 %v602
      %634 = vmatprep.subr.bf16.mxu0 0
      %635 = vmatpush2.bf16.msra.mxu0 0
      %636 = vmatprep.subr.bf16.mxu0 0
      %637 = vmatpush2.bf16.msra.mxu0 0
      %638 = vmatprep.subr.bf16.mxu0 0
      %639 = vmatpush2.bf16.msra.mxu0 0
      %640 = vmatprep.subr.bf16.mxu0 0
      %641 = vmatpush2.bf16.msra.mxu0 0
      %642 = vmatprep.subr.bf16.mxu0 0
      %643 = vmatpush2.bf16.msra.mxu0 0
      %644 = vmatprep.subr.bf16.mxu0 0
      %645 = vmatpush2.bf16.msra.mxu0 0
      %646 = vmatprep.subr.bf16.mxu0 0
      %647 = vmatpush2.bf16.msra.mxu0 0
      %648 = vmatprep.subr.bf16.mxu0 0
      %649 = vmatpush2.bf16.msra.mxu0 0
      %650 = vmatprep.mubr.bf16.mxu0 0
      %651 = vmatmul.mubr.bf16.gmra.mxu0 %v607
      %v652 = vpop.f32.mrf.mxu0
      %v653 = vadd.f32 0.0, %v652
      %v654 = vpop.f32.mrf.mxu0
      %v655 = vpop.f32.mrf.mxu0
      %v656 = vadd.f32 0.0, %v655
      %v657 = vpop.f32.mrf.mxu0
      %658 = vmatprep.mubr.bf16.mxu0 0
      %659 = vmatmul.mubr.bf16.gmra.mxu0 %v610
      %v660 = vpop.f32.mrf.mxu0
      %v661 = vadd.f32 0.0, %v660
      %v662 = vpop.f32.mrf.mxu0
      %v663 = vpop.f32.mrf.mxu0
      %v664 = vadd.f32 0.0, %v663
      %v665 = vpop.f32.mrf.mxu0
      %666 = vmatprep.mubr.bf16.mxu0 0
      %667 = vmatmul.mubr.bf16.gmra.mxu0 %v613
      %v668 = vpop.f32.mrf.mxu0
      %v669 = vadd.f32 0.0, %v668
      %v670 = vpop.f32.mrf.mxu0
      %v671 = vpop.f32.mrf.mxu0
      %v672 = vadd.f32 0.0, %v671
      %v673 = vpop.f32.mrf.mxu0
      %674 = vmatprep.mubr.bf16.mxu0 0
      %675 = vmatmul.mubr.bf16.gmra.mxu0 %v616
      %v676 = vpop.f32.mrf.mxu0
      %v677 = vadd.f32 0.0, %v676
      %v678 = vpop.f32.mrf.mxu0
      %v679 = vpop.f32.mrf.mxu0
      %v680 = vadd.f32 0.0, %v679
      %v681 = vpop.f32.mrf.mxu0
      %682 = vdwg.mxu0
      %v683 = vadd.f32 %v416, %v653
      %v684 = vadd.f32 %v419, %v656
      %v685 = vadd.f32 %v424, %v661
      %v686 = vadd.f32 %v427, %v664
      %v687 = vadd.f32 %v432, %v669
      %v688 = vadd.f32 %v435, %v672
      %v689 = vadd.f32 %v440, %v677
      %v690 = vadd.f32 %v443, %v680
      %s691 = sadd.s32 %s196, 36
      %s692 = smul.addr %s691, 4
      %s693 = scalar_lea.vmem %s183, %s692
      %v694 = vld [vmem:[%s693] sm:$0xf]
      %v695 = vld [vmem:[%s693 + $0x8] sm:$0xf]
      %v696 = vld [vmem:[%s693 + $0x10] sm:$0xf]
      %v697 = vld [vmem:[%s693 + $0x18] sm:$0xf]
      %v698 = vld [vmem:[%s693 + $0x20] sm:$0xf]
      %v699 = vld [vmem:[%s693 + $0x28] sm:$0xf]
      %v700 = vld [vmem:[%s693 + $0x30] sm:$0xf]
      %v701 = vld [vmem:[%s693 + $0x38] sm:$0xf]
      %s702 = scalar_lea.vmem %s1, 48
      %v703 = vld [vmem:[%s702] sm:$0xf]
      %v704 = vld [vmem:[%s702 + $0x4] sm:$0xf]
      %v705 = vld [vmem:[%s702 + $0x8] sm:$0xf]
      %v706 = vld [vmem:[%s702 + $0xc] sm:$0xf]
      %v715 = vunpack.c.l.b16 %v694
      %v716 = vunpack.c.l.b16 %v695
      %v717 = vunpack.c.l.b16 %v696
      %v718 = vunpack.c.l.b16 %v697
      %v719 = vunpack.c.l.b16 %v698
      %v720 = vunpack.c.l.b16 %v699
      %v721 = vunpack.c.l.b16 %v700
      %v722 = vunpack.c.l.b16 %v701
      %v723 = vpack.c.b16 %v716, %v715
      %v724 = vpack.c.b16 %v718, %v717
      %v725 = vpack.c.b16 %v720, %v719
      %v726 = vpack.c.b16 %v722, %v721
      %v731 = vunpack.c.l.b16 %v703
      %v732 = vunpack.c.l.b16 %v704
      %v733 = vunpack.c.l.b16 %v705
      %v734 = vunpack.c.l.b16 %v706
      %v735 = vpack.c.b16 %v732, %v731
      %v736 = vpack.c.b16 %v734, %v733
      %v740 = vsel %vm259, %v723, 0
      %v743 = vsel %vm259, %v724, 0
      %v746 = vsel %vm259, %v725, 0
      %v749 = vsel %vm259, %v726, 0
      %751 = vmatprep.subr.bf16.mxu0 0
      %752 = vmatpush1.bf16.msra.mxu0 0
      %753 = vmatprep.subr.bf16.mxu0 0
      %754 = vmatpush1.bf16.msra.mxu0 0
      %755 = vmatprep.subr.bf16.mxu0 0
      %756 = vmatpush1.bf16.msra.mxu0 0
      %757 = vmatprep.subr.bf16.mxu0 0
      %758 = vmatpush1.bf16.msra.mxu0 0
      %759 = vmatprep.subr.bf16.mxu0 0
      %760 = vmatpush1.bf16.msra.mxu0 0
      %761 = vmatprep.subr.bf16.mxu0 0
      %762 = vmatpush1.bf16.msra.mxu0 0
      %763 = vmatprep.subr.bf16.mxu0 0
      %764 = vmatpush1.bf16.msra.mxu0 %v736
      %765 = vmatprep.subr.bf16.mxu0 0
      %766 = vmatpush1.bf16.msra.mxu0 %v735
      %767 = vmatprep.subr.bf16.mxu0 0
      %768 = vmatpush2.bf16.msra.mxu0 0
      %769 = vmatprep.subr.bf16.mxu0 0
      %770 = vmatpush2.bf16.msra.mxu0 0
      %771 = vmatprep.subr.bf16.mxu0 0
      %772 = vmatpush2.bf16.msra.mxu0 0
      %773 = vmatprep.subr.bf16.mxu0 0
      %774 = vmatpush2.bf16.msra.mxu0 0
      %775 = vmatprep.subr.bf16.mxu0 0
      %776 = vmatpush2.bf16.msra.mxu0 0
      %777 = vmatprep.subr.bf16.mxu0 0
      %778 = vmatpush2.bf16.msra.mxu0 0
      %779 = vmatprep.subr.bf16.mxu0 0
      %780 = vmatpush2.bf16.msra.mxu0 0
      %781 = vmatprep.subr.bf16.mxu0 0
      %782 = vmatpush2.bf16.msra.mxu0 0
      %783 = vmatprep.mubr.bf16.mxu0 0
      %784 = vmatmul.mubr.bf16.gmra.mxu0 %v740
      %v785 = vpop.f32.mrf.mxu0
      %v786 = vadd.f32 0.0, %v785
      %v787 = vpop.f32.mrf.mxu0
      %v788 = vpop.f32.mrf.mxu0
      %v789 = vadd.f32 0.0, %v788
      %v790 = vpop.f32.mrf.mxu0
      %791 = vmatprep.mubr.bf16.mxu0 0
      %792 = vmatmul.mubr.bf16.gmra.mxu0 %v743
      %v793 = vpop.f32.mrf.mxu0
      %v794 = vadd.f32 0.0, %v793
      %v795 = vpop.f32.mrf.mxu0
      %v796 = vpop.f32.mrf.mxu0
      %v797 = vadd.f32 0.0, %v796
      %v798 = vpop.f32.mrf.mxu0
      %799 = vmatprep.mubr.bf16.mxu0 0
      %800 = vmatmul.mubr.bf16.gmra.mxu0 %v746
      %v801 = vpop.f32.mrf.mxu0
      %v802 = vadd.f32 0.0, %v801
      %v803 = vpop.f32.mrf.mxu0
      %v804 = vpop.f32.mrf.mxu0
      %v805 = vadd.f32 0.0, %v804
      %v806 = vpop.f32.mrf.mxu0
      %807 = vmatprep.mubr.bf16.mxu0 0
      %808 = vmatmul.mubr.bf16.gmra.mxu0 %v749
      %v809 = vpop.f32.mrf.mxu0
      %v810 = vadd.f32 0.0, %v809
      %v811 = vpop.f32.mrf.mxu0
      %v812 = vpop.f32.mrf.mxu0
      %v813 = vadd.f32 0.0, %v812
      %v814 = vpop.f32.mrf.mxu0
      %815 = vdwg.mxu0
      %v816 = vadd.f32 %v683, %v786
      %v817 = vadd.f32 %v684, %v789
      %v818 = vadd.f32 %v685, %v794
      %v819 = vadd.f32 %v686, %v797
      %v820 = vadd.f32 %v687, %v802
      %v821 = vadd.f32 %v688, %v805
      %v822 = vadd.f32 %v689, %v810
      %v823 = vadd.f32 %v690, %v813
      %s824 = sadd.s32 %s196, 54
      %s825 = smul.addr %s824, 4
      %s826 = scalar_lea.vmem %s183, %s825
      %v827 = vld [vmem:[%s826] sm:$0xf]
      %v828 = vld [vmem:[%s826 + $0x8] sm:$0xf]
      %v829 = vld [vmem:[%s826 + $0x10] sm:$0xf]
      %v830 = vld [vmem:[%s826 + $0x18] sm:$0xf]
      %v831 = vld [vmem:[%s826 + $0x20] sm:$0xf]
      %v832 = vld [vmem:[%s826 + $0x28] sm:$0xf]
      %v833 = vld [vmem:[%s826 + $0x30] sm:$0xf]
      %v834 = vld [vmem:[%s826 + $0x38] sm:$0xf]
      %s835 = scalar_lea.vmem %s1, 64
      %v836 = vld [vmem:[%s835] sm:$0xf]
      %v837 = vld [vmem:[%s835 + $0x4] sm:$0xf]
      %v838 = vld [vmem:[%s835 + $0x8] sm:$0xf]
      %v839 = vld [vmem:[%s835 + $0xc] sm:$0xf]
      %v848 = vunpack.c.l.b16 %v827
      %v849 = vunpack.c.l.b16 %v828
      %v850 = vunpack.c.l.b16 %v829
      %v851 = vunpack.c.l.b16 %v830
      %v852 = vunpack.c.l.b16 %v831
      %v853 = vunpack.c.l.b16 %v832
      %v854 = vunpack.c.l.b16 %v833
      %v855 = vunpack.c.l.b16 %v834
      %v856 = vpack.c.b16 %v849, %v848
      %v857 = vpack.c.b16 %v851, %v850
      %v858 = vpack.c.b16 %v853, %v852
      %v859 = vpack.c.b16 %v855, %v854
      %v864 = vunpack.c.l.b16 %v836
      %v865 = vunpack.c.l.b16 %v837
      %v866 = vunpack.c.l.b16 %v838
      %v867 = vunpack.c.l.b16 %v839
      %v868 = vpack.c.b16 %v865, %v864
      %v869 = vpack.c.b16 %v867, %v866
      %v873 = vsel %vm259, %v856, 0
      %v876 = vsel %vm259, %v857, 0
      %v879 = vsel %vm259, %v858, 0
      %v882 = vsel %vm259, %v859, 0
      %884 = vmatprep.subr.bf16.mxu0 0
      %885 = vmatpush1.bf16.msra.mxu0 0
      %886 = vmatprep.subr.bf16.mxu0 0
      %887 = vmatpush1.bf16.msra.mxu0 0
      %888 = vmatprep.subr.bf16.mxu0 0
      %889 = vmatpush1.bf16.msra.mxu0 0
      %890 = vmatprep.subr.bf16.mxu0 0
      %891 = vmatpush1.bf16.msra.mxu0 0
      %892 = vmatprep.subr.bf16.mxu0 0
      %893 = vmatpush1.bf16.msra.mxu0 0
      %894 = vmatprep.subr.bf16.mxu0 0
      %895 = vmatpush1.bf16.msra.mxu0 0
      %896 = vmatprep.subr.bf16.mxu0 0
      %897 = vmatpush1.bf16.msra.mxu0 %v869
      %898 = vmatprep.subr.bf16.mxu0 0
      %899 = vmatpush1.bf16.msra.mxu0 %v868
      %900 = vmatprep.subr.bf16.mxu0 0
      %901 = vmatpush2.bf16.msra.mxu0 0
      %902 = vmatprep.subr.bf16.mxu0 0
      %903 = vmatpush2.bf16.msra.mxu0 0
      %904 = vmatprep.subr.bf16.mxu0 0
      %905 = vmatpush2.bf16.msra.mxu0 0
      %906 = vmatprep.subr.bf16.mxu0 0
      %907 = vmatpush2.bf16.msra.mxu0 0
      %908 = vmatprep.subr.bf16.mxu0 0
      %909 = vmatpush2.bf16.msra.mxu0 0
      %910 = vmatprep.subr.bf16.mxu0 0
      %911 = vmatpush2.bf16.msra.mxu0 0
      %912 = vmatprep.subr.bf16.mxu0 0
      %913 = vmatpush2.bf16.msra.mxu0 0
      %914 = vmatprep.subr.bf16.mxu0 0
      %915 = vmatpush2.bf16.msra.mxu0 0
      %916 = vmatprep.mubr.bf16.mxu0 0
      %917 = vmatmul.mubr.bf16.gmra.mxu0 %v873
      %v918 = vpop.f32.mrf.mxu0
      %v919 = vadd.f32 0.0, %v918
      %v920 = vpop.f32.mrf.mxu0
      %v921 = vpop.f32.mrf.mxu0
      %v922 = vadd.f32 0.0, %v921
      %v923 = vpop.f32.mrf.mxu0
      %924 = vmatprep.mubr.bf16.mxu0 0
      %925 = vmatmul.mubr.bf16.gmra.mxu0 %v876
      %v926 = vpop.f32.mrf.mxu0
      %v927 = vadd.f32 0.0, %v926
      %v928 = vpop.f32.mrf.mxu0
      %v929 = vpop.f32.mrf.mxu0
      %v930 = vadd.f32 0.0, %v929
      %v931 = vpop.f32.mrf.mxu0
      %932 = vmatprep.mubr.bf16.mxu0 0
      %933 = vmatmul.mubr.bf16.gmra.mxu0 %v879
      %v934 = vpop.f32.mrf.mxu0
      %v935 = vadd.f32 0.0, %v934
      %v936 = vpop.f32.mrf.mxu0
      %v937 = vpop.f32.mrf.mxu0
      %v938 = vadd.f32 0.0, %v937
      %v939 = vpop.f32.mrf.mxu0
      %940 = vmatprep.mubr.bf16.mxu0 0
      %941 = vmatmul.mubr.bf16.gmra.mxu0 %v882
      %v942 = vpop.f32.mrf.mxu0
      %v943 = vadd.f32 0.0, %v942
      %v944 = vpop.f32.mrf.mxu0
      %v945 = vpop.f32.mrf.mxu0
      %v946 = vadd.f32 0.0, %v945
      %v947 = vpop.f32.mrf.mxu0
      %948 = vdwg.mxu0
      %v949 = vadd.f32 %v816, %v919
      %v950 = vadd.f32 %v817, %v922
      %v951 = vadd.f32 %v818, %v927
      %v952 = vadd.f32 %v819, %v930
      %v953 = vadd.f32 %v820, %v935
      %v954 = vadd.f32 %v821, %v938
      %v955 = vadd.f32 %v822, %v943
      %v956 = vadd.f32 %v823, %v946
      %v957 = vld [vmem:[%s693] sm:$0xf]
      %v958 = vld [vmem:[%s693 + $0x4] sm:$0x1]
      %v959 = vld [vmem:[%s693 + $0x8] sm:$0xf]
      %v960 = vld [vmem:[%s693 + $0xc] sm:$0x1]
      %v961 = vld [vmem:[%s693 + $0x10] sm:$0xf]
      %v962 = vld [vmem:[%s693 + $0x14] sm:$0x1]
      %v963 = vld [vmem:[%s693 + $0x18] sm:$0xf]
      %v964 = vld [vmem:[%s693 + $0x1c] sm:$0x1]
      %v965 = vld [vmem:[%s693 + $0x20] sm:$0xf]
      %v966 = vld [vmem:[%s693 + $0x24] sm:$0x1]
      %v967 = vld [vmem:[%s693 + $0x28] sm:$0xf]
      %v968 = vld [vmem:[%s693 + $0x2c] sm:$0x1]
      %v969 = vld [vmem:[%s693 + $0x30] sm:$0xf]
      %v970 = vld [vmem:[%s693 + $0x34] sm:$0x1]
      %v971 = vld [vmem:[%s693 + $0x38] sm:$0xf]
      %v972 = vld [vmem:[%s693 + $0x3c] sm:$0x1]
      %v974 = vshrl.u32 %v957, 16
      %v976 = vrot.slane %v974, 4
      %v977 = vshll.u32 %v957, 16
      %v979 = vrot.slane %v977, 5
      %v980 = vor.u32 %v976, %v979
      %v981 = vrot.slane %v980, 4
      %v983 = vshll.u32 %v958, 16
      %v985 = vrot.slane %v983, 5
      %v986 = vsel %vm464, %v981, %v985
      %v988 = vshrl.u32 %v959, 16
      %v990 = vrot.slane %v988, 4
      %v991 = vshll.u32 %v959, 16
      %v993 = vrot.slane %v991, 5
      %v994 = vor.u32 %v990, %v993
      %v995 = vrot.slane %v994, 4
      %v997 = vshll.u32 %v960, 16
      %v999 = vrot.slane %v997, 5
      %v1000 = vsel %vm464, %v995, %v999
      %v1002 = vshrl.u32 %v961, 16
      %v1004 = vrot.slane %v1002, 4
      %v1005 = vshll.u32 %v961, 16
      %v1007 = vrot.slane %v1005, 5
      %v1008 = vor.u32 %v1004, %v1007
      %v1009 = vrot.slane %v1008, 4
      %v1011 = vshll.u32 %v962, 16
      %v1013 = vrot.slane %v1011, 5
      %v1014 = vsel %vm464, %v1009, %v1013
      %v1016 = vshrl.u32 %v963, 16
      %v1018 = vrot.slane %v1016, 4
      %v1019 = vshll.u32 %v963, 16
      %v1021 = vrot.slane %v1019, 5
      %v1022 = vor.u32 %v1018, %v1021
      %v1023 = vrot.slane %v1022, 4
      %v1025 = vshll.u32 %v964, 16
      %v1027 = vrot.slane %v1025, 5
      %v1028 = vsel %vm464, %v1023, %v1027
      %v1030 = vshrl.u32 %v965, 16
      %v1032 = vrot.slane %v1030, 4
      %v1033 = vshll.u32 %v965, 16
      %v1035 = vrot.slane %v1033, 5
      %v1036 = vor.u32 %v1032, %v1035
      %v1037 = vrot.slane %v1036, 4
      %v1039 = vshll.u32 %v966, 16
      %v1041 = vrot.slane %v1039, 5
      %v1042 = vsel %vm464, %v1037, %v1041
      %v1044 = vshrl.u32 %v967, 16
      %v1046 = vrot.slane %v1044, 4
      %v1047 = vshll.u32 %v967, 16
      %v1049 = vrot.slane %v1047, 5
      %v1050 = vor.u32 %v1046, %v1049
      %v1051 = vrot.slane %v1050, 4
      %v1053 = vshll.u32 %v968, 16
      %v1055 = vrot.slane %v1053, 5
      %v1056 = vsel %vm464, %v1051, %v1055
      %v1058 = vshrl.u32 %v969, 16
      %v1060 = vrot.slane %v1058, 4
      %v1061 = vshll.u32 %v969, 16
      %v1063 = vrot.slane %v1061, 5
      %v1064 = vor.u32 %v1060, %v1063
      %v1065 = vrot.slane %v1064, 4
      %v1067 = vshll.u32 %v970, 16
      %v1069 = vrot.slane %v1067, 5
      %v1070 = vsel %vm464, %v1065, %v1069
      %v1072 = vshrl.u32 %v971, 16
      %v1074 = vrot.slane %v1072, 4
      %v1075 = vshll.u32 %v971, 16
      %v1077 = vrot.slane %v1075, 5
      %v1078 = vor.u32 %v1074, %v1077
      %v1079 = vrot.slane %v1078, 4
      %v1081 = vshll.u32 %v972, 16
      %v1083 = vrot.slane %v1081, 5
      %v1084 = vsel %vm464, %v1079, %v1083
      %s1085 = scalar_lea.vmem %s1, 80
      %v1086 = vld [vmem:[%s1085] sm:$0xf]
      %v1087 = vld [vmem:[%s1085 + $0x4] sm:$0xf]
      %v1088 = vld [vmem:[%s1085 + $0x8] sm:$0xf]
      %v1089 = vld [vmem:[%s1085 + $0xc] sm:$0xf]
      %v1090 = vunpack.c.l.b16 %v986
      %v1091 = vunpack.c.l.b16 %v1000
      %v1092 = vunpack.c.l.b16 %v1014
      %v1093 = vunpack.c.l.b16 %v1028
      %v1094 = vunpack.c.l.b16 %v1042
      %v1095 = vunpack.c.l.b16 %v1056
      %v1096 = vunpack.c.l.b16 %v1070
      %v1097 = vunpack.c.l.b16 %v1084
      %v1098 = vpack.c.b16 %v1091, %v1090
      %v1099 = vpack.c.b16 %v1093, %v1092
      %v1100 = vpack.c.b16 %v1095, %v1094
      %v1101 = vpack.c.b16 %v1097, %v1096
      %v1106 = vunpack.c.l.b16 %v1086
      %v1107 = vunpack.c.l.b16 %v1087
      %v1108 = vunpack.c.l.b16 %v1088
      %v1109 = vunpack.c.l.b16 %v1089
      %v1110 = vpack.c.b16 %v1107, %v1106
      %v1111 = vpack.c.b16 %v1109, %v1108
      %v1115 = vsel %vm259, %v1098, 0
      %v1118 = vsel %vm259, %v1099, 0
      %v1121 = vsel %vm259, %v1100, 0
      %v1124 = vsel %vm259, %v1101, 0
      %1126 = vmatprep.subr.bf16.mxu0 0
      %1127 = vmatpush1.bf16.msra.mxu0 0
      %1128 = vmatprep.subr.bf16.mxu0 0
      %1129 = vmatpush1.bf16.msra.mxu0 0
      %1130 = vmatprep.subr.bf16.mxu0 0
      %1131 = vmatpush1.bf16.msra.mxu0 0
      %1132 = vmatprep.subr.bf16.mxu0 0
      %1133 = vmatpush1.bf16.msra.mxu0 0
      %1134 = vmatprep.subr.bf16.mxu0 0
      %1135 = vmatpush1.bf16.msra.mxu0 0
      %1136 = vmatprep.subr.bf16.mxu0 0
      %1137 = vmatpush1.bf16.msra.mxu0 0
      %1138 = vmatprep.subr.bf16.mxu0 0
      %1139 = vmatpush1.bf16.msra.mxu0 %v1111
      %1140 = vmatprep.subr.bf16.mxu0 0
      %1141 = vmatpush1.bf16.msra.mxu0 %v1110
      %1142 = vmatprep.subr.bf16.mxu0 0
      %1143 = vmatpush2.bf16.msra.mxu0 0
      %1144 = vmatprep.subr.bf16.mxu0 0
      %1145 = vmatpush2.bf16.msra.mxu0 0
      %1146 = vmatprep.subr.bf16.mxu0 0
      %1147 = vmatpush2.bf16.msra.mxu0 0
      %1148 = vmatprep.subr.bf16.mxu0 0
      %1149 = vmatpush2.bf16.msra.mxu0 0
      %1150 = vmatprep.subr.bf16.mxu0 0
      %1151 = vmatpush2.bf16.msra.mxu0 0
      %1152 = vmatprep.subr.bf16.mxu0 0
      %1153 = vmatpush2.bf16.msra.mxu0 0
      %1154 = vmatprep.subr.bf16.mxu0 0
      %1155 = vmatpush2.bf16.msra.mxu0 0
      %1156 = vmatprep.subr.bf16.mxu0 0
      %1157 = vmatpush2.bf16.msra.mxu0 0
      %1158 = vmatprep.mubr.bf16.mxu0 0
      %1159 = vmatmul.mubr.bf16.gmra.mxu0 %v1115
      %v1160 = vpop.f32.mrf.mxu0
      %v1161 = vadd.f32 0.0, %v1160
      %v1162 = vpop.f32.mrf.mxu0
      %v1163 = vpop.f32.mrf.mxu0
      %v1164 = vadd.f32 0.0, %v1163
      %v1165 = vpop.f32.mrf.mxu0
      %1166 = vmatprep.mubr.bf16.mxu0 0
      %1167 = vmatmul.mubr.bf16.gmra.mxu0 %v1118
      %v1168 = vpop.f32.mrf.mxu0
      %v1169 = vadd.f32 0.0, %v1168
      %v1170 = vpop.f32.mrf.mxu0
      %v1171 = vpop.f32.mrf.mxu0
      %v1172 = vadd.f32 0.0, %v1171
      %v1173 = vpop.f32.mrf.mxu0
      %1174 = vmatprep.mubr.bf16.mxu0 0
      %1175 = vmatmul.mubr.bf16.gmra.mxu0 %v1121
      %v1176 = vpop.f32.mrf.mxu0
      %v1177 = vadd.f32 0.0, %v1176
      %v1178 = vpop.f32.mrf.mxu0
      %v1179 = vpop.f32.mrf.mxu0
      %v1180 = vadd.f32 0.0, %v1179
      %v1181 = vpop.f32.mrf.mxu0
      %1182 = vmatprep.mubr.bf16.mxu0 0
      %1183 = vmatmul.mubr.bf16.gmra.mxu0 %v1124
      %v1184 = vpop.f32.mrf.mxu0
      %v1185 = vadd.f32 0.0, %v1184
      %v1186 = vpop.f32.mrf.mxu0
      %v1187 = vpop.f32.mrf.mxu0
      %v1188 = vadd.f32 0.0, %v1187
      %v1189 = vpop.f32.mrf.mxu0
      %1190 = vdwg.mxu0
      %v1191 = vadd.f32 %v949, %v1161
      %v1192 = vadd.f32 %v950, %v1164
      %v1193 = vadd.f32 %v951, %v1169
      %v1194 = vadd.f32 %v952, %v1172
      %v1195 = vadd.f32 %v953, %v1177
      %v1196 = vadd.f32 %v954, %v1180
      %v1197 = vadd.f32 %v955, %v1185
      %v1198 = vadd.f32 %v956, %v1188
      %s1199 = sadd.s32 %s195, 1
      %s1200 = smul.u32 %s1199, 2
      %s1201 = smul.addr %s1200, 4
      %s1202 = scalar_lea.vmem %s183, %s1201
      %v1203 = vld [vmem:[%s1202] sm:$0xf]
      %v1204 = vld [vmem:[%s1202 + $0x8] sm:$0xf]
      %v1205 = vld [vmem:[%s1202 + $0x10] sm:$0xf]
      %v1206 = vld [vmem:[%s1202 + $0x18] sm:$0xf]
      %v1207 = vld [vmem:[%s1202 + $0x20] sm:$0xf]
      %v1208 = vld [vmem:[%s1202 + $0x28] sm:$0xf]
      %v1209 = vld [vmem:[%s1202 + $0x30] sm:$0xf]
      %v1210 = vld [vmem:[%s1202 + $0x38] sm:$0xf]
      %s1211 = scalar_lea.vmem %s1, 96
      %v1212 = vld [vmem:[%s1211] sm:$0xf]
      %v1213 = vld [vmem:[%s1211 + $0x4] sm:$0xf]
      %v1214 = vld [vmem:[%s1211 + $0x8] sm:$0xf]
      %v1215 = vld [vmem:[%s1211 + $0xc] sm:$0xf]
      %v1224 = vunpack.c.l.b16 %v1203
      %v1225 = vunpack.c.l.b16 %v1204
      %v1226 = vunpack.c.l.b16 %v1205
      %v1227 = vunpack.c.l.b16 %v1206
      %v1228 = vunpack.c.l.b16 %v1207
      %v1229 = vunpack.c.l.b16 %v1208
      %v1230 = vunpack.c.l.b16 %v1209
      %v1231 = vunpack.c.l.b16 %v1210
      %v1232 = vpack.c.b16 %v1225, %v1224
      %v1233 = vpack.c.b16 %v1227, %v1226
      %v1234 = vpack.c.b16 %v1229, %v1228
      %v1235 = vpack.c.b16 %v1231, %v1230
      %v1240 = vunpack.c.l.b16 %v1212
      %v1241 = vunpack.c.l.b16 %v1213
      %v1242 = vunpack.c.l.b16 %v1214
      %v1243 = vunpack.c.l.b16 %v1215
      %v1244 = vpack.c.b16 %v1241, %v1240
      %v1245 = vpack.c.b16 %v1243, %v1242
      %v1249 = vsel %vm259, %v1232, 0
      %v1252 = vsel %vm259, %v1233, 0
      %v1255 = vsel %vm259, %v1234, 0
      %v1258 = vsel %vm259, %v1235, 0
      %1260 = vmatprep.subr.bf16.mxu0 0
      %1261 = vmatpush1.bf16.msra.mxu0 0
      %1262 = vmatprep.subr.bf16.mxu0 0
      %1263 = vmatpush1.bf16.msra.mxu0 0
      %1264 = vmatprep.subr.bf16.mxu0 0
      %1265 = vmatpush1.bf16.msra.mxu0 0
      %1266 = vmatprep.subr.bf16.mxu0 0
      %1267 = vmatpush1.bf16.msra.mxu0 0
      %1268 = vmatprep.subr.bf16.mxu0 0
      %1269 = vmatpush1.bf16.msra.mxu0 0
      %1270 = vmatprep.subr.bf16.mxu0 0
      %1271 = vmatpush1.bf16.msra.mxu0 0
      %1272 = vmatprep.subr.bf16.mxu0 0
      %1273 = vmatpush1.bf16.msra.mxu0 %v1245
      %1274 = vmatprep.subr.bf16.mxu0 0
      %1275 = vmatpush1.bf16.msra.mxu0 %v1244
      %1276 = vmatprep.subr.bf16.mxu0 0
      %1277 = vmatpush2.bf16.msra.mxu0 0
      %1278 = vmatprep.subr.bf16.mxu0 0
      %1279 = vmatpush2.bf16.msra.mxu0 0
      %1280 = vmatprep.subr.bf16.mxu0 0
      %1281 = vmatpush2.bf16.msra.mxu0 0
      %1282 = vmatprep.subr.bf16.mxu0 0
      %1283 = vmatpush2.bf16.msra.mxu0 0
      %1284 = vmatprep.subr.bf16.mxu0 0
      %1285 = vmatpush2.bf16.msra.mxu0 0
      %1286 = vmatprep.subr.bf16.mxu0 0
      %1287 = vmatpush2.bf16.msra.mxu0 0
      %1288 = vmatprep.subr.bf16.mxu0 0
      %1289 = vmatpush2.bf16.msra.mxu0 0
      %1290 = vmatprep.subr.bf16.mxu0 0
      %1291 = vmatpush2.bf16.msra.mxu0 0
      %1292 = vmatprep.mubr.bf16.mxu0 0
      %1293 = vmatmul.mubr.bf16.gmra.mxu0 %v1249
      %v1294 = vpop.f32.mrf.mxu0
      %v1295 = vadd.f32 0.0, %v1294
      %v1296 = vpop.f32.mrf.mxu0
      %v1297 = vpop.f32.mrf.mxu0
      %v1298 = vadd.f32 0.0, %v1297
      %v1299 = vpop.f32.mrf.mxu0
      %1300 = vmatprep.mubr.bf16.mxu0 0
      %1301 = vmatmul.mubr.bf16.gmra.mxu0 %v1252
      %v1302 = vpop.f32.mrf.mxu0
      %v1303 = vadd.f32 0.0, %v1302
      %v1304 = vpop.f32.mrf.mxu0
      %v1305 = vpop.f32.mrf.mxu0
      %v1306 = vadd.f32 0.0, %v1305
      %v1307 = vpop.f32.mrf.mxu0
      %1308 = vmatprep.mubr.bf16.mxu0 0
      %1309 = vmatmul.mubr.bf16.gmra.mxu0 %v1255
      %v1310 = vpop.f32.mrf.mxu0
      %v1311 = vadd.f32 0.0, %v1310
      %v1312 = vpop.f32.mrf.mxu0
      %v1313 = vpop.f32.mrf.mxu0
      %v1314 = vadd.f32 0.0, %v1313
      %v1315 = vpop.f32.mrf.mxu0
      %1316 = vmatprep.mubr.bf16.mxu0 0
      %1317 = vmatmul.mubr.bf16.gmra.mxu0 %v1258
      %v1318 = vpop.f32.mrf.mxu0
      %v1319 = vadd.f32 0.0, %v1318
      %v1320 = vpop.f32.mrf.mxu0
      %v1321 = vpop.f32.mrf.mxu0
      %v1322 = vadd.f32 0.0, %v1321
      %v1323 = vpop.f32.mrf.mxu0
      %1324 = vdwg.mxu0
      %v1325 = vadd.f32 %v1191, %v1295
      %v1326 = vadd.f32 %v1192, %v1298
      %v1327 = vadd.f32 %v1193, %v1303
      %v1328 = vadd.f32 %v1194, %v1306
      %v1329 = vadd.f32 %v1195, %v1311
      %v1330 = vadd.f32 %v1196, %v1314
      %v1331 = vadd.f32 %v1197, %v1319
      %v1332 = vadd.f32 %v1198, %v1322
      %s1333 = sadd.s32 %s1200, 18
      %s1334 = smul.addr %s1333, 4
      %s1335 = scalar_lea.vmem %s183, %s1334
      %v1336 = vld [vmem:[%s1335] sm:$0xf]
      %v1337 = vld [vmem:[%s1335 + $0x8] sm:$0xf]
      %v1338 = vld [vmem:[%s1335 + $0x10] sm:$0xf]
      %v1339 = vld [vmem:[%s1335 + $0x18] sm:$0xf]
      %v1340 = vld [vmem:[%s1335 + $0x20] sm:$0xf]
      %v1341 = vld [vmem:[%s1335 + $0x28] sm:$0xf]
      %v1342 = vld [vmem:[%s1335 + $0x30] sm:$0xf]
      %v1343 = vld [vmem:[%s1335 + $0x38] sm:$0xf]
      %s1344 = scalar_lea.vmem %s1, 112
      %v1345 = vld [vmem:[%s1344] sm:$0xf]
      %v1346 = vld [vmem:[%s1344 + $0x4] sm:$0xf]
      %v1347 = vld [vmem:[%s1344 + $0x8] sm:$0xf]
      %v1348 = vld [vmem:[%s1344 + $0xc] sm:$0xf]
      %v1357 = vunpack.c.l.b16 %v1336
      %v1358 = vunpack.c.l.b16 %v1337
      %v1359 = vunpack.c.l.b16 %v1338
      %v1360 = vunpack.c.l.b16 %v1339
      %v1361 = vunpack.c.l.b16 %v1340
      %v1362 = vunpack.c.l.b16 %v1341
      %v1363 = vunpack.c.l.b16 %v1342
      %v1364 = vunpack.c.l.b16 %v1343
      %v1365 = vpack.c.b16 %v1358, %v1357
      %v1366 = vpack.c.b16 %v1360, %v1359
      %v1367 = vpack.c.b16 %v1362, %v1361
      %v1368 = vpack.c.b16 %v1364, %v1363
      %v1373 = vunpack.c.l.b16 %v1345
      %v1374 = vunpack.c.l.b16 %v1346
      %v1375 = vunpack.c.l.b16 %v1347
      %v1376 = vunpack.c.l.b16 %v1348
      %v1377 = vpack.c.b16 %v1374, %v1373
      %v1378 = vpack.c.b16 %v1376, %v1375
      %v1382 = vsel %vm259, %v1365, 0
      %v1385 = vsel %vm259, %v1366, 0
      %v1388 = vsel %vm259, %v1367, 0
      %v1391 = vsel %vm259, %v1368, 0
      %1393 = vmatprep.subr.bf16.mxu0 0
      %1394 = vmatpush1.bf16.msra.mxu0 0
      %1395 = vmatprep.subr.bf16.mxu0 0
      %1396 = vmatpush1.bf16.msra.mxu0 0
      %1397 = vmatprep.subr.bf16.mxu0 0
      %1398 = vmatpush1.bf16.msra.mxu0 0
      %1399 = vmatprep.subr.bf16.mxu0 0
      %1400 = vmatpush1.bf16.msra.mxu0 0
      %1401 = vmatprep.subr.bf16.mxu0 0
      %1402 = vmatpush1.bf16.msra.mxu0 0
      %1403 = vmatprep.subr.bf16.mxu0 0
      %1404 = vmatpush1.bf16.msra.mxu0 0
      %1405 = vmatprep.subr.bf16.mxu0 0
      %1406 = vmatpush1.bf16.msra.mxu0 %v1378
      %1407 = vmatprep.subr.bf16.mxu0 0
      %1408 = vmatpush1.bf16.msra.mxu0 %v1377
      %1409 = vmatprep.subr.bf16.mxu0 0
      %1410 = vmatpush2.bf16.msra.mxu0 0
      %1411 = vmatprep.subr.bf16.mxu0 0
      %1412 = vmatpush2.bf16.msra.mxu0 0
      %1413 = vmatprep.subr.bf16.mxu0 0
      %1414 = vmatpush2.bf16.msra.mxu0 0
      %1415 = vmatprep.subr.bf16.mxu0 0
      %1416 = vmatpush2.bf16.msra.mxu0 0
      %1417 = vmatprep.subr.bf16.mxu0 0
      %1418 = vmatpush2.bf16.msra.mxu0 0
      %1419 = vmatprep.subr.bf16.mxu0 0
      %1420 = vmatpush2.bf16.msra.mxu0 0
      %1421 = vmatprep.subr.bf16.mxu0 0
      %1422 = vmatpush2.bf16.msra.mxu0 0
      %1423 = vmatprep.subr.bf16.mxu0 0
      %1424 = vmatpush2.bf16.msra.mxu0 0
      %1425 = vmatprep.mubr.bf16.mxu0 0
      %1426 = vmatmul.mubr.bf16.gmra.mxu0 %v1382
      %v1427 = vpop.f32.mrf.mxu0
      %v1428 = vadd.f32 0.0, %v1427
      %v1429 = vpop.f32.mrf.mxu0
      %v1430 = vpop.f32.mrf.mxu0
      %v1431 = vadd.f32 0.0, %v1430
      %v1432 = vpop.f32.mrf.mxu0
      %1433 = vmatprep.mubr.bf16.mxu0 0
      %1434 = vmatmul.mubr.bf16.gmra.mxu0 %v1385
      %v1435 = vpop.f32.mrf.mxu0
      %v1436 = vadd.f32 0.0, %v1435
      %v1437 = vpop.f32.mrf.mxu0
      %v1438 = vpop.f32.mrf.mxu0
      %v1439 = vadd.f32 0.0, %v1438
      %v1440 = vpop.f32.mrf.mxu0
      %1441 = vmatprep.mubr.bf16.mxu0 0
      %1442 = vmatmul.mubr.bf16.gmra.mxu0 %v1388
      %v1443 = vpop.f32.mrf.mxu0
      %v1444 = vadd.f32 0.0, %v1443
      %v1445 = vpop.f32.mrf.mxu0
      %v1446 = vpop.f32.mrf.mxu0
      %v1447 = vadd.f32 0.0, %v1446
      %v1448 = vpop.f32.mrf.mxu0
      %1449 = vmatprep.mubr.bf16.mxu0 0
      %1450 = vmatmul.mubr.bf16.gmra.mxu0 %v1391
      %v1451 = vpop.f32.mrf.mxu0
      %v1452 = vadd.f32 0.0, %v1451
      %v1453 = vpop.f32.mrf.mxu0
      %v1454 = vpop.f32.mrf.mxu0
      %v1455 = vadd.f32 0.0, %v1454
      %v1456 = vpop.f32.mrf.mxu0
      %1457 = vdwg.mxu0
      %v1458 = vadd.f32 %v1325, %v1428
      %v1459 = vadd.f32 %v1326, %v1431
      %v1460 = vadd.f32 %v1327, %v1436
      %v1461 = vadd.f32 %v1328, %v1439
      %v1462 = vadd.f32 %v1329, %v1444
      %v1463 = vadd.f32 %v1330, %v1447
      %v1464 = vadd.f32 %v1331, %v1452
      %v1465 = vadd.f32 %v1332, %v1455
      %v1466 = vld [vmem:[%s1202] sm:$0xf]
      %v1467 = vld [vmem:[%s1202 + $0x4] sm:$0x1]
      %v1468 = vld [vmem:[%s1202 + $0x8] sm:$0xf]
      %v1469 = vld [vmem:[%s1202 + $0xc] sm:$0x1]
      %v1470 = vld [vmem:[%s1202 + $0x10] sm:$0xf]
      %v1471 = vld [vmem:[%s1202 + $0x14] sm:$0x1]
      %v1472 = vld [vmem:[%s1202 + $0x18] sm:$0xf]
      %v1473 = vld [vmem:[%s1202 + $0x1c] sm:$0x1]
      %v1474 = vld [vmem:[%s1202 + $0x20] sm:$0xf]
      %v1475 = vld [vmem:[%s1202 + $0x24] sm:$0x1]
      %v1476 = vld [vmem:[%s1202 + $0x28] sm:$0xf]
      %v1477 = vld [vmem:[%s1202 + $0x2c] sm:$0x1]
      %v1478 = vld [vmem:[%s1202 + $0x30] sm:$0xf]
      %v1479 = vld [vmem:[%s1202 + $0x34] sm:$0x1]
      %v1480 = vld [vmem:[%s1202 + $0x38] sm:$0xf]
      %v1481 = vld [vmem:[%s1202 + $0x3c] sm:$0x1]
      %v1483 = vshrl.u32 %v1466, 16
      %v1485 = vrot.slane %v1483, 4
      %v1486 = vshll.u32 %v1466, 16
      %v1488 = vrot.slane %v1486, 5
      %v1489 = vor.u32 %v1485, %v1488
      %v1490 = vrot.slane %v1489, 4
      %v1492 = vshll.u32 %v1467, 16
      %v1494 = vrot.slane %v1492, 5
      %v1495 = vsel %vm464, %v1490, %v1494
      %v1497 = vshrl.u32 %v1468, 16
      %v1499 = vrot.slane %v1497, 4
      %v1500 = vshll.u32 %v1468, 16
      %v1502 = vrot.slane %v1500, 5
      %v1503 = vor.u32 %v1499, %v1502
      %v1504 = vrot.slane %v1503, 4
      %v1506 = vshll.u32 %v1469, 16
      %v1508 = vrot.slane %v1506, 5
      %v1509 = vsel %vm464, %v1504, %v1508
      %v1511 = vshrl.u32 %v1470, 16
      %v1513 = vrot.slane %v1511, 4
      %v1514 = vshll.u32 %v1470, 16
      %v1516 = vrot.slane %v1514, 5
      %v1517 = vor.u32 %v1513, %v1516
      %v1518 = vrot.slane %v1517, 4
      %v1520 = vshll.u32 %v1471, 16
      %v1522 = vrot.slane %v1520, 5
      %v1523 = vsel %vm464, %v1518, %v1522
      %v1525 = vshrl.u32 %v1472, 16
      %v1527 = vrot.slane %v1525, 4
      %v1528 = vshll.u32 %v1472, 16
      %v1530 = vrot.slane %v1528, 5
      %v1531 = vor.u32 %v1527, %v1530
      %v1532 = vrot.slane %v1531, 4
      %v1534 = vshll.u32 %v1473, 16
      %v1536 = vrot.slane %v1534, 5
      %v1537 = vsel %vm464, %v1532, %v1536
      %v1539 = vshrl.u32 %v1474, 16
      %v1541 = vrot.slane %v1539, 4
      %v1542 = vshll.u32 %v1474, 16
      %v1544 = vrot.slane %v1542, 5
      %v1545 = vor.u32 %v1541, %v1544
      %v1546 = vrot.slane %v1545, 4
      %v1548 = vshll.u32 %v1475, 16
      %v1550 = vrot.slane %v1548, 5
      %v1551 = vsel %vm464, %v1546, %v1550
      %v1553 = vshrl.u32 %v1476, 16
      %v1555 = vrot.slane %v1553, 4
      %v1556 = vshll.u32 %v1476, 16
      %v1558 = vrot.slane %v1556, 5
      %v1559 = vor.u32 %v1555, %v1558
      %v1560 = vrot.slane %v1559, 4
      %v1562 = vshll.u32 %v1477, 16
      %v1564 = vrot.slane %v1562, 5
      %v1565 = vsel %vm464, %v1560, %v1564
      %v1567 = vshrl.u32 %v1478, 16
      %v1569 = vrot.slane %v1567, 4
      %v1570 = vshll.u32 %v1478, 16
      %v1572 = vrot.slane %v1570, 5
      %v1573 = vor.u32 %v1569, %v1572
      %v1574 = vrot.slane %v1573, 4
      %v1576 = vshll.u32 %v1479, 16
      %v1578 = vrot.slane %v1576, 5
      %v1579 = vsel %vm464, %v1574, %v1578
      %v1581 = vshrl.u32 %v1480, 16
      %v1583 = vrot.slane %v1581, 4
      %v1584 = vshll.u32 %v1480, 16
      %v1586 = vrot.slane %v1584, 5
      %v1587 = vor.u32 %v1583, %v1586
      %v1588 = vrot.slane %v1587, 4
      %v1590 = vshll.u32 %v1481, 16
      %v1592 = vrot.slane %v1590, 5
      %v1593 = vsel %vm464, %v1588, %v1592
      %s1594 = scalar_lea.vmem %s1, 128
      %v1595 = vld [vmem:[%s1594] sm:$0xf]
      %v1596 = vld [vmem:[%s1594 + $0x4] sm:$0xf]
      %v1597 = vld [vmem:[%s1594 + $0x8] sm:$0xf]
      %v1598 = vld [vmem:[%s1594 + $0xc] sm:$0xf]
      %v1599 = vunpack.c.l.b16 %v1495
      %v1600 = vunpack.c.l.b16 %v1509
      %v1601 = vunpack.c.l.b16 %v1523
      %v1602 = vunpack.c.l.b16 %v1537
      %v1603 = vunpack.c.l.b16 %v1551
      %v1604 = vunpack.c.l.b16 %v1565
      %v1605 = vunpack.c.l.b16 %v1579
      %v1606 = vunpack.c.l.b16 %v1593
      %v1607 = vpack.c.b16 %v1600, %v1599
      %v1608 = vpack.c.b16 %v1602, %v1601
      %v1609 = vpack.c.b16 %v1604, %v1603
      %v1610 = vpack.c.b16 %v1606, %v1605
      %v1615 = vunpack.c.l.b16 %v1595
      %v1616 = vunpack.c.l.b16 %v1596
      %v1617 = vunpack.c.l.b16 %v1597
      %v1618 = vunpack.c.l.b16 %v1598
      %v1619 = vpack.c.b16 %v1616, %v1615
      %v1620 = vpack.c.b16 %v1618, %v1617
      %v1624 = vsel %vm259, %v1607, 0
      %v1627 = vsel %vm259, %v1608, 0
      %v1630 = vsel %vm259, %v1609, 0
      %v1633 = vsel %vm259, %v1610, 0
      %1635 = vmatprep.subr.bf16.mxu0 0
      %1636 = vmatpush1.bf16.msra.mxu0 0
      %1637 = vmatprep.subr.bf16.mxu0 0
      %1638 = vmatpush1.bf16.msra.mxu0 0
      %1639 = vmatprep.subr.bf16.mxu0 0
      %1640 = vmatpush1.bf16.msra.mxu0 0
      %1641 = vmatprep.subr.bf16.mxu0 0
      %1642 = vmatpush1.bf16.msra.mxu0 0
      %1643 = vmatprep.subr.bf16.mxu0 0
      %1644 = vmatpush1.bf16.msra.mxu0 0
      %1645 = vmatprep.subr.bf16.mxu0 0
      %1646 = vmatpush1.bf16.msra.mxu0 0
      %1647 = vmatprep.subr.bf16.mxu0 0
      %1648 = vmatpush1.bf16.msra.mxu0 %v1620
      %1649 = vmatprep.subr.bf16.mxu0 0
      %1650 = vmatpush1.bf16.msra.mxu0 %v1619
      %1651 = vmatprep.subr.bf16.mxu0 0
      %1652 = vmatpush2.bf16.msra.mxu0 0
      %1653 = vmatprep.subr.bf16.mxu0 0
      %1654 = vmatpush2.bf16.msra.mxu0 0
      %1655 = vmatprep.subr.bf16.mxu0 0
      %1656 = vmatpush2.bf16.msra.mxu0 0
      %1657 = vmatprep.subr.bf16.mxu0 0
      %1658 = vmatpush2.bf16.msra.mxu0 0
      %1659 = vmatprep.subr.bf16.mxu0 0
      %1660 = vmatpush2.bf16.msra.mxu0 0
      %1661 = vmatprep.subr.bf16.mxu0 0
      %1662 = vmatpush2.bf16.msra.mxu0 0
      %1663 = vmatprep.subr.bf16.mxu0 0
      %1664 = vmatpush2.bf16.msra.mxu0 0
      %1665 = vmatprep.subr.bf16.mxu0 0
      %1666 = vmatpush2.bf16.msra.mxu0 0
      %1667 = vmatprep.mubr.bf16.mxu0 0
      %1668 = vmatmul.mubr.bf16.gmra.mxu0 %v1624
      %v1669 = vpop.f32.mrf.mxu0
      %v1670 = vadd.f32 0.0, %v1669
      %v1671 = vpop.f32.mrf.mxu0
      %v1672 = vpop.f32.mrf.mxu0
      %v1673 = vadd.f32 0.0, %v1672
      %v1674 = vpop.f32.mrf.mxu0
      %1675 = vmatprep.mubr.bf16.mxu0 0
      %1676 = vmatmul.mubr.bf16.gmra.mxu0 %v1627
      %v1677 = vpop.f32.mrf.mxu0
      %v1678 = vadd.f32 0.0, %v1677
      %v1679 = vpop.f32.mrf.mxu0
      %v1680 = vpop.f32.mrf.mxu0
      %v1681 = vadd.f32 0.0, %v1680
      %v1682 = vpop.f32.mrf.mxu0
      %1683 = vmatprep.mubr.bf16.mxu0 0
      %1684 = vmatmul.mubr.bf16.gmra.mxu0 %v1630
      %v1685 = vpop.f32.mrf.mxu0
      %v1686 = vadd.f32 0.0, %v1685
      %v1687 = vpop.f32.mrf.mxu0
      %v1688 = vpop.f32.mrf.mxu0
      %v1689 = vadd.f32 0.0, %v1688
      %v1690 = vpop.f32.mrf.mxu0
      %1691 = vmatprep.mubr.bf16.mxu0 0
      %1692 = vmatmul.mubr.bf16.gmra.mxu0 %v1633
      %v1693 = vpop.f32.mrf.mxu0
      %v1694 = vadd.f32 0.0, %v1693
      %v1695 = vpop.f32.mrf.mxu0
      %v1696 = vpop.f32.mrf.mxu0
      %v1697 = vadd.f32 0.0, %v1696
      %v1698 = vpop.f32.mrf.mxu0
      %1699 = vdwg.mxu0
      %v1700 = vadd.f32 %v1458, %v1670
      %v1701 = vadd.f32 %v1459, %v1673
      %v1702 = vadd.f32 %v1460, %v1678
      %v1703 = vadd.f32 %v1461, %v1681
      %v1704 = vadd.f32 %v1462, %v1686
      %v1705 = vadd.f32 %v1463, %v1689
      %v1706 = vadd.f32 %v1464, %v1694
      %v1707 = vadd.f32 %v1465, %v1697
      %v1708 = vld [vmem:[%s2] sm:$0x1]
      %v1710 = vlaneseq
      %v1711 = vshrl.u32 %v1710, 7
      %v1712 = vsub.s32 0, %v1711
      %v1713 = vrot.slane %v1708, %v1712
      %v1715 = vadd.f32 %v1700, %v1713
      %v1716 = vadd.f32 %v1701, %v1713
      %v1717 = vadd.f32 %v1702, %v1713
      %v1718 = vadd.f32 %v1703, %v1713
      %v1719 = vadd.f32 %v1704, %v1713
      %v1720 = vadd.f32 %v1705, %v1713
      %v1721 = vadd.f32 %v1706, %v1713
      %v1722 = vadd.f32 %v1707, %v1713
      %v1723 = vmax.f32 %v1715, 0.0
      %v1724 = vmax.f32 %v1716, 0.0
      %v1725 = vmax.f32 %v1717, 0.0
      %v1726 = vmax.f32 %v1718, 0.0
      %v1727 = vmax.f32 %v1719, 0.0
      %v1728 = vmax.f32 %v1720, 0.0
      %v1729 = vmax.f32 %v1721, 0.0
      %v1730 = vmax.f32 %v1722, 0.0
      %v1731 = vpack.c.bf16 %v1724, %v1723
      %v1732 = vpack.c.bf16 %v1726, %v1725
      %v1733 = vpack.c.bf16 %v1728, %v1727
      %v1734 = vpack.c.bf16 %v1730, %v1729
      %v1739 = vunpack.c.l.b16 %v1731
      %v1740 = vunpack.c.h.b16 %v1731
      %v1741 = vunpack.c.l.b16 %v1732
      %v1742 = vunpack.c.h.b16 %v1732
      %v1743 = vunpack.c.l.b16 %v1733
      %v1744 = vunpack.c.h.b16 %v1733
      %v1745 = vunpack.c.l.b16 %v1734
      %v1746 = vunpack.c.h.b16 %v1734
      %v1747 = vpack.c.b16 %v1739, %v1739
      %v1748 = vpack.c.b16 %v1740, %v1740
      %v1749 = vpack.c.b16 %v1741, %v1741
      %v1750 = vpack.c.b16 %v1742, %v1742
      %v1751 = vpack.c.b16 %v1743, %v1743
      %v1752 = vpack.c.b16 %v1744, %v1744
      %v1753 = vpack.c.b16 %v1745, %v1745
      %v1754 = vpack.c.b16 %v1746, %v1746
      %vm1763 = vcmask 257024
      %1764 = vst.msk [vmem:[%s192] sm:$0xf] %vm1763, %v1747
      %1765 = vst.msk [vmem:[%s192 + $0x4] sm:$0xf] %vm1763, %v1748
      %1766 = vst.msk [vmem:[%s192 + $0x8] sm:$0xf] %vm1763, %v1749
      %1767 = vst.msk [vmem:[%s192 + $0xc] sm:$0xf] %vm1763, %v1750
      %1768 = vst.msk [vmem:[%s192 + $0x10] sm:$0xf] %vm1763, %v1751
      %1769 = vst.msk [vmem:[%s192 + $0x14] sm:$0xf] %vm1763, %v1752
      %1770 = vst.msk [vmem:[%s192 + $0x18] sm:$0xf] %vm1763, %v1753
      %1771 = vst.msk [vmem:[%s192 + $0x1c] sm:$0xf] %vm1763, %v1754
      %s1772 = smul.u32 8, %s19
      %p1773 = scmp.lt.s32.totalorder %s18, 1
      %s1774 = scalar_select %p1773, %s18, 1
      %p1775 = scmp.lt.s32.totalorder %s1772, 7
      %s1776 = scalar_select %p1775, %s1772, 7
      %s1777 = smul.addr %s1774, 8
      %s1778 = sadd.s32 %s1776, %s1777
      %s1779 = smul.addr %s1778, 4
      %s1780 = scalar_lea.vmem %s3, %s1779
      // Predicated region
      $region33: #{bottleneck_forward.4} parent=31 // pred_check
        %p1781 = pneg %p114
      $region34: #{bottleneck_forward.4} parent=31 // pred_check_branch
        %1783 = sbr.rel (%p1781) target = $region36
      $region35: #{bottleneck_forward.4} parent=31 // pred_region
        %s1784 = smul.u32 8, %s19
      $region36: #{bottleneck_forward.4} parent=31 // pred_fallthru
        _
    $region32: #{bottleneck_forward.4} parent=5 // pred_fallthru
      _
    %p1785 = scmp.le.s32.totalorder 2, %s9
    // Predicated region
    $region37: #{bottleneck_forward.4} parent=5 // pred_check
      %p1786 = pneg %p1785
    $region38: #{bottleneck_forward.4} parent=5 // pred_check_branch
      %1788 = sbr.rel (%p1786) target = $region40
    $region39: #{bottleneck_forward.4} parent=5 // pred_region
      %s1789 = ssub.s32 %s9, 2
      // Predicated region
      $region41: #{bottleneck_forward.4} parent=39 // pred_check
        %p1790 = pneg %p120
      $region42: #{bottleneck_forward.4} parent=39 // pred_check_branch
        %1792 = sbr.rel (%p1790) target = $region44
      $region43: #{bottleneck_forward.4} parent=39 // pred_region
        %s1793 = smul.u32 8, %s21
        %p1794 = scmp.lt.s32.totalorder %s20, 1
        %s1795 = scalar_select %p1794, %s20, 1
        %p1796 = scmp.lt.s32.totalorder %s1793, 7
        %s1797 = scalar_select %p1796, %s1793, 7
        %s1798 = smul.addr %s1795, 8
        %s1799 = sadd.s32 %s1797, %s1798
        %s1800 = smul.addr %s1799, 4
        %s1801 = scalar_lea.vmem %s3, %s1800
      $region44: #{bottleneck_forward.4} parent=39 // pred_fallthru
        _
    $region40: #{bottleneck_forward.4} parent=5 // pred_fallthru
      _
  $region6: #{bottleneck_forward.4} parent=0 // loop_footer
    %s13 = sadd.s32 1, %s9
  $region7: #{bottleneck_forward.4} parent=0 // loop_footer_branch
    %8 = sbr.rel target = $region3
  $region8: #{bottleneck_forward.4} parent=0 // loop_exit
    _

</llo_original>
